<compile_context>
chip_gen: v7x
topology: tpu7x:2x2x1
jax: 0.10.0
libtpu: 0.0.40
codegen_flags: <defaults>
</compile_context>

<pallas_src>
import math
import functools

import jax
import jax.numpy as jnp
from jax import lax
from jax.experimental import pallas as pl
from jax.experimental.pallas import tpu as pltpu


# ----------------------------------------------------------------------------
# In-kernel helpers
# ----------------------------------------------------------------------------
def _layer_norm(x, gamma, beta, eps=1e-6):
    mu = jnp.mean(x, axis=-1, keepdims=True)
    var = jnp.mean((x - mu) ** 2, axis=-1, keepdims=True)
    return (x - mu) * lax.rsqrt(var + eps) * gamma + beta


# ----------------------------------------------------------------------------
# Single fused encoder kernel (one grid step == the whole forward pass)
# ----------------------------------------------------------------------------
def encoder_kernel(x_ref, w_emb_ref, peb_ref, ln0_ref,
                   wqkv_ref, wo_ref, w1_ref, b1_ref, w2_ref, lnp_ref,
                   out_ref, attn_ref, *, n_layers, n_head, d_k, batch, seq):
    D = n_head * d_k

    # ---- sensor_embedding Linear + (bias + positional enc) + eval dropout + LN
    x = x_ref[...].astype(jnp.float32)                                  # (BS, Din)
    ln0 = ln0_ref[...]                                                  # (2, D)
    h = jnp.dot(x, w_emb_ref[...], preferred_element_type=jnp.float32)
    h = h + peb_ref[...]                                                # bias+PE pre-added
    h = _layer_norm(h, ln0[0:1], ln0[1:2])                              # (BS, D)

    # ---- encoder layers, fully unrolled; all weights resident in VMEM ------
    for l in range(n_layers):
        last = (l == n_layers - 1)
        lp = lnp_ref[l]                                                 # (5, D)

        # -- fused QKV projection: one MXU push; 1/sqrt(d_k) folded into Wq --
        qkv = jnp.dot(h, wqkv_ref[l], preferred_element_type=jnp.float32)  # (BS, 3D)

        # -- per-head attention (static unrolled), batch dim leading ---------
        ctx_heads = []
        for hh in range(n_head):
            lo = hh * d_k
            qh = qkv[:, lo:lo + d_k].reshape(batch, seq, d_k)
            kh = qkv[:, D + lo:D + lo + d_k].reshape(batch, seq, d_k)
            vh = qkv[:, 2 * D + lo:2 * D + lo + d_k].reshape(batch, seq, d_k)

            s = jnp.einsum('bqd,bkd->bqk', qh, kh,
                           preferred_element_type=jnp.float32)          # (B,S,S)
            s = s - jnp.max(s, axis=-1, keepdims=True)
            e = jnp.exp(s)
            denom = jnp.sum(e, axis=-1, keepdims=True)
            # exact reciprocal only for the returned (last-layer) probabilities
            p = e * pl.reciprocal(denom, approx=not last)

            if last:   # only the returned attention map hits HBM
                attn_ref[hh] = p.astype(attn_ref.dtype)                 # (B,S,S)

            ctx = jnp.einsum('bqk,bkd->bqd', p, vh,
                             preferred_element_type=jnp.float32)        # (B,S,dk)
            ctx_heads.append(ctx.reshape(batch * seq, d_k))

        # -- output projection: head reduction folded into one MXU contraction
        ctx_all = jnp.concatenate(ctx_heads, axis=-1)                   # (BS, D)
        y = jnp.dot(ctx_all, wo_ref[l], preferred_element_type=jnp.float32) + h
        h = _layer_norm(y, lp[0:1], lp[1:2])

        # -- position-wise FFN (ReLU) + residual + LN -------------------------
        f = jnp.dot(h, w1_ref[l], preferred_element_type=jnp.float32) + b1_ref[l]
        f = jnp.maximum(f, 0.0)
        y2 = jnp.dot(f, w2_ref[l], preferred_element_type=jnp.float32) + lp[2:3] + h
        h = _layer_norm(y2, lp[3:4], lp[4:5])

    out_ref[...] = h.astype(out_ref.dtype)


# ----------------------------------------------------------------------------
# pallas_call wrapper
# ----------------------------------------------------------------------------
def _whole(shape):
    # full-array block, constant block index (single grid step)
    return pl.BlockSpec(shape, lambda *_: (0,) * len(shape))


def encoder_forward(params, src_seq, n_head):
    """Full Encoder.forward (mask=None, eval-mode dropout) in one pallas_call."""
    B, S, Din = src_seq.shape
    D = params["w_emb"].shape[1]
    d_k = D // n_head
    layers = params["layers"]
    L = len(layers)
    Dh = layers[0]["w1"].shape[1]
    scale = 1.0 / math.sqrt(d_k)

    # ---- pack weights (pure JAX, outside the kernel) ------------------------
    # Fused head-major QKV projection with the attention scale folded into Wq.
    wqkv = jnp.stack([jnp.concatenate([lp["wq"] * scale, lp["wk"], lp["wv"]], axis=1)
                      for lp in layers])                                 # (L, D, 3D)
    wo = jnp.stack([lp["wo"] for lp in layers])                          # (L, D, D)
    w1 = jnp.stack([lp["w1"] for lp in layers])                          # (L, D, Dh)
    b1 = jnp.stack([lp["b1"][None, :] for lp in layers])                 # (L, 1, Dh)
    w2 = jnp.stack([lp["w2"] for lp in layers])                          # (L, Dh, D)
    # per-layer LN params + FFN output bias packed into one slab
    lnp = jnp.stack([jnp.stack([lp["attn_ln_g"], lp["attn_ln_b"], lp["b2"],
                                lp["ffn_ln_g"], lp["ffn_ln_b"]]) for lp in layers])  # (L,5,D)

    # embedding bias + positional encoding pre-added into one constant tile
    peb = jnp.tile(params["pe"][:S], (B, 1)) + params["b_emb"][None, :]  # (B*S, D)
    ln0 = jnp.stack([params["ln_g"], params["ln_b"]])                    # (2, D)
    x2d = src_seq.reshape(B * S, Din)

    kern = functools.partial(encoder_kernel, n_layers=L, n_head=n_head,
                             d_k=d_k, batch=B, seq=S)

    out2d, attn_hb = pl.pallas_call(
        kern,
        out_shape=(jax.ShapeDtypeStruct((B * S, D), jnp.float32),
                   jax.ShapeDtypeStruct((n_head, B, S, S), jnp.float32)),
        grid=(1,),
        in_specs=[_whole((B * S, Din)), _whole((Din, D)), _whole((B * S, D)),
                  _whole((2, D)),
                  _whole((L, D, 3 * D)), _whole((L, D, D)),
                  _whole((L, D, Dh)), _whole((L, 1, Dh)), _whole((L, Dh, D)),
                  _whole((L, 5, D))],
        out_specs=(_whole((B * S, D)),
                   _whole((n_head, B, S, S))),
        compiler_params=pltpu.CompilerParams(
            dimension_semantics=("arbitrary",)),
    )(x2d, params["w_emb"], peb, ln0, wqkv, wo, w1, b1, w2, lnp)

    # (B*S, D) -> (B, S, D) and (H, B, S, S) -> (B, H, S, S): trivial wrapper-side
    return out2d.reshape(B, S, D), attn_hb.transpose(1, 0, 2, 3)


# ----------------------------------------------------------------------------
# Parameters / positional encoding / pure-JAX reference
# ----------------------------------------------------------------------------
def positional_encoding(n_position, d_hid):
    position = jnp.arange(n_position, dtype=jnp.float32)[:, None]
    div_term = jnp.exp(jnp.arange(0, d_hid, 2, dtype=jnp.float32)
                       * (-math.log(10000.0) / d_hid))
    pe = jnp.zeros((n_position, d_hid), jnp.float32)
    pe = pe.at[:, 0::2].set(jnp.sin(position * div_term))
    pe = pe.at[:, 1::2].set(jnp.cos(position * div_term))
    return pe


def init_params(key, seq_input_size, n_layers, d_model, d_hid, n_position):
    std = 0.02
    ks = iter(jax.random.split(key, 2 + 6 * n_layers))
    params = {
        "w_emb": jax.random.normal(next(ks), (seq_input_size, d_model), jnp.float32) * std,
        "b_emb": jnp.zeros((d_model,), jnp.float32),
        "pe": positional_encoding(n_position, d_model),
        "ln_g": jnp.ones((d_model,), jnp.float32),
        "ln_b": jnp.zeros((d_model,), jnp.float32),
        "layers": [],
    }
    for _ in range(n_layers):
        lp = {
            "wq": jax.random.normal(next(ks), (d_model, d_model), jnp.float32) * std,
            "wk": jax.random.normal(next(ks), (d_model, d_model), jnp.float32) * std,
            "wv": jax.random.normal(next(ks), (d_model, d_model), jnp.float32) * std,
            "wo": jax.random.normal(next(ks), (d_model, d_model), jnp.float32) * std,
            "attn_ln_g": jnp.ones((d_model,), jnp.float32),
            "attn_ln_b": jnp.zeros((d_model,), jnp.float32),
            "w1": jax.random.normal(next(ks), (d_model, d_hid), jnp.float32) * std,
            "b1": jnp.zeros((d_hid,), jnp.float32),
            "w2": jax.random.normal(next(ks), (d_hid, d_model), jnp.float32) * std,
            "b2": jnp.zeros((d_model,), jnp.float32),
            "ffn_ln_g": jnp.ones((d_model,), jnp.float32),
            "ffn_ln_b": jnp.zeros((d_model,), jnp.float32),
        }
        params["layers"].append(lp)
    return params


def _ln_ref(x, g, b, eps=1e-6):
    mu = x.mean(-1, keepdims=True)
    var = ((x - mu) ** 2).mean(-1, keepdims=True)
    return (x - mu) / jnp.sqrt(var + eps) * g + b


def encoder_ref(params, x, n_head):
    B, S, _ = x.shape
    h = x @ params["w_emb"] + params["b_emb"]
    h = h + params["pe"][None, :S]
    h = _ln_ref(h, params["ln_g"], params["ln_b"])
    attn = None
    for lp in params["layers"]:
        D = h.shape[-1]
        dk = D // n_head
        q = (h @ lp["wq"]).reshape(B, S, n_head, dk).transpose(0, 2, 1, 3)
        k = (h @ lp["wk"]).reshape(B, S, n_head, dk).transpose(0, 2, 1, 3)
        v = (h @ lp["wv"]).reshape(B, S, n_head, dk).transpose(0, 2, 1, 3)
        s = jnp.einsum("bhqd,bhkd->bhqk", q / math.sqrt(dk), k)
        attn = jax.nn.softmax(s, axis=-1)
        o = jnp.einsum("bhqk,bhkd->bhqd", attn, v).transpose(0, 2, 1, 3).reshape(B, S, D)
        h = _ln_ref(o @ lp["wo"] + h, lp["attn_ln_g"], lp["attn_ln_b"])
        f = jnp.maximum(h @ lp["w1"] + lp["b1"], 0.0) @ lp["w2"] + lp["b2"]
        h = _ln_ref(f + h, lp["ffn_ln_g"], lp["ffn_ln_b"])
    return h, attn


# ----------------------------------------------------------------------------
if __name__ == "__main__":
    B, S = 2, 8
    seq_input_size = 16
    d_model = 32
    n_head = 4
    n_layers = 2
    d_hid = 4 * d_model
    n_position = 64  # only pe[:S] is used

    key = jax.random.PRNGKey(0)
    kx, kp = jax.random.split(key)
    src_seq = jax.random.normal(kx, (B, S, seq_input_size), jnp.float32)
    params = init_params(kp, seq_input_size, n_layers, d_model, d_hid, n_position)

    enc_out, last_attn = encoder_forward(params, src_seq, n_head)
    enc_out = jax.block_until_ready(enc_out)
    last_attn = jax.block_until_ready(last_attn)

    ref_out, ref_attn = encoder_ref(params, src_seq, n_head)
    assert enc_out.shape == (B, S, d_model)
    assert last_attn.shape == (B, n_head, S, S)
    # tolerance allows for the EUP approx-reciprocal softmax in intermediate layers
    assert jnp.allclose(enc_out, ref_out, atol=1e-3, rtol=1e-3)
    assert jnp.allclose(last_attn, ref_attn, atol=1e-3, rtol=1e-3)

    print("KERNEL_OK")
</pallas_src>

<mosaic_0001>
module attributes {stable_mosaic.version = 11 : i64} {
  func.func @encoder_kernel(%arg0: i32, %arg1: memref<16x16xf32, #tpu.memory_space<vmem>>, %arg2: memref<16x32xf32, #tpu.memory_space<vmem>>, %arg3: memref<16x32xf32, #tpu.memory_space<vmem>>, %arg4: memref<2x32xf32, #tpu.memory_space<vmem>>, %arg5: memref<2x32x96xf32, #tpu.memory_space<vmem>>, %arg6: memref<2x32x32xf32, #tpu.memory_space<vmem>>, %arg7: memref<2x32x128xf32, #tpu.memory_space<vmem>>, %arg8: memref<2x1x128xf32, #tpu.memory_space<vmem>>, %arg9: memref<2x128x32xf32, #tpu.memory_space<vmem>>, %arg10: memref<2x5x32xf32, #tpu.memory_space<vmem>>, %arg11: memref<16x32xf32, #tpu.memory_space<vmem>>, %arg12: memref<4x2x8x8xf32, #tpu.memory_space<vmem>>) attributes {dimension_semantics = [#tpu.dimension_semantics<arbitrary>], iteration_bounds = array<i64: 1>, scalar_prefetch = 0 : i64, scratch_operands = 0 : i64, tpu.core_type = #tpu.core_type<tc>, window_params = [{pipeline_mode = #tpu.pipeline_mode<synchronous>, transform_indices = @transform_0, window_bounds = array<i64: 16, 16>}, {pipeline_mode = #tpu.pipeline_mode<synchronous>, transform_indices = @transform_1, window_bounds = array<i64: 16, 32>}, {pipeline_mode = #tpu.pipeline_mode<synchronous>, transform_indices = @transform_2, window_bounds = array<i64: 16, 32>}, {pipeline_mode = #tpu.pipeline_mode<synchronous>, transform_indices = @transform_3, window_bounds = array<i64: 2, 32>}, {pipeline_mode = #tpu.pipeline_mode<synchronous>, transform_indices = @transform_4, window_bounds = array<i64: 2, 32, 96>}, {pipeline_mode = #tpu.pipeline_mode<synchronous>, transform_indices = @transform_5, window_bounds = array<i64: 2, 32, 32>}, {pipeline_mode = #tpu.pipeline_mode<synchronous>, transform_indices = @transform_6, window_bounds = array<i64: 2, 32, 128>}, {pipeline_mode = #tpu.pipeline_mode<synchronous>, transform_indices = @transform_7, window_bounds = array<i64: 2, 1, 128>}, {pipeline_mode = #tpu.pipeline_mode<synchronous>, transform_indices = @transform_8, window_bounds = array<i64: 2, 128, 32>}, {pipeline_mode = #tpu.pipeline_mode<synchronous>, transform_indices = @transform_9, window_bounds = array<i64: 2, 5, 32>}, {pipeline_mode = #tpu.pipeline_mode<synchronous>, transform_indices = @transform_10, window_bounds = array<i64: 16, 32>}, {pipeline_mode = #tpu.pipeline_mode<synchronous>, transform_indices = @transform_11, window_bounds = array<i64: 4, 2, 8, 8>}]} {
    %c0 = arith.constant 0 : index
    %c0_0 = arith.constant 0 : index
    %0 = vector.load %arg1[%c0, %c0_0] : memref<16x16xf32, #tpu.memory_space<vmem>>, vector<16x16xf32>
    %c0_1 = arith.constant 0 : index
    %c0_2 = arith.constant 0 : index
    %1 = vector.load %arg4[%c0_1, %c0_2] : memref<2x32xf32, #tpu.memory_space<vmem>>, vector<2x32xf32>
    %c0_3 = arith.constant 0 : index
    %c0_4 = arith.constant 0 : index
    %2 = vector.load %arg2[%c0_3, %c0_4] : memref<16x32xf32, #tpu.memory_space<vmem>>, vector<16x32xf32>
    %cst = arith.constant dense<0.000000e+00> : vector<16x32xf32>
    %3 = tpu.matmul %0, %2, %cst {dimension_numbers = #tpu.dot_dimension_numbers<[1], [0], [0], [1], [0, 0, 1, 1], [], []>} : vector<16x16xf32>, vector<16x32xf32>, vector<16x32xf32> -> vector<16x32xf32>
    %c0_5 = arith.constant 0 : index
    %c0_6 = arith.constant 0 : index
    %4 = vector.load %arg3[%c0_5, %c0_6] : memref<16x32xf32, #tpu.memory_space<vmem>>, vector<16x32xf32>
    %5 = arith.addf %3, %4 : vector<16x32xf32>
    %6 = vector.extract_strided_slice %1 {offsets = [0, 0], sizes = [1, 32], strides = [1, 1]} : vector<2x32xf32> to vector<1x32xf32>
    %7 = vector.extract_strided_slice %1 {offsets = [1, 0], sizes = [1, 32], strides = [1, 1]} : vector<2x32xf32> to vector<1x32xf32>
    %cst_7 = arith.constant dense<0.000000e+00> : vector<16xf32>
    %8 = vector.multi_reduction <add>, %5, %cst_7 [1] : vector<16x32xf32> to vector<16xf32>
    %9 = vector.shape_cast %8 : vector<16xf32> to vector<16x1xf32>
    %cst_8 = arith.constant 3.200000e+01 : f32
    %10 = vector.broadcast %cst_8 : f32 to vector<16x1xf32>
    %11 = arith.divf %9, %10 : vector<16x1xf32>
    %12 = vector.broadcast %11 : vector<16x1xf32> to vector<16x32xf32>
    %13 = arith.subf %5, %12 : vector<16x32xf32>
    %14 = arith.mulf %13, %13 : vector<16x32xf32>
    %cst_9 = arith.constant dense<0.000000e+00> : vector<16xf32>
    %15 = vector.multi_reduction <add>, %14, %cst_9 [1] : vector<16x32xf32> to vector<16xf32>
    %16 = vector.shape_cast %15 : vector<16xf32> to vector<16x1xf32>
    %cst_10 = arith.constant 3.200000e+01 : f32
    %17 = vector.broadcast %cst_10 : f32 to vector<16x1xf32>
    %18 = arith.divf %16, %17 : vector<16x1xf32>
    %19 = vector.broadcast %11 : vector<16x1xf32> to vector<16x32xf32>
    %20 = arith.subf %5, %19 : vector<16x32xf32>
    %cst_11 = arith.constant 9.99999997E-7 : f32
    %21 = vector.broadcast %cst_11 : f32 to vector<16x1xf32>
    %22 = arith.addf %18, %21 : vector<16x1xf32>
    %23 = math.rsqrt %22 : vector<16x1xf32>
    %24 = vector.broadcast %23 : vector<16x1xf32> to vector<16x32xf32>
    %25 = arith.mulf %20, %24 : vector<16x32xf32>
    %26 = vector.broadcast %6 : vector<1x32xf32> to vector<16x32xf32>
    %27 = arith.mulf %25, %26 : vector<16x32xf32>
    %28 = vector.broadcast %7 : vector<1x32xf32> to vector<16x32xf32>
    %29 = arith.addf %27, %28 : vector<16x32xf32>
    %c0_12 = arith.constant 0 : index
    %c0_13 = arith.constant 0 : index
    %c0_14 = arith.constant 0 : index
    %30 = vector.load %arg10[%c0_12, %c0_13, %c0_14] : memref<2x5x32xf32, #tpu.memory_space<vmem>>, vector<1x5x32xf32>
    %31 = vector.shape_cast %30 : vector<1x5x32xf32> to vector<5x32xf32>
    %c0_15 = arith.constant 0 : index
    %c0_16 = arith.constant 0 : index
    %c0_17 = arith.constant 0 : index
    %32 = vector.load %arg5[%c0_15, %c0_16, %c0_17] : memref<2x32x96xf32, #tpu.memory_space<vmem>>, vector<1x32x96xf32>
    %33 = vector.shape_cast %32 : vector<1x32x96xf32> to vector<32x96xf32>
    %cst_18 = arith.constant dense<0.000000e+00> : vector<16x96xf32>
    %34 = tpu.matmul %29, %33, %cst_18 {dimension_numbers = #tpu.dot_dimension_numbers<[1], [0], [0], [1], [0, 0, 1, 1], [], []>} : vector<16x32xf32>, vector<32x96xf32>, vector<16x96xf32> -> vector<16x96xf32>
    %35 = vector.extract_strided_slice %34 {offsets = [0, 0], sizes = [16, 8], strides = [1, 1]} : vector<16x96xf32> to vector<16x8xf32>
    %36 = vector.shape_cast %35 : vector<16x8xf32> to vector<2x8x8xf32>
    %37 = vector.extract_strided_slice %34 {offsets = [0, 32], sizes = [16, 8], strides = [1, 1]} : vector<16x96xf32> to vector<16x8xf32>
    %38 = vector.shape_cast %37 : vector<16x8xf32> to vector<2x8x8xf32>
    %39 = vector.extract_strided_slice %34 {offsets = [0, 64], sizes = [16, 8], strides = [1, 1]} : vector<16x96xf32> to vector<16x8xf32>
    %40 = vector.shape_cast %39 : vector<16x8xf32> to vector<2x8x8xf32>
    "tpu.trace_start"() <{level = 10 : i32, message = "bqd,bkd->bqk"}> : () -> ()
    %cst_19 = arith.constant dense<0.000000e+00> : vector<2x8x8xf32>
    %41 = tpu.matmul %36, %38, %cst_19 {dimension_numbers = #tpu.dot_dimension_numbers<[2], [2], [1], [1], [0, 0, 0, 1, 1, 1], [0], [0]>} : vector<2x8x8xf32>, vector<2x8x8xf32>, vector<2x8x8xf32> -> vector<2x8x8xf32>
    "tpu.trace_stop"() : () -> ()
    %cst_20 = arith.constant dense<0xFF800000> : vector<2x8xf32>
    %42 = vector.multi_reduction <maximumf>, %41, %cst_20 [2] : vector<2x8x8xf32> to vector<2x8xf32>
    %43 = vector.shape_cast %42 : vector<2x8xf32> to vector<2x8x1xf32>
    %44 = vector.broadcast %43 : vector<2x8x1xf32> to vector<2x8x8xf32>
    %45 = arith.subf %41, %44 : vector<2x8x8xf32>
    %46 = math.exp %45 : vector<2x8x8xf32>
    %cst_21 = arith.constant dense<0.000000e+00> : vector<2x8xf32>
    %47 = vector.multi_reduction <add>, %46, %cst_21 [2] : vector<2x8x8xf32> to vector<2x8xf32>
    %48 = vector.shape_cast %47 : vector<2x8xf32> to vector<2x8x1xf32>
    %49 = tpu.reciprocal %48 {approx = true} : vector<2x8x1xf32> -> vector<2x8x1xf32>
    %50 = vector.broadcast %49 : vector<2x8x1xf32> to vector<2x8x8xf32>
    %51 = arith.mulf %46, %50 : vector<2x8x8xf32>
    "tpu.trace_start"() <{level = 10 : i32, message = "bqk,bkd->bqd"}> : () -> ()
    %cst_22 = arith.constant dense<0.000000e+00> : vector<2x8x8xf32>
    %52 = tpu.matmul %51, %40, %cst_22 {dimension_numbers = #tpu.dot_dimension_numbers<[2], [1], [1], [2], [0, 0, 0, 1, 1, 2], [0], [0]>} : vector<2x8x8xf32>, vector<2x8x8xf32>, vector<2x8x8xf32> -> vector<2x8x8xf32>
    "tpu.trace_stop"() : () -> ()
    %53 = vector.shape_cast %52 : vector<2x8x8xf32> to vector<16x8xf32>
    %54 = vector.extract_strided_slice %34 {offsets = [0, 8], sizes = [16, 8], strides = [1, 1]} : vector<16x96xf32> to vector<16x8xf32>
    %55 = vector.shape_cast %54 : vector<16x8xf32> to vector<2x8x8xf32>
    %56 = vector.extract_strided_slice %34 {offsets = [0, 40], sizes = [16, 8], strides = [1, 1]} : vector<16x96xf32> to vector<16x8xf32>
    %57 = vector.shape_cast %56 : vector<16x8xf32> to vector<2x8x8xf32>
    %58 = vector.extract_strided_slice %34 {offsets = [0, 72], sizes = [16, 8], strides = [1, 1]} : vector<16x96xf32> to vector<16x8xf32>
    %59 = vector.shape_cast %58 : vector<16x8xf32> to vector<2x8x8xf32>
    "tpu.trace_start"() <{level = 10 : i32, message = "bqd,bkd->bqk"}> : () -> ()
    %cst_23 = arith.constant dense<0.000000e+00> : vector<2x8x8xf32>
    %60 = tpu.matmul %55, %57, %cst_23 {dimension_numbers = #tpu.dot_dimension_numbers<[2], [2], [1], [1], [0, 0, 0, 1, 1, 1], [0], [0]>} : vector<2x8x8xf32>, vector<2x8x8xf32>, vector<2x8x8xf32> -> vector<2x8x8xf32>
    "tpu.trace_stop"() : () -> ()
    %cst_24 = arith.constant dense<0xFF800000> : vector<2x8xf32>
    %61 = vector.multi_reduction <maximumf>, %60, %cst_24 [2] : vector<2x8x8xf32> to vector<2x8xf32>
    %62 = vector.shape_cast %61 : vector<2x8xf32> to vector<2x8x1xf32>
    %63 = vector.broadcast %62 : vector<2x8x1xf32> to vector<2x8x8xf32>
    %64 = arith.subf %60, %63 : vector<2x8x8xf32>
    %65 = math.exp %64 : vector<2x8x8xf32>
    %cst_25 = arith.constant dense<0.000000e+00> : vector<2x8xf32>
    %66 = vector.multi_reduction <add>, %65, %cst_25 [2] : vector<2x8x8xf32> to vector<2x8xf32>
    %67 = vector.shape_cast %66 : vector<2x8xf32> to vector<2x8x1xf32>
    %68 = tpu.reciprocal %67 {approx = true} : vector<2x8x1xf32> -> vector<2x8x1xf32>
    %69 = vector.broadcast %68 : vector<2x8x1xf32> to vector<2x8x8xf32>
    %70 = arith.mulf %65, %69 : vector<2x8x8xf32>
    "tpu.trace_start"() <{level = 10 : i32, message = "bqk,bkd->bqd"}> : () -> ()
    %cst_26 = arith.constant dense<0.000000e+00> : vector<2x8x8xf32>
    %71 = tpu.matmul %70, %59, %cst_26 {dimension_numbers = #tpu.dot_dimension_numbers<[2], [1], [1], [2], [0, 0, 0, 1, 1, 2], [0], [0]>} : vector<2x8x8xf32>, vector<2x8x8xf32>, vector<2x8x8xf32> -> vector<2x8x8xf32>
    "tpu.trace_stop"() : () -> ()
    %72 = vector.shape_cast %71 : vector<2x8x8xf32> to vector<16x8xf32>
    %73 = vector.extract_strided_slice %34 {offsets = [0, 16], sizes = [16, 8], strides = [1, 1]} : vector<16x96xf32> to vector<16x8xf32>
    %74 = vector.shape_cast %73 : vector<16x8xf32> to vector<2x8x8xf32>
    %75 = vector.extract_strided_slice %34 {offsets = [0, 48], sizes = [16, 8], strides = [1, 1]} : vector<16x96xf32> to vector<16x8xf32>
    %76 = vector.shape_cast %75 : vector<16x8xf32> to vector<2x8x8xf32>
    %77 = vector.extract_strided_slice %34 {offsets = [0, 80], sizes = [16, 8], strides = [1, 1]} : vector<16x96xf32> to vector<16x8xf32>
    %78 = vector.shape_cast %77 : vector<16x8xf32> to vector<2x8x8xf32>
    "tpu.trace_start"() <{level = 10 : i32, message = "bqd,bkd->bqk"}> : () -> ()
    %cst_27 = arith.constant dense<0.000000e+00> : vector<2x8x8xf32>
    %79 = tpu.matmul %74, %76, %cst_27 {dimension_numbers = #tpu.dot_dimension_numbers<[2], [2], [1], [1], [0, 0, 0, 1, 1, 1], [0], [0]>} : vector<2x8x8xf32>, vector<2x8x8xf32>, vector<2x8x8xf32> -> vector<2x8x8xf32>
    "tpu.trace_stop"() : () -> ()
    %cst_28 = arith.constant dense<0xFF800000> : vector<2x8xf32>
    %80 = vector.multi_reduction <maximumf>, %79, %cst_28 [2] : vector<2x8x8xf32> to vector<2x8xf32>
    %81 = vector.shape_cast %80 : vector<2x8xf32> to vector<2x8x1xf32>
    %82 = vector.broadcast %81 : vector<2x8x1xf32> to vector<2x8x8xf32>
    %83 = arith.subf %79, %82 : vector<2x8x8xf32>
    %84 = math.exp %83 : vector<2x8x8xf32>
    %cst_29 = arith.constant dense<0.000000e+00> : vector<2x8xf32>
    %85 = vector.multi_reduction <add>, %84, %cst_29 [2] : vector<2x8x8xf32> to vector<2x8xf32>
    %86 = vector.shape_cast %85 : vector<2x8xf32> to vector<2x8x1xf32>
    %87 = tpu.reciprocal %86 {approx = true} : vector<2x8x1xf32> -> vector<2x8x1xf32>
    %88 = vector.broadcast %87 : vector<2x8x1xf32> to vector<2x8x8xf32>
    %89 = arith.mulf %84, %88 : vector<2x8x8xf32>
    "tpu.trace_start"() <{level = 10 : i32, message = "bqk,bkd->bqd"}> : () -> ()
    %cst_30 = arith.constant dense<0.000000e+00> : vector<2x8x8xf32>
    %90 = tpu.matmul %89, %78, %cst_30 {dimension_numbers = #tpu.dot_dimension_numbers<[2], [1], [1], [2], [0, 0, 0, 1, 1, 2], [0], [0]>} : vector<2x8x8xf32>, vector<2x8x8xf32>, vector<2x8x8xf32> -> vector<2x8x8xf32>
    "tpu.trace_stop"() : () -> ()
    %91 = vector.shape_cast %90 : vector<2x8x8xf32> to vector<16x8xf32>
    %92 = vector.extract_strided_slice %34 {offsets = [0, 24], sizes = [16, 8], strides = [1, 1]} : vector<16x96xf32> to vector<16x8xf32>
    %93 = vector.shape_cast %92 : vector<16x8xf32> to vector<2x8x8xf32>
    %94 = vector.extract_strided_slice %34 {offsets = [0, 56], sizes = [16, 8], strides = [1, 1]} : vector<16x96xf32> to vector<16x8xf32>
    %95 = vector.shape_cast %94 : vector<16x8xf32> to vector<2x8x8xf32>
    %96 = vector.extract_strided_slice %34 {offsets = [0, 88], sizes = [16, 8], strides = [1, 1]} : vector<16x96xf32> to vector<16x8xf32>
    %97 = vector.shape_cast %96 : vector<16x8xf32> to vector<2x8x8xf32>
    "tpu.trace_start"() <{level = 10 : i32, message = "bqd,bkd->bqk"}> : () -> ()
    %cst_31 = arith.constant dense<0.000000e+00> : vector<2x8x8xf32>
    %98 = tpu.matmul %93, %95, %cst_31 {dimension_numbers = #tpu.dot_dimension_numbers<[2], [2], [1], [1], [0, 0, 0, 1, 1, 1], [0], [0]>} : vector<2x8x8xf32>, vector<2x8x8xf32>, vector<2x8x8xf32> -> vector<2x8x8xf32>
    "tpu.trace_stop"() : () -> ()
    %cst_32 = arith.constant dense<0xFF800000> : vector<2x8xf32>
    %99 = vector.multi_reduction <maximumf>, %98, %cst_32 [2] : vector<2x8x8xf32> to vector<2x8xf32>
    %100 = vector.shape_cast %99 : vector<2x8xf32> to vector<2x8x1xf32>
    %101 = vector.broadcast %100 : vector<2x8x1xf32> to vector<2x8x8xf32>
    %102 = arith.subf %98, %101 : vector<2x8x8xf32>
    %103 = math.exp %102 : vector<2x8x8xf32>
    %cst_33 = arith.constant dense<0.000000e+00> : vector<2x8xf32>
    %104 = vector.multi_reduction <add>, %103, %cst_33 [2] : vector<2x8x8xf32> to vector<2x8xf32>
    %105 = vector.shape_cast %104 : vector<2x8xf32> to vector<2x8x1xf32>
    %106 = tpu.reciprocal %105 {approx = true} : vector<2x8x1xf32> -> vector<2x8x1xf32>
    %107 = vector.broadcast %106 : vector<2x8x1xf32> to vector<2x8x8xf32>
    %108 = arith.mulf %103, %107 : vector<2x8x8xf32>
    "tpu.trace_start"() <{level = 10 : i32, message = "bqk,bkd->bqd"}> : () -> ()
    %cst_34 = arith.constant dense<0.000000e+00> : vector<2x8x8xf32>
    %109 = tpu.matmul %108, %97, %cst_34 {dimension_numbers = #tpu.dot_dimension_numbers<[2], [1], [1], [2], [0, 0, 0, 1, 1, 2], [0], [0]>} : vector<2x8x8xf32>, vector<2x8x8xf32>, vector<2x8x8xf32> -> vector<2x8x8xf32>
    "tpu.trace_stop"() : () -> ()
    %110 = vector.shape_cast %109 : vector<2x8x8xf32> to vector<16x8xf32>
    %111 = tpu.concatenate %53, %72, %91, %110 in 1 : vector<16x8xf32>, vector<16x8xf32>, vector<16x8xf32>, vector<16x8xf32> -> vector<16x32xf32>
    %c0_35 = arith.constant 0 : index
    %c0_36 = arith.constant 0 : index
    %c0_37 = arith.constant 0 : index
    %112 = vector.load %arg6[%c0_35, %c0_36, %c0_37] : memref<2x32x32xf32, #tpu.memory_space<vmem>>, vector<1x32x32xf32>
    %113 = vector.shape_cast %112 : vector<1x32x32xf32> to vector<32x32xf32>
    %cst_38 = arith.constant dense<0.000000e+00> : vector<16x32xf32>
    %114 = tpu.matmul %111, %113, %cst_38 {dimension_numbers = #tpu.dot_dimension_numbers<[1], [0], [0], [1], [0, 0, 1, 1], [], []>} : vector<16x32xf32>, vector<32x32xf32>, vector<16x32xf32> -> vector<16x32xf32>
    %115 = arith.addf %114, %29 : vector<16x32xf32>
    %116 = vector.extract_strided_slice %31 {offsets = [0, 0], sizes = [1, 32], strides = [1, 1]} : vector<5x32xf32> to vector<1x32xf32>
    %117 = vector.extract_strided_slice %31 {offsets = [1, 0], sizes = [1, 32], strides = [1, 1]} : vector<5x32xf32> to vector<1x32xf32>
    %cst_39 = arith.constant dense<0.000000e+00> : vector<16xf32>
    %118 = vector.multi_reduction <add>, %115, %cst_39 [1] : vector<16x32xf32> to vector<16xf32>
    %119 = vector.shape_cast %118 : vector<16xf32> to vector<16x1xf32>
    %cst_40 = arith.constant 3.200000e+01 : f32
    %120 = vector.broadcast %cst_40 : f32 to vector<16x1xf32>
    %121 = arith.divf %119, %120 : vector<16x1xf32>
    %122 = vector.broadcast %121 : vector<16x1xf32> to vector<16x32xf32>
    %123 = arith.subf %115, %122 : vector<16x32xf32>
    %124 = arith.mulf %123, %123 : vector<16x32xf32>
    %cst_41 = arith.constant dense<0.000000e+00> : vector<16xf32>
    %125 = vector.multi_reduction <add>, %124, %cst_41 [1] : vector<16x32xf32> to vector<16xf32>
    %126 = vector.shape_cast %125 : vector<16xf32> to vector<16x1xf32>
    %cst_42 = arith.constant 3.200000e+01 : f32
    %127 = vector.broadcast %cst_42 : f32 to vector<16x1xf32>
    %128 = arith.divf %126, %127 : vector<16x1xf32>
    %129 = vector.broadcast %121 : vector<16x1xf32> to vector<16x32xf32>
    %130 = arith.subf %115, %129 : vector<16x32xf32>
    %cst_43 = arith.constant 9.99999997E-7 : f32
    %131 = vector.broadcast %cst_43 : f32 to vector<16x1xf32>
    %132 = arith.addf %128, %131 : vector<16x1xf32>
    %133 = math.rsqrt %132 : vector<16x1xf32>
    %134 = vector.broadcast %133 : vector<16x1xf32> to vector<16x32xf32>
    %135 = arith.mulf %130, %134 : vector<16x32xf32>
    %136 = vector.broadcast %116 : vector<1x32xf32> to vector<16x32xf32>
    %137 = arith.mulf %135, %136 : vector<16x32xf32>
    %138 = vector.broadcast %117 : vector<1x32xf32> to vector<16x32xf32>
    %139 = arith.addf %137, %138 : vector<16x32xf32>
    %c0_44 = arith.constant 0 : index
    %c0_45 = arith.constant 0 : index
    %c0_46 = arith.constant 0 : index
    %140 = vector.load %arg7[%c0_44, %c0_45, %c0_46] : memref<2x32x128xf32, #tpu.memory_space<vmem>>, vector<1x32x128xf32>
    %141 = vector.shape_cast %140 : vector<1x32x128xf32> to vector<32x128xf32>
    %cst_47 = arith.constant dense<0.000000e+00> : vector<16x128xf32>
    %142 = tpu.matmul %139, %141, %cst_47 {dimension_numbers = #tpu.dot_dimension_numbers<[1], [0], [0], [1], [0, 0, 1, 1], [], []>} : vector<16x32xf32>, vector<32x128xf32>, vector<16x128xf32> -> vector<16x128xf32>
    %c0_48 = arith.constant 0 : index
    %c0_49 = arith.constant 0 : index
    %c0_50 = arith.constant 0 : index
    %143 = vector.load %arg8[%c0_48, %c0_49, %c0_50] : memref<2x1x128xf32, #tpu.memory_space<vmem>>, vector<1x1x128xf32>
    %144 = vector.shape_cast %143 : vector<1x1x128xf32> to vector<1x128xf32>
    %145 = vector.broadcast %144 : vector<1x128xf32> to vector<16x128xf32>
    %146 = arith.addf %142, %145 : vector<16x128xf32>
    %cst_51 = arith.constant 0.000000e+00 : f32
    %147 = vector.broadcast %cst_51 : f32 to vector<16x128xf32>
    %148 = arith.maximumf %146, %147 : vector<16x128xf32>
    %c0_52 = arith.constant 0 : index
    %c0_53 = arith.constant 0 : index
    %c0_54 = arith.constant 0 : index
    %149 = vector.load %arg9[%c0_52, %c0_53, %c0_54] : memref<2x128x32xf32, #tpu.memory_space<vmem>>, vector<1x128x32xf32>
    %150 = vector.shape_cast %149 : vector<1x128x32xf32> to vector<128x32xf32>
    %cst_55 = arith.constant dense<0.000000e+00> : vector<16x32xf32>
    %151 = tpu.matmul %148, %150, %cst_55 {dimension_numbers = #tpu.dot_dimension_numbers<[1], [0], [0], [1], [0, 0, 1, 1], [], []>} : vector<16x128xf32>, vector<128x32xf32>, vector<16x32xf32> -> vector<16x32xf32>
    %152 = vector.extract_strided_slice %31 {offsets = [2, 0], sizes = [1, 32], strides = [1, 1]} : vector<5x32xf32> to vector<1x32xf32>
    %153 = vector.broadcast %152 : vector<1x32xf32> to vector<16x32xf32>
    %154 = arith.addf %151, %153 : vector<16x32xf32>
    %155 = arith.addf %154, %139 : vector<16x32xf32>
    %156 = vector.extract_strided_slice %31 {offsets = [3, 0], sizes = [1, 32], strides = [1, 1]} : vector<5x32xf32> to vector<1x32xf32>
    %157 = vector.extract_strided_slice %31 {offsets = [4, 0], sizes = [1, 32], strides = [1, 1]} : vector<5x32xf32> to vector<1x32xf32>
    %cst_56 = arith.constant dense<0.000000e+00> : vector<16xf32>
    %158 = vector.multi_reduction <add>, %155, %cst_56 [1] : vector<16x32xf32> to vector<16xf32>
    %159 = vector.shape_cast %158 : vector<16xf32> to vector<16x1xf32>
    %cst_57 = arith.constant 3.200000e+01 : f32
    %160 = vector.broadcast %cst_57 : f32 to vector<16x1xf32>
    %161 = arith.divf %159, %160 : vector<16x1xf32>
    %162 = vector.broadcast %161 : vector<16x1xf32> to vector<16x32xf32>
    %163 = arith.subf %155, %162 : vector<16x32xf32>
    %164 = arith.mulf %163, %163 : vector<16x32xf32>
    %cst_58 = arith.constant dense<0.000000e+00> : vector<16xf32>
    %165 = vector.multi_reduction <add>, %164, %cst_58 [1] : vector<16x32xf32> to vector<16xf32>
    %166 = vector.shape_cast %165 : vector<16xf32> to vector<16x1xf32>
    %cst_59 = arith.constant 3.200000e+01 : f32
    %167 = vector.broadcast %cst_59 : f32 to vector<16x1xf32>
    %168 = arith.divf %166, %167 : vector<16x1xf32>
    %169 = vector.broadcast %161 : vector<16x1xf32> to vector<16x32xf32>
    %170 = arith.subf %155, %169 : vector<16x32xf32>
    %cst_60 = arith.constant 9.99999997E-7 : f32
    %171 = vector.broadcast %cst_60 : f32 to vector<16x1xf32>
    %172 = arith.addf %168, %171 : vector<16x1xf32>
    %173 = math.rsqrt %172 : vector<16x1xf32>
    %174 = vector.broadcast %173 : vector<16x1xf32> to vector<16x32xf32>
    %175 = arith.mulf %170, %174 : vector<16x32xf32>
    %176 = vector.broadcast %156 : vector<1x32xf32> to vector<16x32xf32>
    %177 = arith.mulf %175, %176 : vector<16x32xf32>
    %178 = vector.broadcast %157 : vector<1x32xf32> to vector<16x32xf32>
    %179 = arith.addf %177, %178 : vector<16x32xf32>
    %c1 = arith.constant 1 : index
    %c0_61 = arith.constant 0 : index
    %c0_62 = arith.constant 0 : index
    %180 = vector.load %arg10[%c1, %c0_61, %c0_62] : memref<2x5x32xf32, #tpu.memory_space<vmem>>, vector<1x5x32xf32>
    %181 = vector.shape_cast %180 : vector<1x5x32xf32> to vector<5x32xf32>
    %c1_63 = arith.constant 1 : index
    %c0_64 = arith.constant 0 : index
    %c0_65 = arith.constant 0 : index
    %182 = vector.load %arg5[%c1_63, %c0_64, %c0_65] : memref<2x32x96xf32, #tpu.memory_space<vmem>>, vector<1x32x96xf32>
    %183 = vector.shape_cast %182 : vector<1x32x96xf32> to vector<32x96xf32>
    %cst_66 = arith.constant dense<0.000000e+00> : vector<16x96xf32>
    %184 = tpu.matmul %179, %183, %cst_66 {dimension_numbers = #tpu.dot_dimension_numbers<[1], [0], [0], [1], [0, 0, 1, 1], [], []>} : vector<16x32xf32>, vector<32x96xf32>, vector<16x96xf32> -> vector<16x96xf32>
    %185 = vector.extract_strided_slice %184 {offsets = [0, 0], sizes = [16, 8], strides = [1, 1]} : vector<16x96xf32> to vector<16x8xf32>
    %186 = vector.shape_cast %185 : vector<16x8xf32> to vector<2x8x8xf32>
    %187 = vector.extract_strided_slice %184 {offsets = [0, 32], sizes = [16, 8], strides = [1, 1]} : vector<16x96xf32> to vector<16x8xf32>
    %188 = vector.shape_cast %187 : vector<16x8xf32> to vector<2x8x8xf32>
    %189 = vector.extract_strided_slice %184 {offsets = [0, 64], sizes = [16, 8], strides = [1, 1]} : vector<16x96xf32> to vector<16x8xf32>
    %190 = vector.shape_cast %189 : vector<16x8xf32> to vector<2x8x8xf32>
    "tpu.trace_start"() <{level = 10 : i32, message = "bqd,bkd->bqk"}> : () -> ()
    %cst_67 = arith.constant dense<0.000000e+00> : vector<2x8x8xf32>
    %191 = tpu.matmul %186, %188, %cst_67 {dimension_numbers = #tpu.dot_dimension_numbers<[2], [2], [1], [1], [0, 0, 0, 1, 1, 1], [0], [0]>} : vector<2x8x8xf32>, vector<2x8x8xf32>, vector<2x8x8xf32> -> vector<2x8x8xf32>
    "tpu.trace_stop"() : () -> ()
    %cst_68 = arith.constant dense<0xFF800000> : vector<2x8xf32>
    %192 = vector.multi_reduction <maximumf>, %191, %cst_68 [2] : vector<2x8x8xf32> to vector<2x8xf32>
    %193 = vector.shape_cast %192 : vector<2x8xf32> to vector<2x8x1xf32>
    %194 = vector.broadcast %193 : vector<2x8x1xf32> to vector<2x8x8xf32>
    %195 = arith.subf %191, %194 : vector<2x8x8xf32>
    %196 = math.exp %195 : vector<2x8x8xf32>
    %cst_69 = arith.constant dense<0.000000e+00> : vector<2x8xf32>
    %197 = vector.multi_reduction <add>, %196, %cst_69 [2] : vector<2x8x8xf32> to vector<2x8xf32>
    %198 = vector.shape_cast %197 : vector<2x8xf32> to vector<2x8x1xf32>
    %199 = tpu.reciprocal %198 : vector<2x8x1xf32> -> vector<2x8x1xf32>
    %200 = vector.broadcast %199 : vector<2x8x1xf32> to vector<2x8x8xf32>
    %201 = arith.mulf %196, %200 : vector<2x8x8xf32>
    %c0_70 = arith.constant 0 : index
    %c0_71 = arith.constant 0 : index
    %c0_72 = arith.constant 0 : index
    %c0_73 = arith.constant 0 : index
    %202 = vector.load %arg12[%c0_70, %c0_71, %c0_72, %c0_73] : memref<4x2x8x8xf32, #tpu.memory_space<vmem>>, vector<1x2x8x8xf32>
    %203 = vector.shape_cast %202 : vector<1x2x8x8xf32> to vector<2x8x8xf32>
    %204 = vector.shape_cast %201 : vector<2x8x8xf32> to vector<1x2x8x8xf32>
    tpu.vector_store %arg12[%c0_70, %c0_71, %c0_72, %c0_73], %204 {strides = array<i32>} : memref<4x2x8x8xf32, #tpu.memory_space<vmem>>, vector<1x2x8x8xf32>,
    "tpu.trace_start"() <{level = 10 : i32, message = "bqk,bkd->bqd"}> : () -> ()
    %cst_74 = arith.constant dense<0.000000e+00> : vector<2x8x8xf32>
    %205 = tpu.matmul %201, %190, %cst_74 {dimension_numbers = #tpu.dot_dimension_numbers<[2], [1], [1], [2], [0, 0, 0, 1, 1, 2], [0], [0]>} : vector<2x8x8xf32>, vector<2x8x8xf32>, vector<2x8x8xf32> -> vector<2x8x8xf32>
    "tpu.trace_stop"() : () -> ()
    %206 = vector.shape_cast %205 : vector<2x8x8xf32> to vector<16x8xf32>
    %207 = vector.extract_strided_slice %184 {offsets = [0, 8], sizes = [16, 8], strides = [1, 1]} : vector<16x96xf32> to vector<16x8xf32>
    %208 = vector.shape_cast %207 : vector<16x8xf32> to vector<2x8x8xf32>
    %209 = vector.extract_strided_slice %184 {offsets = [0, 40], sizes = [16, 8], strides = [1, 1]} : vector<16x96xf32> to vector<16x8xf32>
    %210 = vector.shape_cast %209 : vector<16x8xf32> to vector<2x8x8xf32>
    %211 = vector.extract_strided_slice %184 {offsets = [0, 72], sizes = [16, 8], strides = [1, 1]} : vector<16x96xf32> to vector<16x8xf32>
    %212 = vector.shape_cast %211 : vector<16x8xf32> to vector<2x8x8xf32>
    "tpu.trace_start"() <{level = 10 : i32, message = "bqd,bkd->bqk"}> : () -> ()
    %cst_75 = arith.constant dense<0.000000e+00> : vector<2x8x8xf32>
    %213 = tpu.matmul %208, %210, %cst_75 {dimension_numbers = #tpu.dot_dimension_numbers<[2], [2], [1], [1], [0, 0, 0, 1, 1, 1], [0], [0]>} : vector<2x8x8xf32>, vector<2x8x8xf32>, vector<2x8x8xf32> -> vector<2x8x8xf32>
    "tpu.trace_stop"() : () -> ()
    %cst_76 = arith.constant dense<0xFF800000> : vector<2x8xf32>
    %214 = vector.multi_reduction <maximumf>, %213, %cst_76 [2] : vector<2x8x8xf32> to vector<2x8xf32>
    %215 = vector.shape_cast %214 : vector<2x8xf32> to vector<2x8x1xf32>
    %216 = vector.broadcast %215 : vector<2x8x1xf32> to vector<2x8x8xf32>
    %217 = arith.subf %213, %216 : vector<2x8x8xf32>
    %218 = math.exp %217 : vector<2x8x8xf32>
    %cst_77 = arith.constant dense<0.000000e+00> : vector<2x8xf32>
    %219 = vector.multi_reduction <add>, %218, %cst_77 [2] : vector<2x8x8xf32> to vector<2x8xf32>
    %220 = vector.shape_cast %219 : vector<2x8xf32> to vector<2x8x1xf32>
    %221 = tpu.reciprocal %220 : vector<2x8x1xf32> -> vector<2x8x1xf32>
    %222 = vector.broadcast %221 : vector<2x8x1xf32> to vector<2x8x8xf32>
    %223 = arith.mulf %218, %222 : vector<2x8x8xf32>
    %c1_78 = arith.constant 1 : index
    %c0_79 = arith.constant 0 : index
    %c0_80 = arith.constant 0 : index
    %c0_81 = arith.constant 0 : index
    %224 = vector.load %arg12[%c1_78, %c0_79, %c0_80, %c0_81] : memref<4x2x8x8xf32, #tpu.memory_space<vmem>>, vector<1x2x8x8xf32>
    %225 = vector.shape_cast %224 : vector<1x2x8x8xf32> to vector<2x8x8xf32>
    %226 = vector.shape_cast %223 : vector<2x8x8xf32> to vector<1x2x8x8xf32>
    tpu.vector_store %arg12[%c1_78, %c0_79, %c0_80, %c0_81], %226 {strides = array<i32>} : memref<4x2x8x8xf32, #tpu.memory_space<vmem>>, vector<1x2x8x8xf32>,
    "tpu.trace_start"() <{level = 10 : i32, message = "bqk,bkd->bqd"}> : () -> ()
    %cst_82 = arith.constant dense<0.000000e+00> : vector<2x8x8xf32>
    %227 = tpu.matmul %223, %212, %cst_82 {dimension_numbers = #tpu.dot_dimension_numbers<[2], [1], [1], [2], [0, 0, 0, 1, 1, 2], [0], [0]>} : vector<2x8x8xf32>, vector<2x8x8xf32>, vector<2x8x8xf32> -> vector<2x8x8xf32>
    "tpu.trace_stop"() : () -> ()
    %228 = vector.shape_cast %227 : vector<2x8x8xf32> to vector<16x8xf32>
    %229 = vector.extract_strided_slice %184 {offsets = [0, 16], sizes = [16, 8], strides = [1, 1]} : vector<16x96xf32> to vector<16x8xf32>
    %230 = vector.shape_cast %229 : vector<16x8xf32> to vector<2x8x8xf32>
    %231 = vector.extract_strided_slice %184 {offsets = [0, 48], sizes = [16, 8], strides = [1, 1]} : vector<16x96xf32> to vector<16x8xf32>
    %232 = vector.shape_cast %231 : vector<16x8xf32> to vector<2x8x8xf32>
    %233 = vector.extract_strided_slice %184 {offsets = [0, 80], sizes = [16, 8], strides = [1, 1]} : vector<16x96xf32> to vector<16x8xf32>
    %234 = vector.shape_cast %233 : vector<16x8xf32> to vector<2x8x8xf32>
    "tpu.trace_start"() <{level = 10 : i32, message = "bqd,bkd->bqk"}> : () -> ()
    %cst_83 = arith.constant dense<0.000000e+00> : vector<2x8x8xf32>
    %235 = tpu.matmul %230, %232, %cst_83 {dimension_numbers = #tpu.dot_dimension_numbers<[2], [2], [1], [1], [0, 0, 0, 1, 1, 1], [0], [0]>} : vector<2x8x8xf32>, vector<2x8x8xf32>, vector<2x8x8xf32> -> vector<2x8x8xf32>
    "tpu.trace_stop"() : () -> ()
    %cst_84 = arith.constant dense<0xFF800000> : vector<2x8xf32>
    %236 = vector.multi_reduction <maximumf>, %235, %cst_84 [2] : vector<2x8x8xf32> to vector<2x8xf32>
    %237 = vector.shape_cast %236 : vector<2x8xf32> to vector<2x8x1xf32>
    %238 = vector.broadcast %237 : vector<2x8x1xf32> to vector<2x8x8xf32>
    %239 = arith.subf %235, %238 : vector<2x8x8xf32>
    %240 = math.exp %239 : vector<2x8x8xf32>
    %cst_85 = arith.constant dense<0.000000e+00> : vector<2x8xf32>
    %241 = vector.multi_reduction <add>, %240, %cst_85 [2] : vector<2x8x8xf32> to vector<2x8xf32>
    %242 = vector.shape_cast %241 : vector<2x8xf32> to vector<2x8x1xf32>
    %243 = tpu.reciprocal %242 : vector<2x8x1xf32> -> vector<2x8x1xf32>
    %244 = vector.broadcast %243 : vector<2x8x1xf32> to vector<2x8x8xf32>
    %245 = arith.mulf %240, %244 : vector<2x8x8xf32>
    %c2 = arith.constant 2 : index
    %c0_86 = arith.constant 0 : index
    %c0_87 = arith.constant 0 : index
    %c0_88 = arith.constant 0 : index
    %246 = vector.load %arg12[%c2, %c0_86, %c0_87, %c0_88] : memref<4x2x8x8xf32, #tpu.memory_space<vmem>>, vector<1x2x8x8xf32>
    %247 = vector.shape_cast %246 : vector<1x2x8x8xf32> to vector<2x8x8xf32>
    %248 = vector.shape_cast %245 : vector<2x8x8xf32> to vector<1x2x8x8xf32>
    tpu.vector_store %arg12[%c2, %c0_86, %c0_87, %c0_88], %248 {strides = array<i32>} : memref<4x2x8x8xf32, #tpu.memory_space<vmem>>, vector<1x2x8x8xf32>,
    "tpu.trace_start"() <{level = 10 : i32, message = "bqk,bkd->bqd"}> : () -> ()
    %cst_89 = arith.constant dense<0.000000e+00> : vector<2x8x8xf32>
    %249 = tpu.matmul %245, %234, %cst_89 {dimension_numbers = #tpu.dot_dimension_numbers<[2], [1], [1], [2], [0, 0, 0, 1, 1, 2], [0], [0]>} : vector<2x8x8xf32>, vector<2x8x8xf32>, vector<2x8x8xf32> -> vector<2x8x8xf32>
    "tpu.trace_stop"() : () -> ()
    %250 = vector.shape_cast %249 : vector<2x8x8xf32> to vector<16x8xf32>
    %251 = vector.extract_strided_slice %184 {offsets = [0, 24], sizes = [16, 8], strides = [1, 1]} : vector<16x96xf32> to vector<16x8xf32>
    %252 = vector.shape_cast %251 : vector<16x8xf32> to vector<2x8x8xf32>
    %253 = vector.extract_strided_slice %184 {offsets = [0, 56], sizes = [16, 8], strides = [1, 1]} : vector<16x96xf32> to vector<16x8xf32>
    %254 = vector.shape_cast %253 : vector<16x8xf32> to vector<2x8x8xf32>
    %255 = vector.extract_strided_slice %184 {offsets = [0, 88], sizes = [16, 8], strides = [1, 1]} : vector<16x96xf32> to vector<16x8xf32>
    %256 = vector.shape_cast %255 : vector<16x8xf32> to vector<2x8x8xf32>
    "tpu.trace_start"() <{level = 10 : i32, message = "bqd,bkd->bqk"}> : () -> ()
    %cst_90 = arith.constant dense<0.000000e+00> : vector<2x8x8xf32>
    %257 = tpu.matmul %252, %254, %cst_90 {dimension_numbers = #tpu.dot_dimension_numbers<[2], [2], [1], [1], [0, 0, 0, 1, 1, 1], [0], [0]>} : vector<2x8x8xf32>, vector<2x8x8xf32>, vector<2x8x8xf32> -> vector<2x8x8xf32>
    "tpu.trace_stop"() : () -> ()
    %cst_91 = arith.constant dense<0xFF800000> : vector<2x8xf32>
    %258 = vector.multi_reduction <maximumf>, %257, %cst_91 [2] : vector<2x8x8xf32> to vector<2x8xf32>
    %259 = vector.shape_cast %258 : vector<2x8xf32> to vector<2x8x1xf32>
    %260 = vector.broadcast %259 : vector<2x8x1xf32> to vector<2x8x8xf32>
    %261 = arith.subf %257, %260 : vector<2x8x8xf32>
    %262 = math.exp %261 : vector<2x8x8xf32>
    %cst_92 = arith.constant dense<0.000000e+00> : vector<2x8xf32>
    %263 = vector.multi_reduction <add>, %262, %cst_92 [2] : vector<2x8x8xf32> to vector<2x8xf32>
    %264 = vector.shape_cast %263 : vector<2x8xf32> to vector<2x8x1xf32>
    %265 = tpu.reciprocal %264 : vector<2x8x1xf32> -> vector<2x8x1xf32>
    %266 = vector.broadcast %265 : vector<2x8x1xf32> to vector<2x8x8xf32>
    %267 = arith.mulf %262, %266 : vector<2x8x8xf32>
    %c3 = arith.constant 3 : index
    %c0_93 = arith.constant 0 : index
    %c0_94 = arith.constant 0 : index
    %c0_95 = arith.constant 0 : index
    %268 = vector.load %arg12[%c3, %c0_93, %c0_94, %c0_95] : memref<4x2x8x8xf32, #tpu.memory_space<vmem>>, vector<1x2x8x8xf32>
    %269 = vector.shape_cast %268 : vector<1x2x8x8xf32> to vector<2x8x8xf32>
    %270 = vector.shape_cast %267 : vector<2x8x8xf32> to vector<1x2x8x8xf32>
    tpu.vector_store %arg12[%c3, %c0_93, %c0_94, %c0_95], %270 {strides = array<i32>} : memref<4x2x8x8xf32, #tpu.memory_space<vmem>>, vector<1x2x8x8xf32>,
    "tpu.trace_start"() <{level = 10 : i32, message = "bqk,bkd->bqd"}> : () -> ()
    %cst_96 = arith.constant dense<0.000000e+00> : vector<2x8x8xf32>
    %271 = tpu.matmul %267, %256, %cst_96 {dimension_numbers = #tpu.dot_dimension_numbers<[2], [1], [1], [2], [0, 0, 0, 1, 1, 2], [0], [0]>} : vector<2x8x8xf32>, vector<2x8x8xf32>, vector<2x8x8xf32> -> vector<2x8x8xf32>
    "tpu.trace_stop"() : () -> ()
    %272 = vector.shape_cast %271 : vector<2x8x8xf32> to vector<16x8xf32>
    %273 = tpu.concatenate %206, %228, %250, %272 in 1 : vector<16x8xf32>, vector<16x8xf32>, vector<16x8xf32>, vector<16x8xf32> -> vector<16x32xf32>
    %c1_97 = arith.constant 1 : index
    %c0_98 = arith.constant 0 : index
    %c0_99 = arith.constant 0 : index
    %274 = vector.load %arg6[%c1_97, %c0_98, %c0_99] : memref<2x32x32xf32, #tpu.memory_space<vmem>>, vector<1x32x32xf32>
    %275 = vector.shape_cast %274 : vector<1x32x32xf32> to vector<32x32xf32>
    %cst_100 = arith.constant dense<0.000000e+00> : vector<16x32xf32>
    %276 = tpu.matmul %273, %275, %cst_100 {dimension_numbers = #tpu.dot_dimension_numbers<[1], [0], [0], [1], [0, 0, 1, 1], [], []>} : vector<16x32xf32>, vector<32x32xf32>, vector<16x32xf32> -> vector<16x32xf32>
    %277 = arith.addf %276, %179 : vector<16x32xf32>
    %278 = vector.extract_strided_slice %181 {offsets = [0, 0], sizes = [1, 32], strides = [1, 1]} : vector<5x32xf32> to vector<1x32xf32>
    %279 = vector.extract_strided_slice %181 {offsets = [1, 0], sizes = [1, 32], strides = [1, 1]} : vector<5x32xf32> to vector<1x32xf32>
    %cst_101 = arith.constant dense<0.000000e+00> : vector<16xf32>
    %280 = vector.multi_reduction <add>, %277, %cst_101 [1] : vector<16x32xf32> to vector<16xf32>
    %281 = vector.shape_cast %280 : vector<16xf32> to vector<16x1xf32>
    %cst_102 = arith.constant 3.200000e+01 : f32
    %282 = vector.broadcast %cst_102 : f32 to vector<16x1xf32>
    %283 = arith.divf %281, %282 : vector<16x1xf32>
    %284 = vector.broadcast %283 : vector<16x1xf32> to vector<16x32xf32>
    %285 = arith.subf %277, %284 : vector<16x32xf32>
    %286 = arith.mulf %285, %285 : vector<16x32xf32>
    %cst_103 = arith.constant dense<0.000000e+00> : vector<16xf32>
    %287 = vector.multi_reduction <add>, %286, %cst_103 [1] : vector<16x32xf32> to vector<16xf32>
    %288 = vector.shape_cast %287 : vector<16xf32> to vector<16x1xf32>
    %cst_104 = arith.constant 3.200000e+01 : f32
    %289 = vector.broadcast %cst_104 : f32 to vector<16x1xf32>
    %290 = arith.divf %288, %289 : vector<16x1xf32>
    %291 = vector.broadcast %283 : vector<16x1xf32> to vector<16x32xf32>
    %292 = arith.subf %277, %291 : vector<16x32xf32>
    %cst_105 = arith.constant 9.99999997E-7 : f32
    %293 = vector.broadcast %cst_105 : f32 to vector<16x1xf32>
    %294 = arith.addf %290, %293 : vector<16x1xf32>
    %295 = math.rsqrt %294 : vector<16x1xf32>
    %296 = vector.broadcast %295 : vector<16x1xf32> to vector<16x32xf32>
    %297 = arith.mulf %292, %296 : vector<16x32xf32>
    %298 = vector.broadcast %278 : vector<1x32xf32> to vector<16x32xf32>
    %299 = arith.mulf %297, %298 : vector<16x32xf32>
    %300 = vector.broadcast %279 : vector<1x32xf32> to vector<16x32xf32>
    %301 = arith.addf %299, %300 : vector<16x32xf32>
    %c1_106 = arith.constant 1 : index
    %c0_107 = arith.constant 0 : index
    %c0_108 = arith.constant 0 : index
    %302 = vector.load %arg7[%c1_106, %c0_107, %c0_108] : memref<2x32x128xf32, #tpu.memory_space<vmem>>, vector<1x32x128xf32>
    %303 = vector.shape_cast %302 : vector<1x32x128xf32> to vector<32x128xf32>
    %cst_109 = arith.constant dense<0.000000e+00> : vector<16x128xf32>
    %304 = tpu.matmul %301, %303, %cst_109 {dimension_numbers = #tpu.dot_dimension_numbers<[1], [0], [0], [1], [0, 0, 1, 1], [], []>} : vector<16x32xf32>, vector<32x128xf32>, vector<16x128xf32> -> vector<16x128xf32>
    %c1_110 = arith.constant 1 : index
    %c0_111 = arith.constant 0 : index
    %c0_112 = arith.constant 0 : index
    %305 = vector.load %arg8[%c1_110, %c0_111, %c0_112] : memref<2x1x128xf32, #tpu.memory_space<vmem>>, vector<1x1x128xf32>
    %306 = vector.shape_cast %305 : vector<1x1x128xf32> to vector<1x128xf32>
    %307 = vector.broadcast %306 : vector<1x128xf32> to vector<16x128xf32>
    %308 = arith.addf %304, %307 : vector<16x128xf32>
    %cst_113 = arith.constant 0.000000e+00 : f32
    %309 = vector.broadcast %cst_113 : f32 to vector<16x128xf32>
    %310 = arith.maximumf %308, %309 : vector<16x128xf32>
    %c1_114 = arith.constant 1 : index
    %c0_115 = arith.constant 0 : index
    %c0_116 = arith.constant 0 : index
    %311 = vector.load %arg9[%c1_114, %c0_115, %c0_116] : memref<2x128x32xf32, #tpu.memory_space<vmem>>, vector<1x128x32xf32>
    %312 = vector.shape_cast %311 : vector<1x128x32xf32> to vector<128x32xf32>
    %cst_117 = arith.constant dense<0.000000e+00> : vector<16x32xf32>
    %313 = tpu.matmul %310, %312, %cst_117 {dimension_numbers = #tpu.dot_dimension_numbers<[1], [0], [0], [1], [0, 0, 1, 1], [], []>} : vector<16x128xf32>, vector<128x32xf32>, vector<16x32xf32> -> vector<16x32xf32>
    %314 = vector.extract_strided_slice %181 {offsets = [2, 0], sizes = [1, 32], strides = [1, 1]} : vector<5x32xf32> to vector<1x32xf32>
    %315 = vector.broadcast %314 : vector<1x32xf32> to vector<16x32xf32>
    %316 = arith.addf %313, %315 : vector<16x32xf32>
    %317 = arith.addf %316, %301 : vector<16x32xf32>
    %318 = vector.extract_strided_slice %181 {offsets = [3, 0], sizes = [1, 32], strides = [1, 1]} : vector<5x32xf32> to vector<1x32xf32>
    %319 = vector.extract_strided_slice %181 {offsets = [4, 0], sizes = [1, 32], strides = [1, 1]} : vector<5x32xf32> to vector<1x32xf32>
    %cst_118 = arith.constant dense<0.000000e+00> : vector<16xf32>
    %320 = vector.multi_reduction <add>, %317, %cst_118 [1] : vector<16x32xf32> to vector<16xf32>
    %321 = vector.shape_cast %320 : vector<16xf32> to vector<16x1xf32>
    %cst_119 = arith.constant 3.200000e+01 : f32
    %322 = vector.broadcast %cst_119 : f32 to vector<16x1xf32>
    %323 = arith.divf %321, %322 : vector<16x1xf32>
    %324 = vector.broadcast %323 : vector<16x1xf32> to vector<16x32xf32>
    %325 = arith.subf %317, %324 : vector<16x32xf32>
    %326 = arith.mulf %325, %325 : vector<16x32xf32>
    %cst_120 = arith.constant dense<0.000000e+00> : vector<16xf32>
    %327 = vector.multi_reduction <add>, %326, %cst_120 [1] : vector<16x32xf32> to vector<16xf32>
    %328 = vector.shape_cast %327 : vector<16xf32> to vector<16x1xf32>
    %cst_121 = arith.constant 3.200000e+01 : f32
    %329 = vector.broadcast %cst_121 : f32 to vector<16x1xf32>
    %330 = arith.divf %328, %329 : vector<16x1xf32>
    %331 = vector.broadcast %323 : vector<16x1xf32> to vector<16x32xf32>
    %332 = arith.subf %317, %331 : vector<16x32xf32>
    %cst_122 = arith.constant 9.99999997E-7 : f32
    %333 = vector.broadcast %cst_122 : f32 to vector<16x1xf32>
    %334 = arith.addf %330, %333 : vector<16x1xf32>
    %335 = math.rsqrt %334 : vector<16x1xf32>
    %336 = vector.broadcast %335 : vector<16x1xf32> to vector<16x32xf32>
    %337 = arith.mulf %332, %336 : vector<16x32xf32>
    %338 = vector.broadcast %318 : vector<1x32xf32> to vector<16x32xf32>
    %339 = arith.mulf %337, %338 : vector<16x32xf32>
    %340 = vector.broadcast %319 : vector<1x32xf32> to vector<16x32xf32>
    %341 = arith.addf %339, %340 : vector<16x32xf32>
    %c0_123 = arith.constant 0 : index
    %c0_124 = arith.constant 0 : index
    %342 = vector.load %arg11[%c0_123, %c0_124] : memref<16x32xf32, #tpu.memory_space<vmem>>, vector<16x32xf32>
    tpu.vector_store %arg11[%c0_123, %c0_124], %341 {strides = array<i32>} : memref<16x32xf32, #tpu.memory_space<vmem>>, vector<16x32xf32>,
    return
  }
  func.func @transform_0(%arg0: i32) -> (i32, i32) {
    %c0_i32 = arith.constant 0 : i32
    %c0_i32_0 = arith.constant 0 : i32
    %c0_i32_1 = arith.constant 0 : i32
    return %c0_i32, %c0_i32_0 : i32, i32
  }
  func.func @transform_1(%arg0: i32) -> (i32, i32) {
    %c0_i32 = arith.constant 0 : i32
    %c0_i32_0 = arith.constant 0 : i32
    %c0_i32_1 = arith.constant 0 : i32
    return %c0_i32, %c0_i32_0 : i32, i32
  }
  func.func @transform_2(%arg0: i32) -> (i32, i32) {
    %c0_i32 = arith.constant 0 : i32
    %c0_i32_0 = arith.constant 0 : i32
    %c0_i32_1 = arith.constant 0 : i32
    return %c0_i32, %c0_i32_0 : i32, i32
  }
  func.func @transform_3(%arg0: i32) -> (i32, i32) {
    %c0_i32 = arith.constant 0 : i32
    %c0_i32_0 = arith.constant 0 : i32
    %c0_i32_1 = arith.constant 0 : i32
    return %c0_i32, %c0_i32_0 : i32, i32
  }
  func.func @transform_4(%arg0: i32) -> (i32, i32, i32) {
    %c0_i32 = arith.constant 0 : i32
    %c0_i32_0 = arith.constant 0 : i32
    %c0_i32_1 = arith.constant 0 : i32
    %c0_i32_2 = arith.constant 0 : i32
    return %c0_i32, %c0_i32_0, %c0_i32_1 : i32, i32, i32
  }
  func.func @transform_5(%arg0: i32) -> (i32, i32, i32) {
    %c0_i32 = arith.constant 0 : i32
    %c0_i32_0 = arith.constant 0 : i32
    %c0_i32_1 = arith.constant 0 : i32
    %c0_i32_2 = arith.constant 0 : i32
    return %c0_i32, %c0_i32_0, %c0_i32_1 : i32, i32, i32
  }
  func.func @transform_6(%arg0: i32) -> (i32, i32, i32) {
    %c0_i32 = arith.constant 0 : i32
    %c0_i32_0 = arith.constant 0 : i32
    %c0_i32_1 = arith.constant 0 : i32
    %c0_i32_2 = arith.constant 0 : i32
    return %c0_i32, %c0_i32_0, %c0_i32_1 : i32, i32, i32
  }
  func.func @transform_7(%arg0: i32) -> (i32, i32, i32) {
    %c0_i32 = arith.constant 0 : i32
    %c0_i32_0 = arith.constant 0 : i32
    %c0_i32_1 = arith.constant 0 : i32
    %c0_i32_2 = arith.constant 0 : i32
    return %c0_i32, %c0_i32_0, %c0_i32_1 : i32, i32, i32
  }
  func.func @transform_8(%arg0: i32) -> (i32, i32, i32) {
    %c0_i32 = arith.constant 0 : i32
    %c0_i32_0 = arith.constant 0 : i32
    %c0_i32_1 = arith.constant 0 : i32
    %c0_i32_2 = arith.constant 0 : i32
    return %c0_i32, %c0_i32_0, %c0_i32_1 : i32, i32, i32
  }
  func.func @transform_9(%arg0: i32) -> (i32, i32, i32) {
    %c0_i32 = arith.constant 0 : i32
    %c0_i32_0 = arith.constant 0 : i32
    %c0_i32_1 = arith.constant 0 : i32
    %c0_i32_2 = arith.constant 0 : i32
    return %c0_i32, %c0_i32_0, %c0_i32_1 : i32, i32, i32
  }
  func.func @transform_10(%arg0: i32) -> (i32, i32) {
    %c0_i32 = arith.constant 0 : i32
    %c0_i32_0 = arith.constant 0 : i32
    %c0_i32_1 = arith.constant 0 : i32
    return %c0_i32, %c0_i32_0 : i32, i32
  }
  func.func @transform_11(%arg0: i32) -> (i32, i32, i32, i32) {
    %c0_i32 = arith.constant 0 : i32
    %c0_i32_0 = arith.constant 0 : i32
    %c0_i32_1 = arith.constant 0 : i32
    %c0_i32_2 = arith.constant 0 : i32
    %c0_i32_3 = arith.constant 0 : i32
    return %c0_i32, %c0_i32_0, %c0_i32_1, %c0_i32_2 : i32, i32, i32, i32
  }
}

</mosaic_0001>

<llo_original>
// kernel: tpu_custom_call.1
$region0: #{tpu_custom_call.1}
  #allocation0 [shape = 'u32[]', space=smem, size = 0x4, offset = 0x4, fixed_abs, tag = 'smem constant byte address 0x4 - core index']
  #allocation1 [shape = 'u32[144,128]{1,0:T(1,128)}', space=vmem, size = 0x12000, scoped, tag = 'internal scratch']
  %s0 = inlined_call_operand.vmem [shape: f32[16,16], index: 0, kind: input, shape index: {}]
  %s1 = inlined_call_operand.vmem [shape: f32[16,32], index: 1, kind: input, shape index: {}]
  %s2 = inlined_call_operand.vmem [shape: f32[16,32], index: 2, kind: input, shape index: {}]
  %s3 = inlined_call_operand.vmem [shape: f32[2,32], index: 3, kind: input, shape index: {}]
  %s4 = inlined_call_operand.vmem [shape: f32[2,32,96], index: 4, kind: input, shape index: {}]
  %s5 = inlined_call_operand.vmem [shape: f32[2,32,32], index: 5, kind: input, shape index: {}]
  %s6 = inlined_call_operand.vmem [shape: f32[2,32,128], index: 6, kind: input, shape index: {}]
  %s7 = inlined_call_operand.vmem [shape: f32[2,1,128], index: 7, kind: input, shape index: {}]
  %s8 = inlined_call_operand.vmem [shape: f32[2,128,32], index: 8, kind: input, shape index: {}]
  %s9 = inlined_call_operand.vmem [shape: f32[2,5,32], index: 9, kind: input, shape index: {}]
  %s10 = inlined_call_operand.hbm [shape: f32[16,32], index: 10, kind: output, shape index: {0}]
  %s11 = inlined_call_operand.hbm [shape: f32[4,2,8,8], index: 11, kind: output, shape index: {1}]
  %12 = xla_tuple %s10, %s11
  %s13 = sld [smem:[#allocation0]]
  $region58: #{tpu_custom_call.1} parent=0
    _
  %s15 = ssub.s32 1, %s13
  %s16 = scalar_select 0, %s15, %s13
  $region1: #{tpu_custom_call.1} parent=0
    #allocation2 [shape = 'u8[8192]{0}', space=vmem, size = 0x2000, scoped, tag = 'output window, operand 0, single buffered']
    #allocation3 [shape = 's32[1]{0}', space=sflag, size = 0x4, scoped, tag = 'scoped memory for tpu_custom_call.1']
    #allocation4 [shape = 'u8[32768]{0}', space=vmem, size = 0x8000, scoped, tag = 'output window, operand 1, single buffered']
    #allocation5 [shape = 's32[1]{0}', space=sflag, size = 0x4, scoped, tag = 'scoped memory for tpu_custom_call.1']
    %17 = vsyncpa [#allocation3], 0
    %18 = vsyncpa [#allocation5], 0
    // Predicated region
    $region2: #{tpu_custom_call.1} parent=1 // pred_check
      _
    $region3: #{tpu_custom_call.1} parent=1 // pred_check_branch
      %20 = sbr.rel (0) target = $region5
    $region4: #{tpu_custom_call.1} parent=1 // pred_region
      _
    $region5: #{tpu_custom_call.1} parent=1 // pred_fallthru
      _
    // Predicated region
    $region6: #{tpu_custom_call.1} parent=1 // pred_check
      _
    $region7: #{tpu_custom_call.1} parent=1 // pred_check_branch
      %22 = sbr.rel (0) target = $region9
    $region8: #{tpu_custom_call.1} parent=1 // pred_region
      _
    $region9: #{tpu_custom_call.1} parent=1 // pred_fallthru
      _
    // Predicated region
    $region10: #{tpu_custom_call.1} parent=1 // pred_check
      _
    $region11: #{tpu_custom_call.1} parent=1 // pred_check_branch
      %24 = sbr.rel (0) target = $region13
    $region12: #{tpu_custom_call.1} parent=1 // pred_region
      _
    $region13: #{tpu_custom_call.1} parent=1 // pred_fallthru
      _
    // Predicated region
    $region14: #{tpu_custom_call.1} parent=1 // pred_check
      _
    $region15: #{tpu_custom_call.1} parent=1 // pred_check_branch
      %26 = sbr.rel (0) target = $region17
    $region16: #{tpu_custom_call.1} parent=1 // pred_region
      _
    $region17: #{tpu_custom_call.1} parent=1 // pred_fallthru
      _
    // Predicated region
    $region18: #{tpu_custom_call.1} parent=1 // pred_check
      _
    $region19: #{tpu_custom_call.1} parent=1 // pred_check_branch
      %28 = sbr.rel (0) target = $region21
    $region20: #{tpu_custom_call.1} parent=1 // pred_region
      _
    $region21: #{tpu_custom_call.1} parent=1 // pred_fallthru
      _
    // Predicated region
    $region22: #{tpu_custom_call.1} parent=1 // pred_check
      _
    $region23: #{tpu_custom_call.1} parent=1 // pred_check_branch
      %30 = sbr.rel (0) target = $region25
    $region24: #{tpu_custom_call.1} parent=1 // pred_region
      _
    $region25: #{tpu_custom_call.1} parent=1 // pred_fallthru
      _
    // Predicated region
    $region26: #{tpu_custom_call.1} parent=1 // pred_check
      _
    $region27: #{tpu_custom_call.1} parent=1 // pred_check_branch
      %32 = sbr.rel (0) target = $region29
    $region28: #{tpu_custom_call.1} parent=1 // pred_region
      _
    $region29: #{tpu_custom_call.1} parent=1 // pred_fallthru
      _
    // Predicated region
    $region30: #{tpu_custom_call.1} parent=1 // pred_check
      _
    $region31: #{tpu_custom_call.1} parent=1 // pred_check_branch
      %34 = sbr.rel (0) target = $region33
    $region32: #{tpu_custom_call.1} parent=1 // pred_region
      _
    $region33: #{tpu_custom_call.1} parent=1 // pred_fallthru
      _
    // Predicated region
    $region34: #{tpu_custom_call.1} parent=1 // pred_check
      _
    $region35: #{tpu_custom_call.1} parent=1 // pred_check_branch
      %36 = sbr.rel (0) target = $region37
    $region36: #{tpu_custom_call.1} parent=1 // pred_region
      _
    $region37: #{tpu_custom_call.1} parent=1 // pred_fallthru
      _
    // Predicated region
    $region38: #{tpu_custom_call.1} parent=1 // pred_check
      _
    $region39: #{tpu_custom_call.1} parent=1 // pred_check_branch
      %38 = sbr.rel (0) target = $region41
    $region40: #{tpu_custom_call.1} parent=1 // pred_region
      _
    $region41: #{tpu_custom_call.1} parent=1 // pred_fallthru
      _
    %v39 = vld [vmem:[%s0] sm:$0xff]
    %v40 = vld [vmem:[%s0 + $0x8] sm:$0xff]
    %v41 = vld [vmem:[%s3] sm:$0x3]
    %v42 = vld [vmem:[%s1] sm:$0xff]
    %v43 = vld [vmem:[%s1 + $0x8] sm:$0xff]
    %v44 = vld [vmem:[%s2] sm:$0xff]
    %v45 = vld [vmem:[%s2 + $0x8] sm:$0xff]
    %vm46 = vcmask 130048
    %v48 = vsel %vm46, %v39, 0
    %v51 = vsel %vm46, %v40, 0
    %53 = vmatprep.subr.mxu0 0.0
    %54 = vmatpush1.msra.mxu0 %v42
    %55 = vmatprep.subr.mxu0 0.0
    %56 = vmatpush1.msra.mxu0 %v43
    %57 = vmatprep.subr.mxu0 0.0
    %58 = vmatpush1.msra.mxu0 0.0
    %59 = vmatprep.subr.mxu0 0.0
    %60 = vmatpush1.msra.mxu0 0.0
    %61 = vmatprep.subr.mxu0 0.0
    %62 = vmatpush1.msra.mxu0 0.0
    %63 = vmatprep.subr.mxu0 0.0
    %64 = vmatpush1.msra.mxu0 0.0
    %65 = vmatprep.subr.mxu0 0.0
    %66 = vmatpush1.msra.mxu0 0.0
    %67 = vmatprep.subr.mxu0 0.0
    %68 = vmatpush1.msra.mxu0 0.0
    %69 = vmatprep.subr.mxu0 0.0
    %70 = vmatpush1.msra.mxu0 0.0
    %71 = vmatprep.subr.mxu0 0.0
    %72 = vmatpush1.msra.mxu0 0.0
    %73 = vmatprep.subr.mxu0 0.0
    %74 = vmatpush1.msra.mxu0 0.0
    %75 = vmatprep.subr.mxu0 0.0
    %76 = vmatpush1.msra.mxu0 0.0
    %77 = vmatprep.subr.mxu0 0.0
    %78 = vmatpush1.msra.mxu0 0.0
    %79 = vmatprep.subr.mxu0 0.0
    %80 = vmatpush1.msra.mxu0 0.0
    %81 = vmatprep.subr.mxu0 0.0
    %82 = vmatpush1.msra.mxu0 0.0
    %83 = vmatprep.subr.mxu0 0.0
    %84 = vmatpush1.msra.mxu0 0.0
    %85 = vmatprep.subr.mxu0 0.0
    %86 = vmatpush1.msra.mxu0 0.0
    %87 = vmatprep.subr.mxu0 0.0
    %88 = vmatpush1.msra.mxu0 0.0
    %89 = vmatprep.subr.mxu0 0.0
    %90 = vmatpush1.msra.mxu0 0.0
    %91 = vmatprep.subr.mxu0 0.0
    %92 = vmatpush1.msra.mxu0 0.0
    %93 = vmatprep.subr.mxu0 0.0
    %94 = vmatpush1.msra.mxu0 0.0
    %95 = vmatprep.subr.mxu0 0.0
    %96 = vmatpush1.msra.mxu0 0.0
    %97 = vmatprep.subr.mxu0 0.0
    %98 = vmatpush1.msra.mxu0 0.0
    %99 = vmatprep.subr.mxu0 0.0
    %100 = vmatpush1.msra.mxu0 0.0
    %101 = vmatprep.subr.mxu0 0.0
    %102 = vmatpush1.msra.mxu0 0.0
    %103 = vmatprep.subr.mxu0 0.0
    %104 = vmatpush1.msra.mxu0 0.0
    %105 = vmatprep.subr.mxu0 0.0
    %106 = vmatpush1.msra.mxu0 0.0
    %107 = vmatprep.subr.mxu0 0.0
    %108 = vmatpush1.msra.mxu0 0.0
    %109 = vmatprep.subr.mxu0 0.0
    %110 = vmatpush1.msra.mxu0 0.0
    %111 = vmatprep.subr.mxu0 0.0
    %112 = vmatpush1.msra.mxu0 0.0
    %113 = vmatprep.subr.mxu0 0.0
    %114 = vmatpush1.msra.mxu0 0.0
    %115 = vmatprep.subr.mxu0 0.0
    %116 = vmatpush1.msra.mxu0 0.0
    %117 = vmatprep.mubr.f32.mxu0 0.0
    %118 = vmatmul.mubr.f32.gmra.mrb[0].mxu0 %v48
    %v119 = vpop.f32.mrb[0].mxu0
    %v120 = vadd.f32 %v44, %v119
    %v121 = vpop.f32.mrb[0].mxu0
    %122 = vmatprep.mubr.f32.mxu0 0.0
    %123 = vmatmul.mubr.f32.gmra.mrb[0].mxu0 %v51
    %v124 = vpop.f32.mrb[0].mxu0
    %v125 = vadd.f32 %v45, %v124
    %v126 = vpop.f32.mrb[0].mxu0
    %127 = vdwg.mxu0
    %vm128 = vcmask 261120
    %v129 = vsel %vm128, %v120, 0.0
    %130 = vadd.xlane.f32.xlu0 %v129
    %v131 = vpop.xlane.xlu0 %130
    %v132 = vsel %vm128, %v125, 0.0
    %133 = vadd.xlane.f32.xlu0 %v132
    %v134 = vpop.xlane.xlu0 %133
    %v135 = vrcp.pop 32.0
    %v136 = vmul.f32 %v131, %v135
    %v137 = vmul.f32 %v134, %v135
    %v138 = vsub.f32 %v120, %v136
    %v139 = vsub.f32 %v125, %v137
    %v140 = vmul.f32 %v138, %v138
    %v141 = vmul.f32 %v139, %v139
    %v142 = vsel %vm128, %v140, 0.0
    %143 = vadd.xlane.f32.xlu0 %v142
    %v144 = vpop.xlane.xlu0 %143
    %v145 = vsel %vm128, %v141, 0.0
    %146 = vadd.xlane.f32.xlu0 %v145
    %v147 = vpop.xlane.xlu0 %146
    %v148 = vmul.f32 %v144, %v135
    %v149 = vmul.f32 %v147, %v135
    %v150 = vadd.f32 %v148, 1e-06
    %v151 = vadd.f32 %v149, 1e-06
    %v152 = vrsqrt.pop %v150
    %v153 = vrsqrt.pop %v151
    %v154 = vmul.f32 %v138, %v152
    %v155 = vmul.f32 %v139, %v153
    %v156 = vlaneseq
    %v157 = vshrl.u32 %v156, 7
    %v158 = vsub.s32 0, %v157
    %v159 = vrot.slane %v41, %v158
    %v160 = vmul.f32 %v154, %v159
    %v161 = vmul.f32 %v155, %v159
    %v162 = vlaneseq
    %v163 = vshrl.u32 %v162, 7
    %v164 = vsub.s32 1, %v163
    %v165 = vrot.slane %v41, %v164
    %v166 = vadd.f32 %v160, %v165
    %v167 = vadd.f32 %v161, %v165
    %v168 = vld [vmem:[%s9] sm:$0x1f]
    %v169 = vld [vmem:[%s4] sm:$0xff]
    %v170 = vld [vmem:[%s4 + $0x8] sm:$0xff]
    %v171 = vld [vmem:[%s4 + $0x10] sm:$0xff]
    %v172 = vld [vmem:[%s4 + $0x18] sm:$0xff]
    %v174 = vsel %vm128, %v166, 0
    %v177 = vsel %vm128, %v167, 0
    %179 = vmatprep.subr.mxu0 0.0
    %180 = vmatpush1.msra.mxu0 %v169
    %181 = vmatprep.subr.mxu0 0.0
    %182 = vmatpush1.msra.mxu0 %v170
    %183 = vmatprep.subr.mxu0 0.0
    %184 = vmatpush1.msra.mxu0 %v171
    %185 = vmatprep.subr.mxu0 0.0
    %186 = vmatpush1.msra.mxu0 %v172
    %187 = vmatprep.subr.mxu0 0.0
    %188 = vmatpush1.msra.mxu0 0.0
    %189 = vmatprep.subr.mxu0 0.0
    %190 = vmatpush1.msra.mxu0 0.0
    %191 = vmatprep.subr.mxu0 0.0
    %192 = vmatpush1.msra.mxu0 0.0
    %193 = vmatprep.subr.mxu0 0.0
    %194 = vmatpush1.msra.mxu0 0.0
    %195 = vmatprep.subr.mxu0 0.0
    %196 = vmatpush1.msra.mxu0 0.0
    %197 = vmatprep.subr.mxu0 0.0
    %198 = vmatpush1.msra.mxu0 0.0
    %199 = vmatprep.subr.mxu0 0.0
    %200 = vmatpush1.msra.mxu0 0.0
    %201 = vmatprep.subr.mxu0 0.0
    %202 = vmatpush1.msra.mxu0 0.0
    %203 = vmatprep.subr.mxu0 0.0
    %204 = vmatpush1.msra.mxu0 0.0
    %205 = vmatprep.subr.mxu0 0.0
    %206 = vmatpush1.msra.mxu0 0.0
    %207 = vmatprep.subr.mxu0 0.0
    %208 = vmatpush1.msra.mxu0 0.0
    %209 = vmatprep.subr.mxu0 0.0
    %210 = vmatpush1.msra.mxu0 0.0
    %211 = vmatprep.subr.mxu0 0.0
    %212 = vmatpush1.msra.mxu0 0.0
    %213 = vmatprep.subr.mxu0 0.0
    %214 = vmatpush1.msra.mxu0 0.0
    %215 = vmatprep.subr.mxu0 0.0
    %216 = vmatpush1.msra.mxu0 0.0
    %217 = vmatprep.subr.mxu0 0.0
    %218 = vmatpush1.msra.mxu0 0.0
    %219 = vmatprep.subr.mxu0 0.0
    %220 = vmatpush1.msra.mxu0 0.0
    %221 = vmatprep.subr.mxu0 0.0
    %222 = vmatpush1.msra.mxu0 0.0
    %223 = vmatprep.subr.mxu0 0.0
    %224 = vmatpush1.msra.mxu0 0.0
    %225 = vmatprep.subr.mxu0 0.0
    %226 = vmatpush1.msra.mxu0 0.0
    %227 = vmatprep.subr.mxu0 0.0
    %228 = vmatpush1.msra.mxu0 0.0
    %229 = vmatprep.subr.mxu0 0.0
    %230 = vmatpush1.msra.mxu0 0.0
    %231 = vmatprep.subr.mxu0 0.0
    %232 = vmatpush1.msra.mxu0 0.0
    %233 = vmatprep.subr.mxu0 0.0
    %234 = vmatpush1.msra.mxu0 0.0
    %235 = vmatprep.subr.mxu0 0.0
    %236 = vmatpush1.msra.mxu0 0.0
    %237 = vmatprep.subr.mxu0 0.0
    %238 = vmatpush1.msra.mxu0 0.0
    %239 = vmatprep.subr.mxu0 0.0
    %240 = vmatpush1.msra.mxu0 0.0
    %241 = vmatprep.subr.mxu0 0.0
    %242 = vmatpush1.msra.mxu0 0.0
    %243 = vmatprep.mubr.f32.mxu0 0.0
    %244 = vmatmul.mubr.f32.gmra.mrb[0].mxu0 %v174
    %v245 = vpop.f32.mrb[0].mxu0
    %v246 = vadd.f32 0.0, %v245
    %v247 = vpop.f32.mrb[0].mxu0
    %248 = vmatprep.mubr.f32.mxu0 0.0
    %249 = vmatmul.mubr.f32.gmra.mrb[0].mxu0 %v177
    %v250 = vpop.f32.mrb[0].mxu0
    %v251 = vadd.f32 0.0, %v250
    %v252 = vpop.f32.mrb[0].mxu0
    %253 = vdwg.mxu0
    %255 = vrot.lane.b32.xlu0 %v246, 96
    %v256 = vpop.permute.xlu0 %255
    %vm257 = vcmask 64512
    %v258 = vsel %vm257, %v246, 0
    %v260 = vsel %vm257, %v256, 0
    %262 = vmatprep.subr.mxu0 0.0
    %263 = vmatpush1.xpose.msra.mxu0 %v260
    %264 = vmatprep.subr.mxu0 0.0
    %265 = vmatpush1.xpose.msra.mxu0 0.0
    %266 = vmatprep.subr.mxu0 0.0
    %267 = vmatpush1.xpose.msra.mxu0 0.0
    %268 = vmatprep.subr.mxu0 0.0
    %269 = vmatpush1.xpose.msra.mxu0 0.0
    %270 = vmatprep.subr.mxu0 0.0
    %271 = vmatpush1.xpose.msra.mxu0 0.0
    %272 = vmatprep.subr.mxu0 0.0
    %273 = vmatpush1.xpose.msra.mxu0 0.0
    %274 = vmatprep.subr.mxu0 0.0
    %275 = vmatpush1.xpose.msra.mxu0 0.0
    %276 = vmatprep.subr.mxu0 0.0
    %277 = vmatpush1.xpose.msra.mxu0 0.0
    %278 = vmatprep.subr.mxu0 0.0
    %279 = vmatpush1.xpose.msra.mxu0 0.0
    %280 = vmatprep.subr.mxu0 0.0
    %281 = vmatpush1.xpose.msra.mxu0 0.0
    %282 = vmatprep.subr.mxu0 0.0
    %283 = vmatpush1.xpose.msra.mxu0 0.0
    %284 = vmatprep.subr.mxu0 0.0
    %285 = vmatpush1.xpose.msra.mxu0 0.0
    %286 = vmatprep.subr.mxu0 0.0
    %287 = vmatpush1.xpose.msra.mxu0 0.0
    %288 = vmatprep.subr.mxu0 0.0
    %289 = vmatpush1.xpose.msra.mxu0 0.0
    %290 = vmatprep.subr.mxu0 0.0
    %291 = vmatpush1.xpose.msra.mxu0 0.0
    %292 = vmatprep.subr.mxu0 0.0
    %293 = vmatpush1.xpose.msra.mxu0 0.0
    %294 = vmatprep.subr.mxu0 0.0
    %295 = vmatpush1.xpose.msra.mxu0 0.0
    %296 = vmatprep.subr.mxu0 0.0
    %297 = vmatpush1.xpose.msra.mxu0 0.0
    %298 = vmatprep.subr.mxu0 0.0
    %299 = vmatpush1.xpose.msra.mxu0 0.0
    %300 = vmatprep.subr.mxu0 0.0
    %301 = vmatpush1.xpose.msra.mxu0 0.0
    %302 = vmatprep.subr.mxu0 0.0
    %303 = vmatpush1.xpose.msra.mxu0 0.0
    %304 = vmatprep.subr.mxu0 0.0
    %305 = vmatpush1.xpose.msra.mxu0 0.0
    %306 = vmatprep.subr.mxu0 0.0
    %307 = vmatpush1.xpose.msra.mxu0 0.0
    %308 = vmatprep.subr.mxu0 0.0
    %309 = vmatpush1.xpose.msra.mxu0 0.0
    %310 = vmatprep.subr.mxu0 0.0
    %311 = vmatpush1.xpose.msra.mxu0 0.0
    %312 = vmatprep.subr.mxu0 0.0
    %313 = vmatpush1.xpose.msra.mxu0 0.0
    %314 = vmatprep.subr.mxu0 0.0
    %315 = vmatpush1.xpose.msra.mxu0 0.0
    %316 = vmatprep.subr.mxu0 0.0
    %317 = vmatpush1.xpose.msra.mxu0 0.0
    %318 = vmatprep.subr.mxu0 0.0
    %319 = vmatpush1.xpose.msra.mxu0 0.0
    %320 = vmatprep.subr.mxu0 0.0
    %321 = vmatpush1.xpose.msra.mxu0 0.0
    %322 = vmatprep.subr.mxu0 0.0
    %323 = vmatpush1.xpose.msra.mxu0 0.0
    %324 = vmatprep.subr.mxu0 0.0
    %325 = vmatpush1.xpose.msra.mxu0 0.0
    %326 = vmatprep.mubr.f32.mxu0 0.0
    %327 = vmatmul.mubr.f32.gmra.mrb[0].mxu0 %v258
    %v328 = vpop.f32.mrb[0].mxu0
    %v329 = vadd.f32 0.0, %v328
    %v330 = vpop.f32.mrb[0].mxu0
    %331 = vdwg.mxu0
    %333 = vrot.lane.b32.xlu0 %v251, 96
    %v334 = vpop.permute.xlu0 %333
    %v335 = vsel %vm257, %v251, 0
    %v337 = vsel %vm257, %v334, 0
    %339 = vmatprep.subr.mxu0 0.0
    %340 = vmatpush1.xpose.msra.mxu0 %v337
    %341 = vmatprep.subr.mxu0 0.0
    %342 = vmatpush1.xpose.msra.mxu0 0.0
    %343 = vmatprep.subr.mxu0 0.0
    %344 = vmatpush1.xpose.msra.mxu0 0.0
    %345 = vmatprep.subr.mxu0 0.0
    %346 = vmatpush1.xpose.msra.mxu0 0.0
    %347 = vmatprep.subr.mxu0 0.0
    %348 = vmatpush1.xpose.msra.mxu0 0.0
    %349 = vmatprep.subr.mxu0 0.0
    %350 = vmatpush1.xpose.msra.mxu0 0.0
    %351 = vmatprep.subr.mxu0 0.0
    %352 = vmatpush1.xpose.msra.mxu0 0.0
    %353 = vmatprep.subr.mxu0 0.0
    %354 = vmatpush1.xpose.msra.mxu0 0.0
    %355 = vmatprep.subr.mxu0 0.0
    %356 = vmatpush1.xpose.msra.mxu0 0.0
    %357 = vmatprep.subr.mxu0 0.0
    %358 = vmatpush1.xpose.msra.mxu0 0.0
    %359 = vmatprep.subr.mxu0 0.0
    %360 = vmatpush1.xpose.msra.mxu0 0.0
    %361 = vmatprep.subr.mxu0 0.0
    %362 = vmatpush1.xpose.msra.mxu0 0.0
    %363 = vmatprep.subr.mxu0 0.0
    %364 = vmatpush1.xpose.msra.mxu0 0.0
    %365 = vmatprep.subr.mxu0 0.0
    %366 = vmatpush1.xpose.msra.mxu0 0.0
    %367 = vmatprep.subr.mxu0 0.0
    %368 = vmatpush1.xpose.msra.mxu0 0.0
    %369 = vmatprep.subr.mxu0 0.0
    %370 = vmatpush1.xpose.msra.mxu0 0.0
    %371 = vmatprep.subr.mxu0 0.0
    %372 = vmatpush1.xpose.msra.mxu0 0.0
    %373 = vmatprep.subr.mxu0 0.0
    %374 = vmatpush1.xpose.msra.mxu0 0.0
    %375 = vmatprep.subr.mxu0 0.0
    %376 = vmatpush1.xpose.msra.mxu0 0.0
    %377 = vmatprep.subr.mxu0 0.0
    %378 = vmatpush1.xpose.msra.mxu0 0.0
    %379 = vmatprep.subr.mxu0 0.0
    %380 = vmatpush1.xpose.msra.mxu0 0.0
    %381 = vmatprep.subr.mxu0 0.0
    %382 = vmatpush1.xpose.msra.mxu0 0.0
    %383 = vmatprep.subr.mxu0 0.0
    %384 = vmatpush1.xpose.msra.mxu0 0.0
    %385 = vmatprep.subr.mxu0 0.0
    %386 = vmatpush1.xpose.msra.mxu0 0.0
    %387 = vmatprep.subr.mxu0 0.0
    %388 = vmatpush1.xpose.msra.mxu0 0.0
    %389 = vmatprep.subr.mxu0 0.0
    %390 = vmatpush1.xpose.msra.mxu0 0.0
    %391 = vmatprep.subr.mxu0 0.0
    %392 = vmatpush1.xpose.msra.mxu0 0.0
    %393 = vmatprep.subr.mxu0 0.0
    %394 = vmatpush1.xpose.msra.mxu0 0.0
    %395 = vmatprep.subr.mxu0 0.0
    %396 = vmatpush1.xpose.msra.mxu0 0.0
    %397 = vmatprep.subr.mxu0 0.0
    %398 = vmatpush1.xpose.msra.mxu0 0.0
    %399 = vmatprep.subr.mxu0 0.0
    %400 = vmatpush1.xpose.msra.mxu0 0.0
    %401 = vmatprep.subr.mxu0 0.0
    %402 = vmatpush1.xpose.msra.mxu0 0.0
    %403 = vmatprep.mubr.f32.mxu0 0.0
    %404 = vmatmul.mubr.f32.gmra.mrb[0].mxu0 %v335
    %v405 = vpop.f32.mrb[0].mxu0
    %v406 = vadd.f32 0.0, %v405
    %v407 = vpop.f32.mrb[0].mxu0
    %408 = vdwg.mxu0
    %v409 = vsel %vm257, %v329, -inf
    %410 = vmax.xlane.f32.xlu0 %v409
    %v411 = vpop.xlane.xlu0 %410
    %v412 = vsel %vm257, %v406, -inf
    %413 = vmax.xlane.f32.xlu0 %v412
    %v414 = vpop.xlane.xlu0 %413
    %v415 = vsub.f32 %v329, %v411
    %v416 = vsub.f32 %v406, %v414
    %v417 = vmul.f32 %v415, 1.442695
    %v418 = vpow.pop %v417
    %v419 = vmul.f32 %v416, 1.442695
    %v420 = vpow.pop %v419
    %v421 = vsel %vm257, %v418, 0.0
    %422 = vadd.xlane.f32.xlu0 %v421
    %v423 = vpop.xlane.xlu0 %422
    %v424 = vsel %vm257, %v420, 0.0
    %425 = vadd.xlane.f32.xlu0 %v424
    %v426 = vpop.xlane.xlu0 %425
    %v427 = vrcp.pop %v423
    %v428 = vrcp.pop %v426
    %v429 = vmul.f32 %v418, %v427
    %v430 = vmul.f32 %v420, %v428
    %431 = vrot.lane.b32.xlu0 %v246, 64
    %v432 = vpop.permute.xlu0 %431
    %v435 = vsel %vm257, %v429, 0
    %437 = vmatprep.subr.mxu0 0.0
    %438 = vmatpush1.msra.mxu0 %v432
    %439 = vmatprep.subr.mxu0 0.0
    %440 = vmatpush1.msra.mxu0 0.0
    %441 = vmatprep.subr.mxu0 0.0
    %442 = vmatpush1.msra.mxu0 0.0
    %443 = vmatprep.subr.mxu0 0.0
    %444 = vmatpush1.msra.mxu0 0.0
    %445 = vmatprep.subr.mxu0 0.0
    %446 = vmatpush1.msra.mxu0 0.0
    %447 = vmatprep.subr.mxu0 0.0
    %448 = vmatpush1.msra.mxu0 0.0
    %449 = vmatprep.subr.mxu0 0.0
    %450 = vmatpush1.msra.mxu0 0.0
    %451 = vmatprep.subr.mxu0 0.0
    %452 = vmatpush1.msra.mxu0 0.0
    %453 = vmatprep.subr.mxu0 0.0
    %454 = vmatpush1.msra.mxu0 0.0
    %455 = vmatprep.subr.mxu0 0.0
    %456 = vmatpush1.msra.mxu0 0.0
    %457 = vmatprep.subr.mxu0 0.0
    %458 = vmatpush1.msra.mxu0 0.0
    %459 = vmatprep.subr.mxu0 0.0
    %460 = vmatpush1.msra.mxu0 0.0
    %461 = vmatprep.subr.mxu0 0.0
    %462 = vmatpush1.msra.mxu0 0.0
    %463 = vmatprep.subr.mxu0 0.0
    %464 = vmatpush1.msra.mxu0 0.0
    %465 = vmatprep.subr.mxu0 0.0
    %466 = vmatpush1.msra.mxu0 0.0
    %467 = vmatprep.subr.mxu0 0.0
    %468 = vmatpush1.msra.mxu0 0.0
    %469 = vmatprep.subr.mxu0 0.0
    %470 = vmatpush1.msra.mxu0 0.0
    %471 = vmatprep.subr.mxu0 0.0
    %472 = vmatpush1.msra.mxu0 0.0
    %473 = vmatprep.subr.mxu0 0.0
    %474 = vmatpush1.msra.mxu0 0.0
    %475 = vmatprep.subr.mxu0 0.0
    %476 = vmatpush1.msra.mxu0 0.0
    %477 = vmatprep.subr.mxu0 0.0
    %478 = vmatpush1.msra.mxu0 0.0
    %479 = vmatprep.subr.mxu0 0.0
    %480 = vmatpush1.msra.mxu0 0.0
    %481 = vmatprep.subr.mxu0 0.0
    %482 = vmatpush1.msra.mxu0 0.0
    %483 = vmatprep.subr.mxu0 0.0
    %484 = vmatpush1.msra.mxu0 0.0
    %485 = vmatprep.subr.mxu0 0.0
    %486 = vmatpush1.msra.mxu0 0.0
    %487 = vmatprep.subr.mxu0 0.0
    %488 = vmatpush1.msra.mxu0 0.0
    %489 = vmatprep.subr.mxu0 0.0
    %490 = vmatpush1.msra.mxu0 0.0
    %491 = vmatprep.subr.mxu0 0.0
    %492 = vmatpush1.msra.mxu0 0.0
    %493 = vmatprep.subr.mxu0 0.0
    %494 = vmatpush1.msra.mxu0 0.0
    %495 = vmatprep.subr.mxu0 0.0
    %496 = vmatpush1.msra.mxu0 0.0
    %497 = vmatprep.subr.mxu0 0.0
    %498 = vmatpush1.msra.mxu0 0.0
    %499 = vmatprep.subr.mxu0 0.0
    %500 = vmatpush1.msra.mxu0 0.0
    %501 = vmatprep.mubr.f32.mxu0 0.0
    %502 = vmatmul.mubr.f32.gmra.mrb[0].mxu0 %v435
    %v503 = vpop.f32.mrb[0].mxu0
    %v504 = vadd.f32 0.0, %v503
    %v505 = vpop.f32.mrb[0].mxu0
    %506 = vdwg.mxu0
    %507 = vrot.lane.b32.xlu0 %v251, 64
    %v508 = vpop.permute.xlu0 %507
    %v511 = vsel %vm257, %v430, 0
    %513 = vmatprep.subr.mxu0 0.0
    %514 = vmatpush1.msra.mxu0 %v508
    %515 = vmatprep.subr.mxu0 0.0
    %516 = vmatpush1.msra.mxu0 0.0
    %517 = vmatprep.subr.mxu0 0.0
    %518 = vmatpush1.msra.mxu0 0.0
    %519 = vmatprep.subr.mxu0 0.0
    %520 = vmatpush1.msra.mxu0 0.0
    %521 = vmatprep.subr.mxu0 0.0
    %522 = vmatpush1.msra.mxu0 0.0
    %523 = vmatprep.subr.mxu0 0.0
    %524 = vmatpush1.msra.mxu0 0.0
    %525 = vmatprep.subr.mxu0 0.0
    %526 = vmatpush1.msra.mxu0 0.0
    %527 = vmatprep.subr.mxu0 0.0
    %528 = vmatpush1.msra.mxu0 0.0
    %529 = vmatprep.subr.mxu0 0.0
    %530 = vmatpush1.msra.mxu0 0.0
    %531 = vmatprep.subr.mxu0 0.0
    %532 = vmatpush1.msra.mxu0 0.0
    %533 = vmatprep.subr.mxu0 0.0
    %534 = vmatpush1.msra.mxu0 0.0
    %535 = vmatprep.subr.mxu0 0.0
    %536 = vmatpush1.msra.mxu0 0.0
    %537 = vmatprep.subr.mxu0 0.0
    %538 = vmatpush1.msra.mxu0 0.0
    %539 = vmatprep.subr.mxu0 0.0
    %540 = vmatpush1.msra.mxu0 0.0
    %541 = vmatprep.subr.mxu0 0.0
    %542 = vmatpush1.msra.mxu0 0.0
    %543 = vmatprep.subr.mxu0 0.0
    %544 = vmatpush1.msra.mxu0 0.0
    %545 = vmatprep.subr.mxu0 0.0
    %546 = vmatpush1.msra.mxu0 0.0
    %547 = vmatprep.subr.mxu0 0.0
    %548 = vmatpush1.msra.mxu0 0.0
    %549 = vmatprep.subr.mxu0 0.0
    %550 = vmatpush1.msra.mxu0 0.0
    %551 = vmatprep.subr.mxu0 0.0
    %552 = vmatpush1.msra.mxu0 0.0
    %553 = vmatprep.subr.mxu0 0.0
    %554 = vmatpush1.msra.mxu0 0.0
    %555 = vmatprep.subr.mxu0 0.0
    %556 = vmatpush1.msra.mxu0 0.0
    %557 = vmatprep.subr.mxu0 0.0
    %558 = vmatpush1.msra.mxu0 0.0
    %559 = vmatprep.subr.mxu0 0.0
    %560 = vmatpush1.msra.mxu0 0.0
    %561 = vmatprep.subr.mxu0 0.0
    %562 = vmatpush1.msra.mxu0 0.0
    %563 = vmatprep.subr.mxu0 0.0
    %564 = vmatpush1.msra.mxu0 0.0
    %565 = vmatprep.subr.mxu0 0.0
    %566 = vmatpush1.msra.mxu0 0.0
    %567 = vmatprep.subr.mxu0 0.0
    %568 = vmatpush1.msra.mxu0 0.0
    %569 = vmatprep.subr.mxu0 0.0
    %570 = vmatpush1.msra.mxu0 0.0
    %571 = vmatprep.subr.mxu0 0.0
    %572 = vmatpush1.msra.mxu0 0.0
    %573 = vmatprep.subr.mxu0 0.0
    %574 = vmatpush1.msra.mxu0 0.0
    %575 = vmatprep.subr.mxu0 0.0
    %576 = vmatpush1.msra.mxu0 0.0
    %577 = vmatprep.mubr.f32.mxu0 0.0
    %578 = vmatmul.mubr.f32.gmra.mrb[0].mxu0 %v511
    %v579 = vpop.f32.mrb[0].mxu0
    %v580 = vadd.f32 0.0, %v579
    %v581 = vpop.f32.mrb[0].mxu0
    %582 = vdwg.mxu0
    %583 = vrot.lane.b32.xlu0 %v246, 120
    %v584 = vpop.permute.xlu0 %583
    %585 = vrot.lane.b32.xlu0 %v246, 88
    %v586 = vpop.permute.xlu0 %585
    %v587 = vsel %vm257, %v584, 0
    %v589 = vsel %vm257, %v586, 0
    %591 = vmatprep.subr.mxu0 0.0
    %592 = vmatpush1.xpose.msra.mxu0 %v589
    %593 = vmatprep.subr.mxu0 0.0
    %594 = vmatpush1.xpose.msra.mxu0 0.0
    %595 = vmatprep.subr.mxu0 0.0
    %596 = vmatpush1.xpose.msra.mxu0 0.0
    %597 = vmatprep.subr.mxu0 0.0
    %598 = vmatpush1.xpose.msra.mxu0 0.0
    %599 = vmatprep.subr.mxu0 0.0
    %600 = vmatpush1.xpose.msra.mxu0 0.0
    %601 = vmatprep.subr.mxu0 0.0
    %602 = vmatpush1.xpose.msra.mxu0 0.0
    %603 = vmatprep.subr.mxu0 0.0
    %604 = vmatpush1.xpose.msra.mxu0 0.0
    %605 = vmatprep.subr.mxu0 0.0
    %606 = vmatpush1.xpose.msra.mxu0 0.0
    %607 = vmatprep.subr.mxu0 0.0
    %608 = vmatpush1.xpose.msra.mxu0 0.0
    %609 = vmatprep.subr.mxu0 0.0
    %610 = vmatpush1.xpose.msra.mxu0 0.0
    %611 = vmatprep.subr.mxu0 0.0
    %612 = vmatpush1.xpose.msra.mxu0 0.0
    %613 = vmatprep.subr.mxu0 0.0
    %614 = vmatpush1.xpose.msra.mxu0 0.0
    %615 = vmatprep.subr.mxu0 0.0
    %616 = vmatpush1.xpose.msra.mxu0 0.0
    %617 = vmatprep.subr.mxu0 0.0
    %618 = vmatpush1.xpose.msra.mxu0 0.0
    %619 = vmatprep.subr.mxu0 0.0
    %620 = vmatpush1.xpose.msra.mxu0 0.0
    %621 = vmatprep.subr.mxu0 0.0
    %622 = vmatpush1.xpose.msra.mxu0 0.0
    %623 = vmatprep.subr.mxu0 0.0
    %624 = vmatpush1.xpose.msra.mxu0 0.0
    %625 = vmatprep.subr.mxu0 0.0
    %626 = vmatpush1.xpose.msra.mxu0 0.0
    %627 = vmatprep.subr.mxu0 0.0
    %628 = vmatpush1.xpose.msra.mxu0 0.0
    %629 = vmatprep.subr.mxu0 0.0
    %630 = vmatpush1.xpose.msra.mxu0 0.0
    %631 = vmatprep.subr.mxu0 0.0
    %632 = vmatpush1.xpose.msra.mxu0 0.0
    %633 = vmatprep.subr.mxu0 0.0
    %634 = vmatpush1.xpose.msra.mxu0 0.0
    %635 = vmatprep.subr.mxu0 0.0
    %636 = vmatpush1.xpose.msra.mxu0 0.0
    %637 = vmatprep.subr.mxu0 0.0
    %638 = vmatpush1.xpose.msra.mxu0 0.0
    %639 = vmatprep.subr.mxu0 0.0
    %640 = vmatpush1.xpose.msra.mxu0 0.0
    %641 = vmatprep.subr.mxu0 0.0
    %642 = vmatpush1.xpose.msra.mxu0 0.0
    %643 = vmatprep.subr.mxu0 0.0
    %644 = vmatpush1.xpose.msra.mxu0 0.0
    %645 = vmatprep.subr.mxu0 0.0
    %646 = vmatpush1.xpose.msra.mxu0 0.0
    %647 = vmatprep.subr.mxu0 0.0
    %648 = vmatpush1.xpose.msra.mxu0 0.0
    %649 = vmatprep.subr.mxu0 0.0
    %650 = vmatpush1.xpose.msra.mxu0 0.0
    %651 = vmatprep.subr.mxu0 0.0
    %652 = vmatpush1.xpose.msra.mxu0 0.0
    %653 = vmatprep.subr.mxu0 0.0
    %654 = vmatpush1.xpose.msra.mxu0 0.0
    %655 = vmatprep.mubr.f32.mxu0 0.0
    %656 = vmatmul.mubr.f32.gmra.mrb[0].mxu0 %v587
    %v657 = vpop.f32.mrb[0].mxu0
    %v658 = vadd.f32 0.0, %v657
    %v659 = vpop.f32.mrb[0].mxu0
    %660 = vdwg.mxu0
    %661 = vrot.lane.b32.xlu0 %v251, 120
    %v662 = vpop.permute.xlu0 %661
    %663 = vrot.lane.b32.xlu0 %v251, 88
    %v664 = vpop.permute.xlu0 %663
    %v665 = vsel %vm257, %v662, 0
    %v667 = vsel %vm257, %v664, 0
    %669 = vmatprep.subr.mxu0 0.0
    %670 = vmatpush1.xpose.msra.mxu0 %v667
    %671 = vmatprep.subr.mxu0 0.0
    %672 = vmatpush1.xpose.msra.mxu0 0.0
    %673 = vmatprep.subr.mxu0 0.0
    %674 = vmatpush1.xpose.msra.mxu0 0.0
    %675 = vmatprep.subr.mxu0 0.0
    %676 = vmatpush1.xpose.msra.mxu0 0.0
    %677 = vmatprep.subr.mxu0 0.0
    %678 = vmatpush1.xpose.msra.mxu0 0.0
    %679 = vmatprep.subr.mxu0 0.0
    %680 = vmatpush1.xpose.msra.mxu0 0.0
    %681 = vmatprep.subr.mxu0 0.0
    %682 = vmatpush1.xpose.msra.mxu0 0.0
    %683 = vmatprep.subr.mxu0 0.0
    %684 = vmatpush1.xpose.msra.mxu0 0.0
    %685 = vmatprep.subr.mxu0 0.0
    %686 = vmatpush1.xpose.msra.mxu0 0.0
    %687 = vmatprep.subr.mxu0 0.0
    %688 = vmatpush1.xpose.msra.mxu0 0.0
    %689 = vmatprep.subr.mxu0 0.0
    %690 = vmatpush1.xpose.msra.mxu0 0.0
    %691 = vmatprep.subr.mxu0 0.0
    %692 = vmatpush1.xpose.msra.mxu0 0.0
    %693 = vmatprep.subr.mxu0 0.0
    %694 = vmatpush1.xpose.msra.mxu0 0.0
    %695 = vmatprep.subr.mxu0 0.0
    %696 = vmatpush1.xpose.msra.mxu0 0.0
    %697 = vmatprep.subr.mxu0 0.0
    %698 = vmatpush1.xpose.msra.mxu0 0.0
    %699 = vmatprep.subr.mxu0 0.0
    %700 = vmatpush1.xpose.msra.mxu0 0.0
    %701 = vmatprep.subr.mxu0 0.0
    %702 = vmatpush1.xpose.msra.mxu0 0.0
    %703 = vmatprep.subr.mxu0 0.0
    %704 = vmatpush1.xpose.msra.mxu0 0.0
    %705 = vmatprep.subr.mxu0 0.0
    %706 = vmatpush1.xpose.msra.mxu0 0.0
    %707 = vmatprep.subr.mxu0 0.0
    %708 = vmatpush1.xpose.msra.mxu0 0.0
    %709 = vmatprep.subr.mxu0 0.0
    %710 = vmatpush1.xpose.msra.mxu0 0.0
    %711 = vmatprep.subr.mxu0 0.0
    %712 = vmatpush1.xpose.msra.mxu0 0.0
    %713 = vmatprep.subr.mxu0 0.0
    %714 = vmatpush1.xpose.msra.mxu0 0.0
    %715 = vmatprep.subr.mxu0 0.0
    %716 = vmatpush1.xpose.msra.mxu0 0.0
    %717 = vmatprep.subr.mxu0 0.0
    %718 = vmatpush1.xpose.msra.mxu0 0.0
    %719 = vmatprep.subr.mxu0 0.0
    %720 = vmatpush1.xpose.msra.mxu0 0.0
    %721 = vmatprep.subr.mxu0 0.0
    %722 = vmatpush1.xpose.msra.mxu0 0.0
    %723 = vmatprep.subr.mxu0 0.0
    %724 = vmatpush1.xpose.msra.mxu0 0.0
    %725 = vmatprep.subr.mxu0 0.0
    %726 = vmatpush1.xpose.msra.mxu0 0.0
    %727 = vmatprep.subr.mxu0 0.0
    %728 = vmatpush1.xpose.msra.mxu0 0.0
    %729 = vmatprep.subr.mxu0 0.0
    %730 = vmatpush1.xpose.msra.mxu0 0.0
    %731 = vmatprep.subr.mxu0 0.0
    %732 = vmatpush1.xpose.msra.mxu0 0.0
    %733 = vmatprep.mubr.f32.mxu0 0.0
    %734 = vmatmul.mubr.f32.gmra.mrb[0].mxu0 %v665
    %v735 = vpop.f32.mrb[0].mxu0
    %v736 = vadd.f32 0.0, %v735
    %v737 = vpop.f32.mrb[0].mxu0
    %738 = vdwg.mxu0
    %v739 = vsel %vm257, %v658, -inf
    %740 = vmax.xlane.f32.xlu0 %v739
    %v741 = vpop.xlane.xlu0 %740
    %v742 = vsel %vm257, %v736, -inf
    %743 = vmax.xlane.f32.xlu0 %v742
    %v744 = vpop.xlane.xlu0 %743
    %v745 = vsub.f32 %v658, %v741
    %v746 = vsub.f32 %v736, %v744
    %v747 = vmul.f32 %v745, 1.442695
    %v748 = vpow.pop %v747
    %v749 = vmul.f32 %v746, 1.442695
    %v750 = vpow.pop %v749
    %v751 = vsel %vm257, %v748, 0.0
    %752 = vadd.xlane.f32.xlu0 %v751
    %v753 = vpop.xlane.xlu0 %752
    %v754 = vsel %vm257, %v750, 0.0
    %755 = vadd.xlane.f32.xlu0 %v754
    %v756 = vpop.xlane.xlu0 %755
    %v757 = vrcp.pop %v753
    %v758 = vrcp.pop %v756
    %v759 = vmul.f32 %v748, %v757
    %v760 = vmul.f32 %v750, %v758
    %761 = vrot.lane.b32.xlu0 %v246, 56
    %v762 = vpop.permute.xlu0 %761
    %v765 = vsel %vm257, %v759, 0
    %767 = vmatprep.subr.mxu0 0.0
    %768 = vmatpush1.msra.mxu0 %v762
    %769 = vmatprep.subr.mxu0 0.0
    %770 = vmatpush1.msra.mxu0 0.0
    %771 = vmatprep.subr.mxu0 0.0
    %772 = vmatpush1.msra.mxu0 0.0
    %773 = vmatprep.subr.mxu0 0.0
    %774 = vmatpush1.msra.mxu0 0.0
    %775 = vmatprep.subr.mxu0 0.0
    %776 = vmatpush1.msra.mxu0 0.0
    %777 = vmatprep.subr.mxu0 0.0
    %778 = vmatpush1.msra.mxu0 0.0
    %779 = vmatprep.subr.mxu0 0.0
    %780 = vmatpush1.msra.mxu0 0.0
    %781 = vmatprep.subr.mxu0 0.0
    %782 = vmatpush1.msra.mxu0 0.0
    %783 = vmatprep.subr.mxu0 0.0
    %784 = vmatpush1.msra.mxu0 0.0
    %785 = vmatprep.subr.mxu0 0.0
    %786 = vmatpush1.msra.mxu0 0.0
    %787 = vmatprep.subr.mxu0 0.0
    %788 = vmatpush1.msra.mxu0 0.0
    %789 = vmatprep.subr.mxu0 0.0
    %790 = vmatpush1.msra.mxu0 0.0
    %791 = vmatprep.subr.mxu0 0.0
    %792 = vmatpush1.msra.mxu0 0.0
    %793 = vmatprep.subr.mxu0 0.0
    %794 = vmatpush1.msra.mxu0 0.0
    %795 = vmatprep.subr.mxu0 0.0
    %796 = vmatpush1.msra.mxu0 0.0
    %797 = vmatprep.subr.mxu0 0.0
    %798 = vmatpush1.msra.mxu0 0.0
    %799 = vmatprep.subr.mxu0 0.0
    %800 = vmatpush1.msra.mxu0 0.0
    %801 = vmatprep.subr.mxu0 0.0
    %802 = vmatpush1.msra.mxu0 0.0
    %803 = vmatprep.subr.mxu0 0.0
    %804 = vmatpush1.msra.mxu0 0.0
    %805 = vmatprep.subr.mxu0 0.0
    %806 = vmatpush1.msra.mxu0 0.0
    %807 = vmatprep.subr.mxu0 0.0
    %808 = vmatpush1.msra.mxu0 0.0
    %809 = vmatprep.subr.mxu0 0.0
    %810 = vmatpush1.msra.mxu0 0.0
    %811 = vmatprep.subr.mxu0 0.0
    %812 = vmatpush1.msra.mxu0 0.0
    %813 = vmatprep.subr.mxu0 0.0
    %814 = vmatpush1.msra.mxu0 0.0
    %815 = vmatprep.subr.mxu0 0.0
    %816 = vmatpush1.msra.mxu0 0.0
    %817 = vmatprep.subr.mxu0 0.0
    %818 = vmatpush1.msra.mxu0 0.0
    %819 = vmatprep.subr.mxu0 0.0
    %820 = vmatpush1.msra.mxu0 0.0
    %821 = vmatprep.subr.mxu0 0.0
    %822 = vmatpush1.msra.mxu0 0.0
    %823 = vmatprep.subr.mxu0 0.0
    %824 = vmatpush1.msra.mxu0 0.0
    %825 = vmatprep.subr.mxu0 0.0
    %826 = vmatpush1.msra.mxu0 0.0
    %827 = vmatprep.subr.mxu0 0.0
    %828 = vmatpush1.msra.mxu0 0.0
    %829 = vmatprep.subr.mxu0 0.0
    %830 = vmatpush1.msra.mxu0 0.0
    %831 = vmatprep.mubr.f32.mxu0 0.0
    %832 = vmatmul.mubr.f32.gmra.mrb[0].mxu0 %v765
    %v833 = vpop.f32.mrb[0].mxu0
    %v834 = vadd.f32 0.0, %v833
    %v835 = vpop.f32.mrb[0].mxu0
    %836 = vdwg.mxu0
    %837 = vrot.lane.b32.xlu0 %v251, 56
    %v838 = vpop.permute.xlu0 %837
    %v841 = vsel %vm257, %v760, 0
    %843 = vmatprep.subr.mxu0 0.0
    %844 = vmatpush1.msra.mxu0 %v838
    %845 = vmatprep.subr.mxu0 0.0
    %846 = vmatpush1.msra.mxu0 0.0
    %847 = vmatprep.subr.mxu0 0.0
    %848 = vmatpush1.msra.mxu0 0.0
    %849 = vmatprep.subr.mxu0 0.0
    %850 = vmatpush1.msra.mxu0 0.0
    %851 = vmatprep.subr.mxu0 0.0
    %852 = vmatpush1.msra.mxu0 0.0
    %853 = vmatprep.subr.mxu0 0.0
    %854 = vmatpush1.msra.mxu0 0.0
    %855 = vmatprep.subr.mxu0 0.0
    %856 = vmatpush1.msra.mxu0 0.0
    %857 = vmatprep.subr.mxu0 0.0
    %858 = vmatpush1.msra.mxu0 0.0
    %859 = vmatprep.subr.mxu0 0.0
    %860 = vmatpush1.msra.mxu0 0.0
    %861 = vmatprep.subr.mxu0 0.0
    %862 = vmatpush1.msra.mxu0 0.0
    %863 = vmatprep.subr.mxu0 0.0
    %864 = vmatpush1.msra.mxu0 0.0
    %865 = vmatprep.subr.mxu0 0.0
    %866 = vmatpush1.msra.mxu0 0.0
    %867 = vmatprep.subr.mxu0 0.0
    %868 = vmatpush1.msra.mxu0 0.0
    %869 = vmatprep.subr.mxu0 0.0
    %870 = vmatpush1.msra.mxu0 0.0
    %871 = vmatprep.subr.mxu0 0.0
    %872 = vmatpush1.msra.mxu0 0.0
    %873 = vmatprep.subr.mxu0 0.0
    %874 = vmatpush1.msra.mxu0 0.0
    %875 = vmatprep.subr.mxu0 0.0
    %876 = vmatpush1.msra.mxu0 0.0
    %877 = vmatprep.subr.mxu0 0.0
    %878 = vmatpush1.msra.mxu0 0.0
    %879 = vmatprep.subr.mxu0 0.0
    %880 = vmatpush1.msra.mxu0 0.0
    %881 = vmatprep.subr.mxu0 0.0
    %882 = vmatpush1.msra.mxu0 0.0
    %883 = vmatprep.subr.mxu0 0.0
    %884 = vmatpush1.msra.mxu0 0.0
    %885 = vmatprep.subr.mxu0 0.0
    %886 = vmatpush1.msra.mxu0 0.0
    %887 = vmatprep.subr.mxu0 0.0
    %888 = vmatpush1.msra.mxu0 0.0
    %889 = vmatprep.subr.mxu0 0.0
    %890 = vmatpush1.msra.mxu0 0.0
    %891 = vmatprep.subr.mxu0 0.0
    %892 = vmatpush1.msra.mxu0 0.0
    %893 = vmatprep.subr.mxu0 0.0
    %894 = vmatpush1.msra.mxu0 0.0
    %895 = vmatprep.subr.mxu0 0.0
    %896 = vmatpush1.msra.mxu0 0.0
    %897 = vmatprep.subr.mxu0 0.0
    %898 = vmatpush1.msra.mxu0 0.0
    %899 = vmatprep.subr.mxu0 0.0
    %900 = vmatpush1.msra.mxu0 0.0
    %901 = vmatprep.subr.mxu0 0.0
    %902 = vmatpush1.msra.mxu0 0.0
    %903 = vmatprep.subr.mxu0 0.0
    %904 = vmatpush1.msra.mxu0 0.0
    %905 = vmatprep.subr.mxu0 0.0
    %906 = vmatpush1.msra.mxu0 0.0
    %907 = vmatprep.mubr.f32.mxu0 0.0
    %908 = vmatmul.mubr.f32.gmra.mrb[0].mxu0 %v841
    %v909 = vpop.f32.mrb[0].mxu0
    %v910 = vadd.f32 0.0, %v909
    %v911 = vpop.f32.mrb[0].mxu0
    %912 = vdwg.mxu0
    %913 = vrot.lane.b32.xlu0 %v246, 112
    %v914 = vpop.permute.xlu0 %913
    %915 = vrot.lane.b32.xlu0 %v246, 80
    %v916 = vpop.permute.xlu0 %915
    %v917 = vsel %vm257, %v914, 0
    %v919 = vsel %vm257, %v916, 0
    %921 = vmatprep.subr.mxu0 0.0
    %922 = vmatpush1.xpose.msra.mxu0 %v919
    %923 = vmatprep.subr.mxu0 0.0
    %924 = vmatpush1.xpose.msra.mxu0 0.0
    %925 = vmatprep.subr.mxu0 0.0
    %926 = vmatpush1.xpose.msra.mxu0 0.0
    %927 = vmatprep.subr.mxu0 0.0
    %928 = vmatpush1.xpose.msra.mxu0 0.0
    %929 = vmatprep.subr.mxu0 0.0
    %930 = vmatpush1.xpose.msra.mxu0 0.0
    %931 = vmatprep.subr.mxu0 0.0
    %932 = vmatpush1.xpose.msra.mxu0 0.0
    %933 = vmatprep.subr.mxu0 0.0
    %934 = vmatpush1.xpose.msra.mxu0 0.0
    %935 = vmatprep.subr.mxu0 0.0
    %936 = vmatpush1.xpose.msra.mxu0 0.0
    %937 = vmatprep.subr.mxu0 0.0
    %938 = vmatpush1.xpose.msra.mxu0 0.0
    %939 = vmatprep.subr.mxu0 0.0
    %940 = vmatpush1.xpose.msra.mxu0 0.0
    %941 = vmatprep.subr.mxu0 0.0
    %942 = vmatpush1.xpose.msra.mxu0 0.0
    %943 = vmatprep.subr.mxu0 0.0
    %944 = vmatpush1.xpose.msra.mxu0 0.0
    %945 = vmatprep.subr.mxu0 0.0
    %946 = vmatpush1.xpose.msra.mxu0 0.0
    %947 = vmatprep.subr.mxu0 0.0
    %948 = vmatpush1.xpose.msra.mxu0 0.0
    %949 = vmatprep.subr.mxu0 0.0
    %950 = vmatpush1.xpose.msra.mxu0 0.0
    %951 = vmatprep.subr.mxu0 0.0
    %952 = vmatpush1.xpose.msra.mxu0 0.0
    %953 = vmatprep.subr.mxu0 0.0
    %954 = vmatpush1.xpose.msra.mxu0 0.0
    %955 = vmatprep.subr.mxu0 0.0
    %956 = vmatpush1.xpose.msra.mxu0 0.0
    %957 = vmatprep.subr.mxu0 0.0
    %958 = vmatpush1.xpose.msra.mxu0 0.0
    %959 = vmatprep.subr.mxu0 0.0
    %960 = vmatpush1.xpose.msra.mxu0 0.0
    %961 = vmatprep.subr.mxu0 0.0
    %962 = vmatpush1.xpose.msra.mxu0 0.0
    %963 = vmatprep.subr.mxu0 0.0
    %964 = vmatpush1.xpose.msra.mxu0 0.0
    %965 = vmatprep.subr.mxu0 0.0
    %966 = vmatpush1.xpose.msra.mxu0 0.0
    %967 = vmatprep.subr.mxu0 0.0
    %968 = vmatpush1.xpose.msra.mxu0 0.0
    %969 = vmatprep.subr.mxu0 0.0
    %970 = vmatpush1.xpose.msra.mxu0 0.0
    %971 = vmatprep.subr.mxu0 0.0
    %972 = vmatpush1.xpose.msra.mxu0 0.0
    %973 = vmatprep.subr.mxu0 0.0
    %974 = vmatpush1.xpose.msra.mxu0 0.0
    %975 = vmatprep.subr.mxu0 0.0
    %976 = vmatpush1.xpose.msra.mxu0 0.0
    %977 = vmatprep.subr.mxu0 0.0
    %978 = vmatpush1.xpose.msra.mxu0 0.0
    %979 = vmatprep.subr.mxu0 0.0
    %980 = vmatpush1.xpose.msra.mxu0 0.0
    %981 = vmatprep.subr.mxu0 0.0
    %982 = vmatpush1.xpose.msra.mxu0 0.0
    %983 = vmatprep.subr.mxu0 0.0
    %984 = vmatpush1.xpose.msra.mxu0 0.0
    %985 = vmatprep.mubr.f32.mxu0 0.0
    %986 = vmatmul.mubr.f32.gmra.mrb[0].mxu0 %v917
    %v987 = vpop.f32.mrb[0].mxu0
    %v988 = vadd.f32 0.0, %v987
    %v989 = vpop.f32.mrb[0].mxu0
    %990 = vdwg.mxu0
    %991 = vrot.lane.b32.xlu0 %v251, 112
    %v992 = vpop.permute.xlu0 %991
    %993 = vrot.lane.b32.xlu0 %v251, 80
    %v994 = vpop.permute.xlu0 %993
    %v995 = vsel %vm257, %v992, 0
    %v997 = vsel %vm257, %v994, 0
    %999 = vmatprep.subr.mxu0 0.0
    %1000 = vmatpush1.xpose.msra.mxu0 %v997
    %1001 = vmatprep.subr.mxu0 0.0
    %1002 = vmatpush1.xpose.msra.mxu0 0.0
    %1003 = vmatprep.subr.mxu0 0.0
    %1004 = vmatpush1.xpose.msra.mxu0 0.0
    %1005 = vmatprep.subr.mxu0 0.0
    %1006 = vmatpush1.xpose.msra.mxu0 0.0
    %1007 = vmatprep.subr.mxu0 0.0
    %1008 = vmatpush1.xpose.msra.mxu0 0.0
    %1009 = vmatprep.subr.mxu0 0.0
    %1010 = vmatpush1.xpose.msra.mxu0 0.0
    %1011 = vmatprep.subr.mxu0 0.0
    %1012 = vmatpush1.xpose.msra.mxu0 0.0
    %1013 = vmatprep.subr.mxu0 0.0
    %1014 = vmatpush1.xpose.msra.mxu0 0.0
    %1015 = vmatprep.subr.mxu0 0.0
    %1016 = vmatpush1.xpose.msra.mxu0 0.0
    %1017 = vmatprep.subr.mxu0 0.0
    %1018 = vmatpush1.xpose.msra.mxu0 0.0
    %1019 = vmatprep.subr.mxu0 0.0
    %1020 = vmatpush1.xpose.msra.mxu0 0.0
    %1021 = vmatprep.subr.mxu0 0.0
    %1022 = vmatpush1.xpose.msra.mxu0 0.0
    %1023 = vmatprep.subr.mxu0 0.0
    %1024 = vmatpush1.xpose.msra.mxu0 0.0
    %1025 = vmatprep.subr.mxu0 0.0
    %1026 = vmatpush1.xpose.msra.mxu0 0.0
    %1027 = vmatprep.subr.mxu0 0.0
    %1028 = vmatpush1.xpose.msra.mxu0 0.0
    %1029 = vmatprep.subr.mxu0 0.0
    %1030 = vmatpush1.xpose.msra.mxu0 0.0
    %1031 = vmatprep.subr.mxu0 0.0
    %1032 = vmatpush1.xpose.msra.mxu0 0.0
    %1033 = vmatprep.subr.mxu0 0.0
    %1034 = vmatpush1.xpose.msra.mxu0 0.0
    %1035 = vmatprep.subr.mxu0 0.0
    %1036 = vmatpush1.xpose.msra.mxu0 0.0
    %1037 = vmatprep.subr.mxu0 0.0
    %1038 = vmatpush1.xpose.msra.mxu0 0.0
    %1039 = vmatprep.subr.mxu0 0.0
    %1040 = vmatpush1.xpose.msra.mxu0 0.0
    %1041 = vmatprep.subr.mxu0 0.0
    %1042 = vmatpush1.xpose.msra.mxu0 0.0
    %1043 = vmatprep.subr.mxu0 0.0
    %1044 = vmatpush1.xpose.msra.mxu0 0.0
    %1045 = vmatprep.subr.mxu0 0.0
    %1046 = vmatpush1.xpose.msra.mxu0 0.0
    %1047 = vmatprep.subr.mxu0 0.0
    %1048 = vmatpush1.xpose.msra.mxu0 0.0
    %1049 = vmatprep.subr.mxu0 0.0
    %1050 = vmatpush1.xpose.msra.mxu0 0.0
    %1051 = vmatprep.subr.mxu0 0.0
    %1052 = vmatpush1.xpose.msra.mxu0 0.0
    %1053 = vmatprep.subr.mxu0 0.0
    %1054 = vmatpush1.xpose.msra.mxu0 0.0
    %1055 = vmatprep.subr.mxu0 0.0
    %1056 = vmatpush1.xpose.msra.mxu0 0.0
    %1057 = vmatprep.subr.mxu0 0.0
    %1058 = vmatpush1.xpose.msra.mxu0 0.0
    %1059 = vmatprep.subr.mxu0 0.0
    %1060 = vmatpush1.xpose.msra.mxu0 0.0
    %1061 = vmatprep.subr.mxu0 0.0
    %1062 = vmatpush1.xpose.msra.mxu0 0.0
    %1063 = vmatprep.mubr.f32.mxu0 0.0
    %1064 = vmatmul.mubr.f32.gmra.mrb[0].mxu0 %v995
    %v1065 = vpop.f32.mrb[0].mxu0
    %v1066 = vadd.f32 0.0, %v1065
    %v1067 = vpop.f32.mrb[0].mxu0
    %1068 = vdwg.mxu0
    %v1069 = vsel %vm257, %v988, -inf
    %1070 = vmax.xlane.f32.xlu0 %v1069
    %v1071 = vpop.xlane.xlu0 %1070
    %v1072 = vsel %vm257, %v1066, -inf
    %1073 = vmax.xlane.f32.xlu0 %v1072
    %v1074 = vpop.xlane.xlu0 %1073
    %v1075 = vsub.f32 %v988, %v1071
    %v1076 = vsub.f32 %v1066, %v1074
    %v1077 = vmul.f32 %v1075, 1.442695
    %v1078 = vpow.pop %v1077
    %v1079 = vmul.f32 %v1076, 1.442695
    %v1080 = vpow.pop %v1079
    %v1081 = vsel %vm257, %v1078, 0.0
    %1082 = vadd.xlane.f32.xlu0 %v1081
    %v1083 = vpop.xlane.xlu0 %1082
    %v1084 = vsel %vm257, %v1080, 0.0
    %1085 = vadd.xlane.f32.xlu0 %v1084
    %v1086 = vpop.xlane.xlu0 %1085
    %v1087 = vrcp.pop %v1083
    %v1088 = vrcp.pop %v1086
    %v1089 = vmul.f32 %v1078, %v1087
    %v1090 = vmul.f32 %v1080, %v1088
    %1091 = vrot.lane.b32.xlu0 %v246, 48
    %v1092 = vpop.permute.xlu0 %1091
    %v1095 = vsel %vm257, %v1089, 0
    %1097 = vmatprep.subr.mxu0 0.0
    %1098 = vmatpush1.msra.mxu0 %v1092
    %1099 = vmatprep.subr.mxu0 0.0
    %1100 = vmatpush1.msra.mxu0 0.0
    %1101 = vmatprep.subr.mxu0 0.0
    %1102 = vmatpush1.msra.mxu0 0.0
    %1103 = vmatprep.subr.mxu0 0.0
    %1104 = vmatpush1.msra.mxu0 0.0
    %1105 = vmatprep.subr.mxu0 0.0
    %1106 = vmatpush1.msra.mxu0 0.0
    %1107 = vmatprep.subr.mxu0 0.0
    %1108 = vmatpush1.msra.mxu0 0.0
    %1109 = vmatprep.subr.mxu0 0.0
    %1110 = vmatpush1.msra.mxu0 0.0
    %1111 = vmatprep.subr.mxu0 0.0
    %1112 = vmatpush1.msra.mxu0 0.0
    %1113 = vmatprep.subr.mxu0 0.0
    %1114 = vmatpush1.msra.mxu0 0.0
    %1115 = vmatprep.subr.mxu0 0.0
    %1116 = vmatpush1.msra.mxu0 0.0
    %1117 = vmatprep.subr.mxu0 0.0
    %1118 = vmatpush1.msra.mxu0 0.0
    %1119 = vmatprep.subr.mxu0 0.0
    %1120 = vmatpush1.msra.mxu0 0.0
    %1121 = vmatprep.subr.mxu0 0.0
    %1122 = vmatpush1.msra.mxu0 0.0
    %1123 = vmatprep.subr.mxu0 0.0
    %1124 = vmatpush1.msra.mxu0 0.0
    %1125 = vmatprep.subr.mxu0 0.0
    %1126 = vmatpush1.msra.mxu0 0.0
    %1127 = vmatprep.subr.mxu0 0.0
    %1128 = vmatpush1.msra.mxu0 0.0
    %1129 = vmatprep.subr.mxu0 0.0
    %1130 = vmatpush1.msra.mxu0 0.0
    %1131 = vmatprep.subr.mxu0 0.0
    %1132 = vmatpush1.msra.mxu0 0.0
    %1133 = vmatprep.subr.mxu0 0.0
    %1134 = vmatpush1.msra.mxu0 0.0
    %1135 = vmatprep.subr.mxu0 0.0
    %1136 = vmatpush1.msra.mxu0 0.0
    %1137 = vmatprep.subr.mxu0 0.0
    %1138 = vmatpush1.msra.mxu0 0.0
    %1139 = vmatprep.subr.mxu0 0.0
    %1140 = vmatpush1.msra.mxu0 0.0
    %1141 = vmatprep.subr.mxu0 0.0
    %1142 = vmatpush1.msra.mxu0 0.0
    %1143 = vmatprep.subr.mxu0 0.0
    %1144 = vmatpush1.msra.mxu0 0.0
    %1145 = vmatprep.subr.mxu0 0.0
    %1146 = vmatpush1.msra.mxu0 0.0
    %1147 = vmatprep.subr.mxu0 0.0
    %1148 = vmatpush1.msra.mxu0 0.0
    %1149 = vmatprep.subr.mxu0 0.0
    %1150 = vmatpush1.msra.mxu0 0.0
    %1151 = vmatprep.subr.mxu0 0.0
    %1152 = vmatpush1.msra.mxu0 0.0
    %1153 = vmatprep.subr.mxu0 0.0
    %1154 = vmatpush1.msra.mxu0 0.0
    %1155 = vmatprep.subr.mxu0 0.0
    %1156 = vmatpush1.msra.mxu0 0.0
    %1157 = vmatprep.subr.mxu0 0.0
    %1158 = vmatpush1.msra.mxu0 0.0
    %1159 = vmatprep.subr.mxu0 0.0
    %1160 = vmatpush1.msra.mxu0 0.0
    %1161 = vmatprep.mubr.f32.mxu0 0.0
    %1162 = vmatmul.mubr.f32.gmra.mrb[0].mxu0 %v1095
    %v1163 = vpop.f32.mrb[0].mxu0
    %v1164 = vadd.f32 0.0, %v1163
    %v1165 = vpop.f32.mrb[0].mxu0
    %1166 = vdwg.mxu0
    %1167 = vrot.lane.b32.xlu0 %v251, 48
    %v1168 = vpop.permute.xlu0 %1167
    %v1171 = vsel %vm257, %v1090, 0
    %1173 = vmatprep.subr.mxu0 0.0
    %1174 = vmatpush1.msra.mxu0 %v1168
    %1175 = vmatprep.subr.mxu0 0.0
    %1176 = vmatpush1.msra.mxu0 0.0
    %1177 = vmatprep.subr.mxu0 0.0
    %1178 = vmatpush1.msra.mxu0 0.0
    %1179 = vmatprep.subr.mxu0 0.0
    %1180 = vmatpush1.msra.mxu0 0.0
    %1181 = vmatprep.subr.mxu0 0.0
    %1182 = vmatpush1.msra.mxu0 0.0
    %1183 = vmatprep.subr.mxu0 0.0
    %1184 = vmatpush1.msra.mxu0 0.0
    %1185 = vmatprep.subr.mxu0 0.0
    %1186 = vmatpush1.msra.mxu0 0.0
    %1187 = vmatprep.subr.mxu0 0.0
    %1188 = vmatpush1.msra.mxu0 0.0
    %1189 = vmatprep.subr.mxu0 0.0
    %1190 = vmatpush1.msra.mxu0 0.0
    %1191 = vmatprep.subr.mxu0 0.0
    %1192 = vmatpush1.msra.mxu0 0.0
    %1193 = vmatprep.subr.mxu0 0.0
    %1194 = vmatpush1.msra.mxu0 0.0
    %1195 = vmatprep.subr.mxu0 0.0
    %1196 = vmatpush1.msra.mxu0 0.0
    %1197 = vmatprep.subr.mxu0 0.0
    %1198 = vmatpush1.msra.mxu0 0.0
    %1199 = vmatprep.subr.mxu0 0.0
    %1200 = vmatpush1.msra.mxu0 0.0
    %1201 = vmatprep.subr.mxu0 0.0
    %1202 = vmatpush1.msra.mxu0 0.0
    %1203 = vmatprep.subr.mxu0 0.0
    %1204 = vmatpush1.msra.mxu0 0.0
    %1205 = vmatprep.subr.mxu0 0.0
    %1206 = vmatpush1.msra.mxu0 0.0
    %1207 = vmatprep.subr.mxu0 0.0
    %1208 = vmatpush1.msra.mxu0 0.0
    %1209 = vmatprep.subr.mxu0 0.0
    %1210 = vmatpush1.msra.mxu0 0.0
    %1211 = vmatprep.subr.mxu0 0.0
    %1212 = vmatpush1.msra.mxu0 0.0
    %1213 = vmatprep.subr.mxu0 0.0
    %1214 = vmatpush1.msra.mxu0 0.0
    %1215 = vmatprep.subr.mxu0 0.0
    %1216 = vmatpush1.msra.mxu0 0.0
    %1217 = vmatprep.subr.mxu0 0.0
    %1218 = vmatpush1.msra.mxu0 0.0
    %1219 = vmatprep.subr.mxu0 0.0
    %1220 = vmatpush1.msra.mxu0 0.0
    %1221 = vmatprep.subr.mxu0 0.0
    %1222 = vmatpush1.msra.mxu0 0.0
    %1223 = vmatprep.subr.mxu0 0.0
    %1224 = vmatpush1.msra.mxu0 0.0
    %1225 = vmatprep.subr.mxu0 0.0
    %1226 = vmatpush1.msra.mxu0 0.0
    %1227 = vmatprep.subr.mxu0 0.0
    %1228 = vmatpush1.msra.mxu0 0.0
    %1229 = vmatprep.subr.mxu0 0.0
    %1230 = vmatpush1.msra.mxu0 0.0
    %1231 = vmatprep.subr.mxu0 0.0
    %1232 = vmatpush1.msra.mxu0 0.0
    %1233 = vmatprep.subr.mxu0 0.0
    %1234 = vmatpush1.msra.mxu0 0.0
    %1235 = vmatprep.subr.mxu0 0.0
    %1236 = vmatpush1.msra.mxu0 0.0
    %1237 = vmatprep.mubr.f32.mxu0 0.0
    %1238 = vmatmul.mubr.f32.gmra.mrb[0].mxu0 %v1171
    %v1239 = vpop.f32.mrb[0].mxu0
    %v1240 = vadd.f32 0.0, %v1239
    %v1241 = vpop.f32.mrb[0].mxu0
    %1242 = vdwg.mxu0
    %1243 = vrot.lane.b32.xlu0 %v246, 104
    %v1244 = vpop.permute.xlu0 %1243
    %1245 = vrot.lane.b32.xlu0 %v246, 72
    %v1246 = vpop.permute.xlu0 %1245
    %v1247 = vsel %vm257, %v1244, 0
    %v1249 = vsel %vm257, %v1246, 0
    %1251 = vmatprep.subr.mxu0 0.0
    %1252 = vmatpush1.xpose.msra.mxu0 %v1249
    %1253 = vmatprep.subr.mxu0 0.0
    %1254 = vmatpush1.xpose.msra.mxu0 0.0
    %1255 = vmatprep.subr.mxu0 0.0
    %1256 = vmatpush1.xpose.msra.mxu0 0.0
    %1257 = vmatprep.subr.mxu0 0.0
    %1258 = vmatpush1.xpose.msra.mxu0 0.0
    %1259 = vmatprep.subr.mxu0 0.0
    %1260 = vmatpush1.xpose.msra.mxu0 0.0
    %1261 = vmatprep.subr.mxu0 0.0
    %1262 = vmatpush1.xpose.msra.mxu0 0.0
    %1263 = vmatprep.subr.mxu0 0.0
    %1264 = vmatpush1.xpose.msra.mxu0 0.0
    %1265 = vmatprep.subr.mxu0 0.0
    %1266 = vmatpush1.xpose.msra.mxu0 0.0
    %1267 = vmatprep.subr.mxu0 0.0
    %1268 = vmatpush1.xpose.msra.mxu0 0.0
    %1269 = vmatprep.subr.mxu0 0.0
    %1270 = vmatpush1.xpose.msra.mxu0 0.0
    %1271 = vmatprep.subr.mxu0 0.0
    %1272 = vmatpush1.xpose.msra.mxu0 0.0
    %1273 = vmatprep.subr.mxu0 0.0
    %1274 = vmatpush1.xpose.msra.mxu0 0.0
    %1275 = vmatprep.subr.mxu0 0.0
    %1276 = vmatpush1.xpose.msra.mxu0 0.0
    %1277 = vmatprep.subr.mxu0 0.0
    %1278 = vmatpush1.xpose.msra.mxu0 0.0
    %1279 = vmatprep.subr.mxu0 0.0
    %1280 = vmatpush1.xpose.msra.mxu0 0.0
    %1281 = vmatprep.subr.mxu0 0.0
    %1282 = vmatpush1.xpose.msra.mxu0 0.0
    %1283 = vmatprep.subr.mxu0 0.0
    %1284 = vmatpush1.xpose.msra.mxu0 0.0
    %1285 = vmatprep.subr.mxu0 0.0
    %1286 = vmatpush1.xpose.msra.mxu0 0.0
    %1287 = vmatprep.subr.mxu0 0.0
    %1288 = vmatpush1.xpose.msra.mxu0 0.0
    %1289 = vmatprep.subr.mxu0 0.0
    %1290 = vmatpush1.xpose.msra.mxu0 0.0
    %1291 = vmatprep.subr.mxu0 0.0
    %1292 = vmatpush1.xpose.msra.mxu0 0.0
    %1293 = vmatprep.subr.mxu0 0.0
    %1294 = vmatpush1.xpose.msra.mxu0 0.0
    %1295 = vmatprep.subr.mxu0 0.0
    %1296 = vmatpush1.xpose.msra.mxu0 0.0
    %1297 = vmatprep.subr.mxu0 0.0
    %1298 = vmatpush1.xpose.msra.mxu0 0.0
    %1299 = vmatprep.subr.mxu0 0.0
    %1300 = vmatpush1.xpose.msra.mxu0 0.0
    %1301 = vmatprep.subr.mxu0 0.0
    %1302 = vmatpush1.xpose.msra.mxu0 0.0
    %1303 = vmatprep.subr.mxu0 0.0
    %1304 = vmatpush1.xpose.msra.mxu0 0.0
    %1305 = vmatprep.subr.mxu0 0.0
    %1306 = vmatpush1.xpose.msra.mxu0 0.0
    %1307 = vmatprep.subr.mxu0 0.0
    %1308 = vmatpush1.xpose.msra.mxu0 0.0
    %1309 = vmatprep.subr.mxu0 0.0
    %1310 = vmatpush1.xpose.msra.mxu0 0.0
    %1311 = vmatprep.subr.mxu0 0.0
    %1312 = vmatpush1.xpose.msra.mxu0 0.0
    %1313 = vmatprep.subr.mxu0 0.0
    %1314 = vmatpush1.xpose.msra.mxu0 0.0
    %1315 = vmatprep.mubr.f32.mxu0 0.0
    %1316 = vmatmul.mubr.f32.gmra.mrb[0].mxu0 %v1247
    %v1317 = vpop.f32.mrb[0].mxu0
    %v1318 = vadd.f32 0.0, %v1317
    %v1319 = vpop.f32.mrb[0].mxu0
    %1320 = vdwg.mxu0
    %1321 = vrot.lane.b32.xlu0 %v251, 104
    %v1322 = vpop.permute.xlu0 %1321
    %1323 = vrot.lane.b32.xlu0 %v251, 72
    %v1324 = vpop.permute.xlu0 %1323
    %v1325 = vsel %vm257, %v1322, 0
    %v1327 = vsel %vm257, %v1324, 0
    %1329 = vmatprep.subr.mxu0 0.0
    %1330 = vmatpush1.xpose.msra.mxu0 %v1327
    %1331 = vmatprep.subr.mxu0 0.0
    %1332 = vmatpush1.xpose.msra.mxu0 0.0
    %1333 = vmatprep.subr.mxu0 0.0
    %1334 = vmatpush1.xpose.msra.mxu0 0.0
    %1335 = vmatprep.subr.mxu0 0.0
    %1336 = vmatpush1.xpose.msra.mxu0 0.0
    %1337 = vmatprep.subr.mxu0 0.0
    %1338 = vmatpush1.xpose.msra.mxu0 0.0
    %1339 = vmatprep.subr.mxu0 0.0
    %1340 = vmatpush1.xpose.msra.mxu0 0.0
    %1341 = vmatprep.subr.mxu0 0.0
    %1342 = vmatpush1.xpose.msra.mxu0 0.0
    %1343 = vmatprep.subr.mxu0 0.0
    %1344 = vmatpush1.xpose.msra.mxu0 0.0
    %1345 = vmatprep.subr.mxu0 0.0
    %1346 = vmatpush1.xpose.msra.mxu0 0.0
    %1347 = vmatprep.subr.mxu0 0.0
    %1348 = vmatpush1.xpose.msra.mxu0 0.0
    %1349 = vmatprep.subr.mxu0 0.0
    %1350 = vmatpush1.xpose.msra.mxu0 0.0
    %1351 = vmatprep.subr.mxu0 0.0
    %1352 = vmatpush1.xpose.msra.mxu0 0.0
    %1353 = vmatprep.subr.mxu0 0.0
    %1354 = vmatpush1.xpose.msra.mxu0 0.0
    %1355 = vmatprep.subr.mxu0 0.0
    %1356 = vmatpush1.xpose.msra.mxu0 0.0
    %1357 = vmatprep.subr.mxu0 0.0
    %1358 = vmatpush1.xpose.msra.mxu0 0.0
    %1359 = vmatprep.subr.mxu0 0.0
    %1360 = vmatpush1.xpose.msra.mxu0 0.0
    %1361 = vmatprep.subr.mxu0 0.0
    %1362 = vmatpush1.xpose.msra.mxu0 0.0
    %1363 = vmatprep.subr.mxu0 0.0
    %1364 = vmatpush1.xpose.msra.mxu0 0.0
    %1365 = vmatprep.subr.mxu0 0.0
    %1366 = vmatpush1.xpose.msra.mxu0 0.0
    %1367 = vmatprep.subr.mxu0 0.0
    %1368 = vmatpush1.xpose.msra.mxu0 0.0
    %1369 = vmatprep.subr.mxu0 0.0
    %1370 = vmatpush1.xpose.msra.mxu0 0.0
    %1371 = vmatprep.subr.mxu0 0.0
    %1372 = vmatpush1.xpose.msra.mxu0 0.0
    %1373 = vmatprep.subr.mxu0 0.0
    %1374 = vmatpush1.xpose.msra.mxu0 0.0
    %1375 = vmatprep.subr.mxu0 0.0
    %1376 = vmatpush1.xpose.msra.mxu0 0.0
    %1377 = vmatprep.subr.mxu0 0.0
    %1378 = vmatpush1.xpose.msra.mxu0 0.0
    %1379 = vmatprep.subr.mxu0 0.0
    %1380 = vmatpush1.xpose.msra.mxu0 0.0
    %1381 = vmatprep.subr.mxu0 0.0
    %1382 = vmatpush1.xpose.msra.mxu0 0.0
    %1383 = vmatprep.subr.mxu0 0.0
    %1384 = vmatpush1.xpose.msra.mxu0 0.0
    %1385 = vmatprep.subr.mxu0 0.0
    %1386 = vmatpush1.xpose.msra.mxu0 0.0
    %1387 = vmatprep.subr.mxu0 0.0
    %1388 = vmatpush1.xpose.msra.mxu0 0.0
    %1389 = vmatprep.subr.mxu0 0.0
    %1390 = vmatpush1.xpose.msra.mxu0 0.0
    %1391 = vmatprep.subr.mxu0 0.0
    %1392 = vmatpush1.xpose.msra.mxu0 0.0
    %1393 = vmatprep.mubr.f32.mxu0 0.0
    %1394 = vmatmul.mubr.f32.gmra.mrb[0].mxu0 %v1325
    %v1395 = vpop.f32.mrb[0].mxu0
    %v1396 = vadd.f32 0.0, %v1395
    %v1397 = vpop.f32.mrb[0].mxu0
    %1398 = vdwg.mxu0
    %v1399 = vsel %vm257, %v1318, -inf
    %1400 = vmax.xlane.f32.xlu0 %v1399
    %v1401 = vpop.xlane.xlu0 %1400
    %v1402 = vsel %vm257, %v1396, -inf
    %1403 = vmax.xlane.f32.xlu0 %v1402
    %v1404 = vpop.xlane.xlu0 %1403
    %v1405 = vsub.f32 %v1318, %v1401
    %v1406 = vsub.f32 %v1396, %v1404
    %v1407 = vmul.f32 %v1405, 1.442695
    %v1408 = vpow.pop %v1407
    %v1409 = vmul.f32 %v1406, 1.442695
    %v1410 = vpow.pop %v1409
    %v1411 = vsel %vm257, %v1408, 0.0
    %1412 = vadd.xlane.f32.xlu0 %v1411
    %v1413 = vpop.xlane.xlu0 %1412
    %v1414 = vsel %vm257, %v1410, 0.0
    %1415 = vadd.xlane.f32.xlu0 %v1414
    %v1416 = vpop.xlane.xlu0 %1415
    %v1417 = vrcp.pop %v1413
    %v1418 = vrcp.pop %v1416
    %v1419 = vmul.f32 %v1408, %v1417
    %v1420 = vmul.f32 %v1410, %v1418
    %1421 = vrot.lane.b32.xlu0 %v246, 40
    %v1422 = vpop.permute.xlu0 %1421
    %v1425 = vsel %vm257, %v1419, 0
    %1427 = vmatprep.subr.mxu0 0.0
    %1428 = vmatpush1.msra.mxu0 %v1422
    %1429 = vmatprep.subr.mxu0 0.0
    %1430 = vmatpush1.msra.mxu0 0.0
    %1431 = vmatprep.subr.mxu0 0.0
    %1432 = vmatpush1.msra.mxu0 0.0
    %1433 = vmatprep.subr.mxu0 0.0
    %1434 = vmatpush1.msra.mxu0 0.0
    %1435 = vmatprep.subr.mxu0 0.0
    %1436 = vmatpush1.msra.mxu0 0.0
    %1437 = vmatprep.subr.mxu0 0.0
    %1438 = vmatpush1.msra.mxu0 0.0
    %1439 = vmatprep.subr.mxu0 0.0
    %1440 = vmatpush1.msra.mxu0 0.0
    %1441 = vmatprep.subr.mxu0 0.0
    %1442 = vmatpush1.msra.mxu0 0.0
    %1443 = vmatprep.subr.mxu0 0.0
    %1444 = vmatpush1.msra.mxu0 0.0
    %1445 = vmatprep.subr.mxu0 0.0
    %1446 = vmatpush1.msra.mxu0 0.0
    %1447 = vmatprep.subr.mxu0 0.0
    %1448 = vmatpush1.msra.mxu0 0.0
    %1449 = vmatprep.subr.mxu0 0.0
    %1450 = vmatpush1.msra.mxu0 0.0
    %1451 = vmatprep.subr.mxu0 0.0
    %1452 = vmatpush1.msra.mxu0 0.0
    %1453 = vmatprep.subr.mxu0 0.0
    %1454 = vmatpush1.msra.mxu0 0.0
    %1455 = vmatprep.subr.mxu0 0.0
    %1456 = vmatpush1.msra.mxu0 0.0
    %1457 = vmatprep.subr.mxu0 0.0
    %1458 = vmatpush1.msra.mxu0 0.0
    %1459 = vmatprep.subr.mxu0 0.0
    %1460 = vmatpush1.msra.mxu0 0.0
    %1461 = vmatprep.subr.mxu0 0.0
    %1462 = vmatpush1.msra.mxu0 0.0
    %1463 = vmatprep.subr.mxu0 0.0
    %1464 = vmatpush1.msra.mxu0 0.0
    %1465 = vmatprep.subr.mxu0 0.0
    %1466 = vmatpush1.msra.mxu0 0.0
    %1467 = vmatprep.subr.mxu0 0.0
    %1468 = vmatpush1.msra.mxu0 0.0
    %1469 = vmatprep.subr.mxu0 0.0
    %1470 = vmatpush1.msra.mxu0 0.0
    %1471 = vmatprep.subr.mxu0 0.0
    %1472 = vmatpush1.msra.mxu0 0.0
    %1473 = vmatprep.subr.mxu0 0.0
    %1474 = vmatpush1.msra.mxu0 0.0
    %1475 = vmatprep.subr.mxu0 0.0
    %1476 = vmatpush1.msra.mxu0 0.0
    %1477 = vmatprep.subr.mxu0 0.0
    %1478 = vmatpush1.msra.mxu0 0.0
    %1479 = vmatprep.subr.mxu0 0.0
    %1480 = vmatpush1.msra.mxu0 0.0
    %1481 = vmatprep.subr.mxu0 0.0
    %1482 = vmatpush1.msra.mxu0 0.0
    %1483 = vmatprep.subr.mxu0 0.0
    %1484 = vmatpush1.msra.mxu0 0.0
    %1485 = vmatprep.subr.mxu0 0.0
    %1486 = vmatpush1.msra.mxu0 0.0
    %1487 = vmatprep.subr.mxu0 0.0
    %1488 = vmatpush1.msra.mxu0 0.0
    %1489 = vmatprep.subr.mxu0 0.0
    %1490 = vmatpush1.msra.mxu0 0.0
    %1491 = vmatprep.mubr.f32.mxu0 0.0
    %1492 = vmatmul.mubr.f32.gmra.mrb[0].mxu0 %v1425
    %v1493 = vpop.f32.mrb[0].mxu0
    %v1494 = vadd.f32 0.0, %v1493
    %v1495 = vpop.f32.mrb[0].mxu0
    %1496 = vdwg.mxu0
    %1497 = vrot.lane.b32.xlu0 %v251, 40
    %v1498 = vpop.permute.xlu0 %1497
    %v1501 = vsel %vm257, %v1420, 0
    %1503 = vmatprep.subr.mxu0 0.0
    %1504 = vmatpush1.msra.mxu0 %v1498
    %1505 = vmatprep.subr.mxu0 0.0
    %1506 = vmatpush1.msra.mxu0 0.0
    %1507 = vmatprep.subr.mxu0 0.0
    %1508 = vmatpush1.msra.mxu0 0.0
    %1509 = vmatprep.subr.mxu0 0.0
    %1510 = vmatpush1.msra.mxu0 0.0
    %1511 = vmatprep.subr.mxu0 0.0
    %1512 = vmatpush1.msra.mxu0 0.0
    %1513 = vmatprep.subr.mxu0 0.0
    %1514 = vmatpush1.msra.mxu0 0.0
    %1515 = vmatprep.subr.mxu0 0.0
    %1516 = vmatpush1.msra.mxu0 0.0
    %1517 = vmatprep.subr.mxu0 0.0
    %1518 = vmatpush1.msra.mxu0 0.0
    %1519 = vmatprep.subr.mxu0 0.0
    %1520 = vmatpush1.msra.mxu0 0.0
    %1521 = vmatprep.subr.mxu0 0.0
    %1522 = vmatpush1.msra.mxu0 0.0
    %1523 = vmatprep.subr.mxu0 0.0
    %1524 = vmatpush1.msra.mxu0 0.0
    %1525 = vmatprep.subr.mxu0 0.0
    %1526 = vmatpush1.msra.mxu0 0.0
    %1527 = vmatprep.subr.mxu0 0.0
    %1528 = vmatpush1.msra.mxu0 0.0
    %1529 = vmatprep.subr.mxu0 0.0
    %1530 = vmatpush1.msra.mxu0 0.0
    %1531 = vmatprep.subr.mxu0 0.0
    %1532 = vmatpush1.msra.mxu0 0.0
    %1533 = vmatprep.subr.mxu0 0.0
    %1534 = vmatpush1.msra.mxu0 0.0
    %1535 = vmatprep.subr.mxu0 0.0
    %1536 = vmatpush1.msra.mxu0 0.0
    %1537 = vmatprep.subr.mxu0 0.0
    %1538 = vmatpush1.msra.mxu0 0.0
    %1539 = vmatprep.subr.mxu0 0.0
    %1540 = vmatpush1.msra.mxu0 0.0
    %1541 = vmatprep.subr.mxu0 0.0
    %1542 = vmatpush1.msra.mxu0 0.0
    %1543 = vmatprep.subr.mxu0 0.0
    %1544 = vmatpush1.msra.mxu0 0.0
    %1545 = vmatprep.subr.mxu0 0.0
    %1546 = vmatpush1.msra.mxu0 0.0
    %1547 = vmatprep.subr.mxu0 0.0
    %1548 = vmatpush1.msra.mxu0 0.0
    %1549 = vmatprep.subr.mxu0 0.0
    %1550 = vmatpush1.msra.mxu0 0.0
    %1551 = vmatprep.subr.mxu0 0.0
    %1552 = vmatpush1.msra.mxu0 0.0
    %1553 = vmatprep.subr.mxu0 0.0
    %1554 = vmatpush1.msra.mxu0 0.0
    %1555 = vmatprep.subr.mxu0 0.0
    %1556 = vmatpush1.msra.mxu0 0.0
    %1557 = vmatprep.subr.mxu0 0.0
    %1558 = vmatpush1.msra.mxu0 0.0
    %1559 = vmatprep.subr.mxu0 0.0
    %1560 = vmatpush1.msra.mxu0 0.0
    %1561 = vmatprep.subr.mxu0 0.0
    %1562 = vmatpush1.msra.mxu0 0.0
    %1563 = vmatprep.subr.mxu0 0.0
    %1564 = vmatpush1.msra.mxu0 0.0
    %1565 = vmatprep.subr.mxu0 0.0
    %1566 = vmatpush1.msra.mxu0 0.0
    %1567 = vmatprep.mubr.f32.mxu0 0.0
    %1568 = vmatmul.mubr.f32.gmra.mrb[0].mxu0 %v1501
    %v1569 = vpop.f32.mrb[0].mxu0
    %v1570 = vadd.f32 0.0, %v1569
    %v1571 = vpop.f32.mrb[0].mxu0
    %1572 = vdwg.mxu0
    %1575 = vrot.lane.b32.xlu0 %v834, 8
    %v1576 = vpop.permute.xlu0 %1575
    %1577 = vrot.lane.b32.xlu0 %v910, 8
    %v1578 = vpop.permute.xlu0 %1577
    %1583 = vrot.lane.b32.xlu0 %v1164, 16
    %v1584 = vpop.permute.xlu0 %1583
    %1585 = vrot.lane.b32.xlu0 %v1240, 16
    %v1586 = vpop.permute.xlu0 %1585
    %1591 = vrot.lane.b32.xlu0 %v1494, 24
    %v1592 = vpop.permute.xlu0 %1591
    %1593 = vrot.lane.b32.xlu0 %v1570, 24
    %v1594 = vpop.permute.xlu0 %1593
    %v1597 = vsel %vm257, %v504, %v1576
    %v1598 = vsel %vm257, %v580, %v1578
    %v1599 = vsel %vm46, %v1597, %v1584
    %v1600 = vsel %vm46, %v1598, %v1586
    %vm1601 = vcmask 195584
    %v1602 = vsel %vm1601, %v1599, %v1592
    %v1603 = vsel %vm1601, %v1600, %v1594
    %v1604 = vld [vmem:[%s5] sm:$0xff]
    %v1605 = vld [vmem:[%s5 + $0x8] sm:$0xff]
    %v1606 = vld [vmem:[%s5 + $0x10] sm:$0xff]
    %v1607 = vld [vmem:[%s5 + $0x18] sm:$0xff]
    %v1609 = vsel %vm128, %v1602, 0
    %v1612 = vsel %vm128, %v1603, 0
    %1614 = vmatprep.subr.mxu0 0.0
    %1615 = vmatpush1.msra.mxu0 %v1604
    %1616 = vmatprep.subr.mxu0 0.0
    %1617 = vmatpush1.msra.mxu0 %v1605
    %1618 = vmatprep.subr.mxu0 0.0
    %1619 = vmatpush1.msra.mxu0 %v1606
    %1620 = vmatprep.subr.mxu0 0.0
    %1621 = vmatpush1.msra.mxu0 %v1607
    %1622 = vmatprep.subr.mxu0 0.0
    %1623 = vmatpush1.msra.mxu0 0.0
    %1624 = vmatprep.subr.mxu0 0.0
    %1625 = vmatpush1.msra.mxu0 0.0
    %1626 = vmatprep.subr.mxu0 0.0
    %1627 = vmatpush1.msra.mxu0 0.0
    %1628 = vmatprep.subr.mxu0 0.0
    %1629 = vmatpush1.msra.mxu0 0.0
    %1630 = vmatprep.subr.mxu0 0.0
    %1631 = vmatpush1.msra.mxu0 0.0
    %1632 = vmatprep.subr.mxu0 0.0
    %1633 = vmatpush1.msra.mxu0 0.0
    %1634 = vmatprep.subr.mxu0 0.0
    %1635 = vmatpush1.msra.mxu0 0.0
    %1636 = vmatprep.subr.mxu0 0.0
    %1637 = vmatpush1.msra.mxu0 0.0
    %1638 = vmatprep.subr.mxu0 0.0
    %1639 = vmatpush1.msra.mxu0 0.0
    %1640 = vmatprep.subr.mxu0 0.0
    %1641 = vmatpush1.msra.mxu0 0.0
    %1642 = vmatprep.subr.mxu0 0.0
    %1643 = vmatpush1.msra.mxu0 0.0
    %1644 = vmatprep.subr.mxu0 0.0
    %1645 = vmatpush1.msra.mxu0 0.0
    %1646 = vmatprep.subr.mxu0 0.0
    %1647 = vmatpush1.msra.mxu0 0.0
    %1648 = vmatprep.subr.mxu0 0.0
    %1649 = vmatpush1.msra.mxu0 0.0
    %1650 = vmatprep.subr.mxu0 0.0
    %1651 = vmatpush1.msra.mxu0 0.0
    %1652 = vmatprep.subr.mxu0 0.0
    %1653 = vmatpush1.msra.mxu0 0.0
    %1654 = vmatprep.subr.mxu0 0.0
    %1655 = vmatpush1.msra.mxu0 0.0
    %1656 = vmatprep.subr.mxu0 0.0
    %1657 = vmatpush1.msra.mxu0 0.0
    %1658 = vmatprep.subr.mxu0 0.0
    %1659 = vmatpush1.msra.mxu0 0.0
    %1660 = vmatprep.subr.mxu0 0.0
    %1661 = vmatpush1.msra.mxu0 0.0
    %1662 = vmatprep.subr.mxu0 0.0
    %1663 = vmatpush1.msra.mxu0 0.0
    %1664 = vmatprep.subr.mxu0 0.0
    %1665 = vmatpush1.msra.mxu0 0.0
    %1666 = vmatprep.subr.mxu0 0.0
    %1667 = vmatpush1.msra.mxu0 0.0
    %1668 = vmatprep.subr.mxu0 0.0
    %1669 = vmatpush1.msra.mxu0 0.0
    %1670 = vmatprep.subr.mxu0 0.0
    %1671 = vmatpush1.msra.mxu0 0.0
    %1672 = vmatprep.subr.mxu0 0.0
    %1673 = vmatpush1.msra.mxu0 0.0
    %1674 = vmatprep.subr.mxu0 0.0
    %1675 = vmatpush1.msra.mxu0 0.0
    %1676 = vmatprep.subr.mxu0 0.0
    %1677 = vmatpush1.msra.mxu0 0.0
    %1678 = vmatprep.mubr.f32.mxu0 0.0
    %1679 = vmatmul.mubr.f32.gmra.mrb[0].mxu0 %v1609
    %v1680 = vpop.f32.mrb[0].mxu0
    %v1681 = vadd.f32 %v166, %v1680
    %v1682 = vpop.f32.mrb[0].mxu0
    %1683 = vmatprep.mubr.f32.mxu0 0.0
    %1684 = vmatmul.mubr.f32.gmra.mrb[0].mxu0 %v1612
    %v1685 = vpop.f32.mrb[0].mxu0
    %v1686 = vadd.f32 %v167, %v1685
    %v1687 = vpop.f32.mrb[0].mxu0
    %1688 = vdwg.mxu0
    %v1689 = vsel %vm128, %v1681, 0.0
    %1690 = vadd.xlane.f32.xlu0 %v1689
    %v1691 = vpop.xlane.xlu0 %1690
    %v1692 = vsel %vm128, %v1686, 0.0
    %1693 = vadd.xlane.f32.xlu0 %v1692
    %v1694 = vpop.xlane.xlu0 %1693
    %v1695 = vmul.f32 %v1691, %v135
    %v1696 = vmul.f32 %v1694, %v135
    %v1697 = vsub.f32 %v1681, %v1695
    %v1698 = vsub.f32 %v1686, %v1696
    %v1699 = vmul.f32 %v1697, %v1697
    %v1700 = vmul.f32 %v1698, %v1698
    %v1701 = vsel %vm128, %v1699, 0.0
    %1702 = vadd.xlane.f32.xlu0 %v1701
    %v1703 = vpop.xlane.xlu0 %1702
    %v1704 = vsel %vm128, %v1700, 0.0
    %1705 = vadd.xlane.f32.xlu0 %v1704
    %v1706 = vpop.xlane.xlu0 %1705
    %v1707 = vmul.f32 %v1703, %v135
    %v1708 = vmul.f32 %v1706, %v135
    %v1709 = vadd.f32 %v1707, 1e-06
    %v1710 = vadd.f32 %v1708, 1e-06
    %v1711 = vrsqrt.pop %v1709
    %v1712 = vrsqrt.pop %v1710
    %v1713 = vmul.f32 %v1697, %v1711
    %v1714 = vmul.f32 %v1698, %v1712
    %v1715 = vlaneseq
    %v1716 = vshrl.u32 %v1715, 7
    %v1717 = vsub.s32 0, %v1716
    %v1718 = vrot.slane %v168, %v1717
    %v1719 = vmul.f32 %v1713, %v1718
    %v1720 = vmul.f32 %v1714, %v1718
    %v1721 = vlaneseq
    %v1722 = vshrl.u32 %v1721, 7
    %v1723 = vsub.s32 1, %v1722
    %v1724 = vrot.slane %v168, %v1723
    %v1725 = vadd.f32 %v1719, %v1724
    %v1726 = vadd.f32 %v1720, %v1724
    %v1727 = vld [vmem:[%s6] sm:$0xff]
    %v1728 = vld [vmem:[%s6 + $0x8] sm:$0xff]
    %v1729 = vld [vmem:[%s6 + $0x10] sm:$0xff]
    %v1730 = vld [vmem:[%s6 + $0x18] sm:$0xff]
    %v1731 = vld [vmem:[%s7] sm:$0x1]
    %v1733 = vlaneseq
    %v1734 = vshrl.u32 %v1733, 7
    %v1735 = vsub.s32 0, %v1734
    %v1736 = vrot.slane %v1731, %v1735
    %v1739 = vsel %vm128, %v1725, 0
    %v1742 = vsel %vm128, %v1726, 0
    %1744 = vmatprep.subr.mxu0 0.0
    %1745 = vmatpush1.msra.mxu0 %v1727
    %1746 = vmatprep.subr.mxu0 0.0
    %1747 = vmatpush1.msra.mxu0 %v1728
    %1748 = vmatprep.subr.mxu0 0.0
    %1749 = vmatpush1.msra.mxu0 %v1729
    %1750 = vmatprep.subr.mxu0 0.0
    %1751 = vmatpush1.msra.mxu0 %v1730
    %1752 = vmatprep.subr.mxu0 0.0
    %1753 = vmatpush1.msra.mxu0 0.0
    %1754 = vmatprep.subr.mxu0 0.0
    %1755 = vmatpush1.msra.mxu0 0.0
    %1756 = vmatprep.subr.mxu0 0.0
    %1757 = vmatpush1.msra.mxu0 0.0
    %1758 = vmatprep.subr.mxu0 0.0
    %1759 = vmatpush1.msra.mxu0 0.0
    %1760 = vmatprep.subr.mxu0 0.0
    %1761 = vmatpush1.msra.mxu0 0.0
    %1762 = vmatprep.subr.mxu0 0.0
    %1763 = vmatpush1.msra.mxu0 0.0
    %1764 = vmatprep.subr.mxu0 0.0
    %1765 = vmatpush1.msra.mxu0 0.0
    %1766 = vmatprep.subr.mxu0 0.0
    %1767 = vmatpush1.msra.mxu0 0.0
    %1768 = vmatprep.subr.mxu0 0.0
    %1769 = vmatpush1.msra.mxu0 0.0
    %1770 = vmatprep.subr.mxu0 0.0
    %1771 = vmatpush1.msra.mxu0 0.0
    %1772 = vmatprep.subr.mxu0 0.0
    %1773 = vmatpush1.msra.mxu0 0.0
    %1774 = vmatprep.subr.mxu0 0.0
    %1775 = vmatpush1.msra.mxu0 0.0
    %1776 = vmatprep.subr.mxu0 0.0
    %1777 = vmatpush1.msra.mxu0 0.0
    %1778 = vmatprep.subr.mxu0 0.0
    %1779 = vmatpush1.msra.mxu0 0.0
    %1780 = vmatprep.subr.mxu0 0.0
    %1781 = vmatpush1.msra.mxu0 0.0
    %1782 = vmatprep.subr.mxu0 0.0
    %1783 = vmatpush1.msra.mxu0 0.0
    %1784 = vmatprep.subr.mxu0 0.0
    %1785 = vmatpush1.msra.mxu0 0.0
    %1786 = vmatprep.subr.mxu0 0.0
    %1787 = vmatpush1.msra.mxu0 0.0
    %1788 = vmatprep.subr.mxu0 0.0
    %1789 = vmatpush1.msra.mxu0 0.0
    %1790 = vmatprep.subr.mxu0 0.0
    %1791 = vmatpush1.msra.mxu0 0.0
    %1792 = vmatprep.subr.mxu0 0.0
    %1793 = vmatpush1.msra.mxu0 0.0
    %1794 = vmatprep.subr.mxu0 0.0
    %1795 = vmatpush1.msra.mxu0 0.0
    %1796 = vmatprep.subr.mxu0 0.0
    %1797 = vmatpush1.msra.mxu0 0.0
    %1798 = vmatprep.subr.mxu0 0.0
    %1799 = vmatpush1.msra.mxu0 0.0
    %1800 = vmatprep.subr.mxu0 0.0
    %1801 = vmatpush1.msra.mxu0 0.0
    %1802 = vmatprep.subr.mxu0 0.0
    %1803 = vmatpush1.msra.mxu0 0.0
    %1804 = vmatprep.subr.mxu0 0.0
    %1805 = vmatpush1.msra.mxu0 0.0
    %1806 = vmatprep.subr.mxu0 0.0
    %1807 = vmatpush1.msra.mxu0 0.0
    %1808 = vmatprep.mubr.f32.mxu0 0.0
    %1809 = vmatmul.mubr.f32.gmra.mrb[0].mxu0 %v1739
    %v1810 = vpop.f32.mrb[0].mxu0
    %v1811 = vadd.f32 %v1736, %v1810
    %v1812 = vpop.f32.mrb[0].mxu0
    %1813 = vmatprep.mubr.f32.mxu0 0.0
    %1814 = vmatmul.mubr.f32.gmra.mrb[0].mxu0 %v1742
    %v1815 = vpop.f32.mrb[0].mxu0
    %v1816 = vadd.f32 %v1736, %v1815
    %v1817 = vpop.f32.mrb[0].mxu0
    %1818 = vdwg.mxu0
    %v1819 = vmax.f32 %v1811, 0.0
    %v1820 = vmax.f32 %v1816, 0.0
    %v1821 = vld [vmem:[%s8] sm:$0xff]
    %v1822 = vld [vmem:[%s8 + $0x8] sm:$0xff]
    %v1823 = vld [vmem:[%s8 + $0x10] sm:$0xff]
    %v1824 = vld [vmem:[%s8 + $0x18] sm:$0xff]
    %v1825 = vld [vmem:[%s8 + $0x20] sm:$0xff]
    %v1826 = vld [vmem:[%s8 + $0x28] sm:$0xff]
    %v1827 = vld [vmem:[%s8 + $0x30] sm:$0xff]
    %v1828 = vld [vmem:[%s8 + $0x38] sm:$0xff]
    %v1829 = vld [vmem:[%s8 + $0x40] sm:$0xff]
    %v1830 = vld [vmem:[%s8 + $0x48] sm:$0xff]
    %v1831 = vld [vmem:[%s8 + $0x50] sm:$0xff]
    %v1832 = vld [vmem:[%s8 + $0x58] sm:$0xff]
    %v1833 = vld [vmem:[%s8 + $0x60] sm:$0xff]
    %v1834 = vld [vmem:[%s8 + $0x68] sm:$0xff]
    %v1835 = vld [vmem:[%s8 + $0x70] sm:$0xff]
    %v1836 = vld [vmem:[%s8 + $0x78] sm:$0xff]
    %v1837 = vlaneseq
    %v1838 = vshrl.u32 %v1837, 7
    %v1839 = vsub.s32 2, %v1838
    %v1840 = vrot.slane %v168, %v1839
    %1841 = vmatprep.subr.mxu0 0.0
    %1842 = vmatpush1.msra.mxu0 %v1821
    %1843 = vmatprep.subr.mxu0 0.0
    %1844 = vmatpush1.msra.mxu0 %v1822
    %1845 = vmatprep.subr.mxu0 0.0
    %1846 = vmatpush1.msra.mxu0 %v1823
    %1847 = vmatprep.subr.mxu0 0.0
    %1848 = vmatpush1.msra.mxu0 %v1824
    %1849 = vmatprep.subr.mxu0 0.0
    %1850 = vmatpush1.msra.mxu0 %v1825
    %1851 = vmatprep.subr.mxu0 0.0
    %1852 = vmatpush1.msra.mxu0 %v1826
    %1853 = vmatprep.subr.mxu0 0.0
    %1854 = vmatpush1.msra.mxu0 %v1827
    %1855 = vmatprep.subr.mxu0 0.0
    %1856 = vmatpush1.msra.mxu0 %v1828
    %1857 = vmatprep.subr.mxu0 0.0
    %1858 = vmatpush1.msra.mxu0 %v1829
    %1859 = vmatprep.subr.mxu0 0.0
    %1860 = vmatpush1.msra.mxu0 %v1830
    %1861 = vmatprep.subr.mxu0 0.0
    %1862 = vmatpush1.msra.mxu0 %v1831
    %1863 = vmatprep.subr.mxu0 0.0
    %1864 = vmatpush1.msra.mxu0 %v1832
    %1865 = vmatprep.subr.mxu0 0.0
    %1866 = vmatpush1.msra.mxu0 %v1833
    %1867 = vmatprep.subr.mxu0 0.0
    %1868 = vmatpush1.msra.mxu0 %v1834
    %1869 = vmatprep.subr.mxu0 0.0
    %1870 = vmatpush1.msra.mxu0 %v1835
    %1871 = vmatprep.subr.mxu0 0.0
    %1872 = vmatpush1.msra.mxu0 %v1836
    %1873 = vmatprep.subr.mxu0 0.0
    %1874 = vmatpush1.msra.mxu0 0.0
    %1875 = vmatprep.subr.mxu0 0.0
    %1876 = vmatpush1.msra.mxu0 0.0
    %1877 = vmatprep.subr.mxu0 0.0
    %1878 = vmatpush1.msra.mxu0 0.0
    %1879 = vmatprep.subr.mxu0 0.0
    %1880 = vmatpush1.msra.mxu0 0.0
    %1881 = vmatprep.subr.mxu0 0.0
    %1882 = vmatpush1.msra.mxu0 0.0
    %1883 = vmatprep.subr.mxu0 0.0
    %1884 = vmatpush1.msra.mxu0 0.0
    %1885 = vmatprep.subr.mxu0 0.0
    %1886 = vmatpush1.msra.mxu0 0.0
    %1887 = vmatprep.subr.mxu0 0.0
    %1888 = vmatpush1.msra.mxu0 0.0
    %1889 = vmatprep.subr.mxu0 0.0
    %1890 = vmatpush1.msra.mxu0 0.0
    %1891 = vmatprep.subr.mxu0 0.0
    %1892 = vmatpush1.msra.mxu0 0.0
    %1893 = vmatprep.subr.mxu0 0.0
    %1894 = vmatpush1.msra.mxu0 0.0
    %1895 = vmatprep.subr.mxu0 0.0
    %1896 = vmatpush1.msra.mxu0 0.0
    %1897 = vmatprep.subr.mxu0 0.0
    %1898 = vmatpush1.msra.mxu0 0.0
    %1899 = vmatprep.subr.mxu0 0.0
    %1900 = vmatpush1.msra.mxu0 0.0
    %1901 = vmatprep.subr.mxu0 0.0
    %1902 = vmatpush1.msra.mxu0 0.0
    %1903 = vmatprep.subr.mxu0 0.0
    %1904 = vmatpush1.msra.mxu0 0.0
    %1905 = vmatprep.mubr.f32.mxu0 0.0
    %1906 = vmatmul.mubr.f32.gmra.mrb[0].mxu0 %v1819
    %v1907 = vpop.f32.mrb[0].mxu0
    %v1908 = vadd.f32 %v1840, %v1907
    %v1909 = vpop.f32.mrb[0].mxu0
    %1910 = vmatprep.mubr.f32.mxu0 0.0
    %1911 = vmatmul.mubr.f32.gmra.mrb[0].mxu0 %v1820
    %v1912 = vpop.f32.mrb[0].mxu0
    %v1913 = vadd.f32 %v1840, %v1912
    %v1914 = vpop.f32.mrb[0].mxu0
    %1915 = vdwg.mxu0
    %v1916 = vadd.f32 %v1908, %v1725
    %v1917 = vadd.f32 %v1913, %v1726
    %v1918 = vsel %vm128, %v1916, 0.0
    %1919 = vadd.xlane.f32.xlu0 %v1918
    %v1920 = vpop.xlane.xlu0 %1919
    %v1921 = vsel %vm128, %v1917, 0.0
    %1922 = vadd.xlane.f32.xlu0 %v1921
    %v1923 = vpop.xlane.xlu0 %1922
    %v1924 = vmul.f32 %v1920, %v135
    %v1925 = vmul.f32 %v1923, %v135
    %v1926 = vsub.f32 %v1916, %v1924
    %v1927 = vsub.f32 %v1917, %v1925
    %v1928 = vmul.f32 %v1926, %v1926
    %v1929 = vmul.f32 %v1927, %v1927
    %v1930 = vsel %vm128, %v1928, 0.0
    %1931 = vadd.xlane.f32.xlu0 %v1930
    %v1932 = vpop.xlane.xlu0 %1931
    %v1933 = vsel %vm128, %v1929, 0.0
    %1934 = vadd.xlane.f32.xlu0 %v1933
    %v1935 = vpop.xlane.xlu0 %1934
    %v1936 = vmul.f32 %v1932, %v135
    %v1937 = vmul.f32 %v1935, %v135
    %v1938 = vadd.f32 %v1936, 1e-06
    %v1939 = vadd.f32 %v1937, 1e-06
    %v1940 = vrsqrt.pop %v1938
    %v1941 = vrsqrt.pop %v1939
    %v1942 = vmul.f32 %v1926, %v1940
    %v1943 = vmul.f32 %v1927, %v1941
    %v1944 = vlaneseq
    %v1945 = vshrl.u32 %v1944, 7
    %v1946 = vsub.s32 3, %v1945
    %v1947 = vrot.slane %v168, %v1946
    %v1948 = vmul.f32 %v1942, %v1947
    %v1949 = vmul.f32 %v1943, %v1947
    %v1950 = vlaneseq
    %v1951 = vshrl.u32 %v1950, 7
    %v1952 = vsub.s32 4, %v1951
    %v1953 = vrot.slane %v168, %v1952
    %v1954 = vadd.f32 %v1948, %v1953
    %v1955 = vadd.f32 %v1949, %v1953
    %s1956 = scalar_lea.vmem %s9, 8
    %v1957 = vld [vmem:[%s1956] sm:$0x1f]
    %s1958 = scalar_lea.vmem %s4, 32
    %v1959 = vld [vmem:[%s1958] sm:$0xff]
    %v1960 = vld [vmem:[%s1958 + $0x8] sm:$0xff]
    %v1961 = vld [vmem:[%s1958 + $0x10] sm:$0xff]
    %v1962 = vld [vmem:[%s1958 + $0x18] sm:$0xff]
    %v1964 = vsel %vm128, %v1954, 0
    %v1967 = vsel %vm128, %v1955, 0
    %1969 = vmatprep.subr.mxu0 0.0
    %1970 = vmatpush1.msra.mxu0 %v1959
    %1971 = vmatprep.subr.mxu0 0.0
    %1972 = vmatpush1.msra.mxu0 %v1960
    %1973 = vmatprep.subr.mxu0 0.0
    %1974 = vmatpush1.msra.mxu0 %v1961
    %1975 = vmatprep.subr.mxu0 0.0
    %1976 = vmatpush1.msra.mxu0 %v1962
    %1977 = vmatprep.subr.mxu0 0.0
    %1978 = vmatpush1.msra.mxu0 0.0
    %1979 = vmatprep.subr.mxu0 0.0
    %1980 = vmatpush1.msra.mxu0 0.0
    %1981 = vmatprep.subr.mxu0 0.0
    %1982 = vmatpush1.msra.mxu0 0.0
    %1983 = vmatprep.subr.mxu0 0.0
    %1984 = vmatpush1.msra.mxu0 0.0
    %1985 = vmatprep.subr.mxu0 0.0
    %1986 = vmatpush1.msra.mxu0 0.0
    %1987 = vmatprep.subr.mxu0 0.0
    %1988 = vmatpush1.msra.mxu0 0.0
    %1989 = vmatprep.subr.mxu0 0.0
    %1990 = vmatpush1.msra.mxu0 0.0
    %1991 = vmatprep.subr.mxu0 0.0
    %1992 = vmatpush1.msra.mxu0 0.0
    %1993 = vmatprep.subr.mxu0 0.0
    %1994 = vmatpush1.msra.mxu0 0.0
    %1995 = vmatprep.subr.mxu0 0.0
    %1996 = vmatpush1.msra.mxu0 0.0
    %1997 = vmatprep.subr.mxu0 0.0
    %1998 = vmatpush1.msra.mxu0 0.0
    %1999 = vmatprep.subr.mxu0 0.0
    %2000 = vmatpush1.msra.mxu0 0.0
    %2001 = vmatprep.subr.mxu0 0.0
    %2002 = vmatpush1.msra.mxu0 0.0
    %2003 = vmatprep.subr.mxu0 0.0
    %2004 = vmatpush1.msra.mxu0 0.0
    %2005 = vmatprep.subr.mxu0 0.0
    %2006 = vmatpush1.msra.mxu0 0.0
    %2007 = vmatprep.subr.mxu0 0.0
    %2008 = vmatpush1.msra.mxu0 0.0
    %2009 = vmatprep.subr.mxu0 0.0
    %2010 = vmatpush1.msra.mxu0 0.0
    %2011 = vmatprep.subr.mxu0 0.0
    %2012 = vmatpush1.msra.mxu0 0.0
    %2013 = vmatprep.subr.mxu0 0.0
    %2014 = vmatpush1.msra.mxu0 0.0
    %2015 = vmatprep.subr.mxu0 0.0
    %2016 = vmatpush1.msra.mxu0 0.0
    %2017 = vmatprep.subr.mxu0 0.0
    %2018 = vmatpush1.msra.mxu0 0.0
    %2019 = vmatprep.subr.mxu0 0.0
    %2020 = vmatpush1.msra.mxu0 0.0
    %2021 = vmatprep.subr.mxu0 0.0
    %2022 = vmatpush1.msra.mxu0 0.0
    %2023 = vmatprep.subr.mxu0 0.0
    %2024 = vmatpush1.msra.mxu0 0.0
    %2025 = vmatprep.subr.mxu0 0.0
    %2026 = vmatpush1.msra.mxu0 0.0
    %2027 = vmatprep.subr.mxu0 0.0
    %2028 = vmatpush1.msra.mxu0 0.0
    %2029 = vmatprep.subr.mxu0 0.0
    %2030 = vmatpush1.msra.mxu0 0.0
    %2031 = vmatprep.subr.mxu0 0.0
    %2032 = vmatpush1.msra.mxu0 0.0
    %2033 = vmatprep.mubr.f32.mxu0 0.0
    %2034 = vmatmul.mubr.f32.gmra.mrb[0].mxu0 %v1964
    %v2035 = vpop.f32.mrb[0].mxu0
    %v2036 = vadd.f32 0.0, %v2035
    %v2037 = vpop.f32.mrb[0].mxu0
    %2038 = vmatprep.mubr.f32.mxu0 0.0
    %2039 = vmatmul.mubr.f32.gmra.mrb[0].mxu0 %v1967
    %v2040 = vpop.f32.mrb[0].mxu0
    %v2041 = vadd.f32 0.0, %v2040
    %v2042 = vpop.f32.mrb[0].mxu0
    %2043 = vdwg.mxu0
    %2045 = vrot.lane.b32.xlu0 %v2036, 96
    %v2046 = vpop.permute.xlu0 %2045
    %v2047 = vsel %vm257, %v2036, 0
    %v2049 = vsel %vm257, %v2046, 0
    %2051 = vmatprep.subr.mxu0 0.0
    %2052 = vmatpush1.xpose.msra.mxu0 %v2049
    %2053 = vmatprep.subr.mxu0 0.0
    %2054 = vmatpush1.xpose.msra.mxu0 0.0
    %2055 = vmatprep.subr.mxu0 0.0
    %2056 = vmatpush1.xpose.msra.mxu0 0.0
    %2057 = vmatprep.subr.mxu0 0.0
    %2058 = vmatpush1.xpose.msra.mxu0 0.0
    %2059 = vmatprep.subr.mxu0 0.0
    %2060 = vmatpush1.xpose.msra.mxu0 0.0
    %2061 = vmatprep.subr.mxu0 0.0
    %2062 = vmatpush1.xpose.msra.mxu0 0.0
    %2063 = vmatprep.subr.mxu0 0.0
    %2064 = vmatpush1.xpose.msra.mxu0 0.0
    %2065 = vmatprep.subr.mxu0 0.0
    %2066 = vmatpush1.xpose.msra.mxu0 0.0
    %2067 = vmatprep.subr.mxu0 0.0
    %2068 = vmatpush1.xpose.msra.mxu0 0.0
    %2069 = vmatprep.subr.mxu0 0.0
    %2070 = vmatpush1.xpose.msra.mxu0 0.0
    %2071 = vmatprep.subr.mxu0 0.0
    %2072 = vmatpush1.xpose.msra.mxu0 0.0
    %2073 = vmatprep.subr.mxu0 0.0
    %2074 = vmatpush1.xpose.msra.mxu0 0.0
    %2075 = vmatprep.subr.mxu0 0.0
    %2076 = vmatpush1.xpose.msra.mxu0 0.0
    %2077 = vmatprep.subr.mxu0 0.0
    %2078 = vmatpush1.xpose.msra.mxu0 0.0
    %2079 = vmatprep.subr.mxu0 0.0
    %2080 = vmatpush1.xpose.msra.mxu0 0.0
    %2081 = vmatprep.subr.mxu0 0.0
    %2082 = vmatpush1.xpose.msra.mxu0 0.0
    %2083 = vmatprep.subr.mxu0 0.0
    %2084 = vmatpush1.xpose.msra.mxu0 0.0
    %2085 = vmatprep.subr.mxu0 0.0
    %2086 = vmatpush1.xpose.msra.mxu0 0.0
    %2087 = vmatprep.subr.mxu0 0.0
    %2088 = vmatpush1.xpose.msra.mxu0 0.0
    %2089 = vmatprep.subr.mxu0 0.0
    %2090 = vmatpush1.xpose.msra.mxu0 0.0
    %2091 = vmatprep.subr.mxu0 0.0
    %2092 = vmatpush1.xpose.msra.mxu0 0.0
    %2093 = vmatprep.subr.mxu0 0.0
    %2094 = vmatpush1.xpose.msra.mxu0 0.0
    %2095 = vmatprep.subr.mxu0 0.0
    %2096 = vmatpush1.xpose.msra.mxu0 0.0
    %2097 = vmatprep.subr.mxu0 0.0
    %2098 = vmatpush1.xpose.msra.mxu0 0.0
    %2099 = vmatprep.subr.mxu0 0.0
    %2100 = vmatpush1.xpose.msra.mxu0 0.0
    %2101 = vmatprep.subr.mxu0 0.0
    %2102 = vmatpush1.xpose.msra.mxu0 0.0
    %2103 = vmatprep.subr.mxu0 0.0
    %2104 = vmatpush1.xpose.msra.mxu0 0.0
    %2105 = vmatprep.subr.mxu0 0.0
    %2106 = vmatpush1.xpose.msra.mxu0 0.0
    %2107 = vmatprep.subr.mxu0 0.0
    %2108 = vmatpush1.xpose.msra.mxu0 0.0
    %2109 = vmatprep.subr.mxu0 0.0
    %2110 = vmatpush1.xpose.msra.mxu0 0.0
    %2111 = vmatprep.subr.mxu0 0.0
    %2112 = vmatpush1.xpose.msra.mxu0 0.0
    %2113 = vmatprep.subr.mxu0 0.0
    %2114 = vmatpush1.xpose.msra.mxu0 0.0
    %2115 = vmatprep.mubr.f32.mxu0 0.0
    %2116 = vmatmul.mubr.f32.gmra.mrb[0].mxu0 %v2047
    %v2117 = vpop.f32.mrb[0].mxu0
    %v2118 = vadd.f32 0.0, %v2117
    %v2119 = vpop.f32.mrb[0].mxu0
    %2120 = vdwg.mxu0
    %2122 = vrot.lane.b32.xlu0 %v2041, 96
    %v2123 = vpop.permute.xlu0 %2122
    %v2124 = vsel %vm257, %v2041, 0
    %v2126 = vsel %vm257, %v2123, 0
    %2128 = vmatprep.subr.mxu0 0.0
    %2129 = vmatpush1.xpose.msra.mxu0 %v2126
    %2130 = vmatprep.subr.mxu0 0.0
    %2131 = vmatpush1.xpose.msra.mxu0 0.0
    %2132 = vmatprep.subr.mxu0 0.0
    %2133 = vmatpush1.xpose.msra.mxu0 0.0
    %2134 = vmatprep.subr.mxu0 0.0
    %2135 = vmatpush1.xpose.msra.mxu0 0.0
    %2136 = vmatprep.subr.mxu0 0.0
    %2137 = vmatpush1.xpose.msra.mxu0 0.0
    %2138 = vmatprep.subr.mxu0 0.0
    %2139 = vmatpush1.xpose.msra.mxu0 0.0
    %2140 = vmatprep.subr.mxu0 0.0
    %2141 = vmatpush1.xpose.msra.mxu0 0.0
    %2142 = vmatprep.subr.mxu0 0.0
    %2143 = vmatpush1.xpose.msra.mxu0 0.0
    %2144 = vmatprep.subr.mxu0 0.0
    %2145 = vmatpush1.xpose.msra.mxu0 0.0
    %2146 = vmatprep.subr.mxu0 0.0
    %2147 = vmatpush1.xpose.msra.mxu0 0.0
    %2148 = vmatprep.subr.mxu0 0.0
    %2149 = vmatpush1.xpose.msra.mxu0 0.0
    %2150 = vmatprep.subr.mxu0 0.0
    %2151 = vmatpush1.xpose.msra.mxu0 0.0
    %2152 = vmatprep.subr.mxu0 0.0
    %2153 = vmatpush1.xpose.msra.mxu0 0.0
    %2154 = vmatprep.subr.mxu0 0.0
    %2155 = vmatpush1.xpose.msra.mxu0 0.0
    %2156 = vmatprep.subr.mxu0 0.0
    %2157 = vmatpush1.xpose.msra.mxu0 0.0
    %2158 = vmatprep.subr.mxu0 0.0
    %2159 = vmatpush1.xpose.msra.mxu0 0.0
    %2160 = vmatprep.subr.mxu0 0.0
    %2161 = vmatpush1.xpose.msra.mxu0 0.0
    %2162 = vmatprep.subr.mxu0 0.0
    %2163 = vmatpush1.xpose.msra.mxu0 0.0
    %2164 = vmatprep.subr.mxu0 0.0
    %2165 = vmatpush1.xpose.msra.mxu0 0.0
    %2166 = vmatprep.subr.mxu0 0.0
    %2167 = vmatpush1.xpose.msra.mxu0 0.0
    %2168 = vmatprep.subr.mxu0 0.0
    %2169 = vmatpush1.xpose.msra.mxu0 0.0
    %2170 = vmatprep.subr.mxu0 0.0
    %2171 = vmatpush1.xpose.msra.mxu0 0.0
    %2172 = vmatprep.subr.mxu0 0.0
    %2173 = vmatpush1.xpose.msra.mxu0 0.0
    %2174 = vmatprep.subr.mxu0 0.0
    %2175 = vmatpush1.xpose.msra.mxu0 0.0
    %2176 = vmatprep.subr.mxu0 0.0
    %2177 = vmatpush1.xpose.msra.mxu0 0.0
    %2178 = vmatprep.subr.mxu0 0.0
    %2179 = vmatpush1.xpose.msra.mxu0 0.0
    %2180 = vmatprep.subr.mxu0 0.0
    %2181 = vmatpush1.xpose.msra.mxu0 0.0
    %2182 = vmatprep.subr.mxu0 0.0
    %2183 = vmatpush1.xpose.msra.mxu0 0.0
    %2184 = vmatprep.subr.mxu0 0.0
    %2185 = vmatpush1.xpose.msra.mxu0 0.0
    %2186 = vmatprep.subr.mxu0 0.0
    %2187 = vmatpush1.xpose.msra.mxu0 0.0
    %2188 = vmatprep.subr.mxu0 0.0
    %2189 = vmatpush1.xpose.msra.mxu0 0.0
    %2190 = vmatprep.subr.mxu0 0.0
    %2191 = vmatpush1.xpose.msra.mxu0 0.0
    %2192 = vmatprep.mubr.f32.mxu0 0.0
    %2193 = vmatmul.mubr.f32.gmra.mrb[0].mxu0 %v2124
    %v2194 = vpop.f32.mrb[0].mxu0
    %v2195 = vadd.f32 0.0, %v2194
    %v2196 = vpop.f32.mrb[0].mxu0
    %2197 = vdwg.mxu0
    %v2198 = vsel %vm257, %v2118, -inf
    %2199 = vmax.xlane.f32.xlu0 %v2198
    %v2200 = vpop.xlane.xlu0 %2199
    %v2201 = vsel %vm257, %v2195, -inf
    %2202 = vmax.xlane.f32.xlu0 %v2201
    %v2203 = vpop.xlane.xlu0 %2202
    %v2204 = vsub.f32 %v2118, %v2200
    %v2205 = vsub.f32 %v2195, %v2203
    %v2206 = vmul.f32 %v2204, 1.442695
    %v2207 = vpow.pop %v2206
    %v2208 = vmul.f32 %v2205, 1.442695
    %v2209 = vpow.pop %v2208
    %v2210 = vsel %vm257, %v2207, 0.0
    %2211 = vadd.xlane.f32.xlu0 %v2210
    %v2212 = vpop.xlane.xlu0 %2211
    %v2213 = vsel %vm257, %v2209, 0.0
    %2214 = vadd.xlane.f32.xlu0 %v2213
    %v2215 = vpop.xlane.xlu0 %2214
    %v2216 = vrcp.pop %v2212
    %v2217 = vrcp.pop %v2215
    %v2218 = vmul.f32 %v2207, %v2216
    %v2219 = vmul.f32 %v2209, %v2217
    %2220 = vst.msk [vmem:[#allocation4] sm:$0xff] %vm257, %v2218
    %2221 = vst.msk [vmem:[#allocation4 + $0x8] sm:$0xff] %vm257, %v2219
    %2222 = vrot.lane.b32.xlu0 %v2036, 64
    %v2223 = vpop.permute.xlu0 %2222
    %v2226 = vsel %vm257, %v2218, 0
    %2228 = vmatprep.subr.mxu0 0.0
    %2229 = vmatpush1.msra.mxu0 %v2223
    %2230 = vmatprep.subr.mxu0 0.0
    %2231 = vmatpush1.msra.mxu0 0.0
    %2232 = vmatprep.subr.mxu0 0.0
    %2233 = vmatpush1.msra.mxu0 0.0
    %2234 = vmatprep.subr.mxu0 0.0
    %2235 = vmatpush1.msra.mxu0 0.0
    %2236 = vmatprep.subr.mxu0 0.0
    %2237 = vmatpush1.msra.mxu0 0.0
    %2238 = vmatprep.subr.mxu0 0.0
    %2239 = vmatpush1.msra.mxu0 0.0
    %2240 = vmatprep.subr.mxu0 0.0
    %2241 = vmatpush1.msra.mxu0 0.0
    %2242 = vmatprep.subr.mxu0 0.0
    %2243 = vmatpush1.msra.mxu0 0.0
    %2244 = vmatprep.subr.mxu0 0.0
    %2245 = vmatpush1.msra.mxu0 0.0
    %2246 = vmatprep.subr.mxu0 0.0
    %2247 = vmatpush1.msra.mxu0 0.0
    %2248 = vmatprep.subr.mxu0 0.0
    %2249 = vmatpush1.msra.mxu0 0.0
    %2250 = vmatprep.subr.mxu0 0.0
    %2251 = vmatpush1.msra.mxu0 0.0
    %2252 = vmatprep.subr.mxu0 0.0
    %2253 = vmatpush1.msra.mxu0 0.0
    %2254 = vmatprep.subr.mxu0 0.0
    %2255 = vmatpush1.msra.mxu0 0.0
    %2256 = vmatprep.subr.mxu0 0.0
    %2257 = vmatpush1.msra.mxu0 0.0
    %2258 = vmatprep.subr.mxu0 0.0
    %2259 = vmatpush1.msra.mxu0 0.0
    %2260 = vmatprep.subr.mxu0 0.0
    %2261 = vmatpush1.msra.mxu0 0.0
    %2262 = vmatprep.subr.mxu0 0.0
    %2263 = vmatpush1.msra.mxu0 0.0
    %2264 = vmatprep.subr.mxu0 0.0
    %2265 = vmatpush1.msra.mxu0 0.0
    %2266 = vmatprep.subr.mxu0 0.0
    %2267 = vmatpush1.msra.mxu0 0.0
    %2268 = vmatprep.subr.mxu0 0.0
    %2269 = vmatpush1.msra.mxu0 0.0
    %2270 = vmatprep.subr.mxu0 0.0
    %2271 = vmatpush1.msra.mxu0 0.0
    %2272 = vmatprep.subr.mxu0 0.0
    %2273 = vmatpush1.msra.mxu0 0.0
    %2274 = vmatprep.subr.mxu0 0.0
    %2275 = vmatpush1.msra.mxu0 0.0
    %2276 = vmatprep.subr.mxu0 0.0
    %2277 = vmatpush1.msra.mxu0 0.0
    %2278 = vmatprep.subr.mxu0 0.0
    %2279 = vmatpush1.msra.mxu0 0.0
    %2280 = vmatprep.subr.mxu0 0.0
    %2281 = vmatpush1.msra.mxu0 0.0
    %2282 = vmatprep.subr.mxu0 0.0
    %2283 = vmatpush1.msra.mxu0 0.0
    %2284 = vmatprep.subr.mxu0 0.0
    %2285 = vmatpush1.msra.mxu0 0.0
    %2286 = vmatprep.subr.mxu0 0.0
    %2287 = vmatpush1.msra.mxu0 0.0
    %2288 = vmatprep.subr.mxu0 0.0
    %2289 = vmatpush1.msra.mxu0 0.0
    %2290 = vmatprep.subr.mxu0 0.0
    %2291 = vmatpush1.msra.mxu0 0.0
    %2292 = vmatprep.mubr.f32.mxu0 0.0
    %2293 = vmatmul.mubr.f32.gmra.mrb[0].mxu0 %v2226
    %v2294 = vpop.f32.mrb[0].mxu0
    %v2295 = vadd.f32 0.0, %v2294
    %v2296 = vpop.f32.mrb[0].mxu0
    %2297 = vdwg.mxu0
    %2298 = vrot.lane.b32.xlu0 %v2041, 64
    %v2299 = vpop.permute.xlu0 %2298
    %v2302 = vsel %vm257, %v2219, 0
    %2304 = vmatprep.subr.mxu0 0.0
    %2305 = vmatpush1.msra.mxu0 %v2299
    %2306 = vmatprep.subr.mxu0 0.0
    %2307 = vmatpush1.msra.mxu0 0.0
    %2308 = vmatprep.subr.mxu0 0.0
    %2309 = vmatpush1.msra.mxu0 0.0
    %2310 = vmatprep.subr.mxu0 0.0
    %2311 = vmatpush1.msra.mxu0 0.0
    %2312 = vmatprep.subr.mxu0 0.0
    %2313 = vmatpush1.msra.mxu0 0.0
    %2314 = vmatprep.subr.mxu0 0.0
    %2315 = vmatpush1.msra.mxu0 0.0
    %2316 = vmatprep.subr.mxu0 0.0
    %2317 = vmatpush1.msra.mxu0 0.0
    %2318 = vmatprep.subr.mxu0 0.0
    %2319 = vmatpush1.msra.mxu0 0.0
    %2320 = vmatprep.subr.mxu0 0.0
    %2321 = vmatpush1.msra.mxu0 0.0
    %2322 = vmatprep.subr.mxu0 0.0
    %2323 = vmatpush1.msra.mxu0 0.0
    %2324 = vmatprep.subr.mxu0 0.0
    %2325 = vmatpush1.msra.mxu0 0.0
    %2326 = vmatprep.subr.mxu0 0.0
    %2327 = vmatpush1.msra.mxu0 0.0
    %2328 = vmatprep.subr.mxu0 0.0
    %2329 = vmatpush1.msra.mxu0 0.0
    %2330 = vmatprep.subr.mxu0 0.0
    %2331 = vmatpush1.msra.mxu0 0.0
    %2332 = vmatprep.subr.mxu0 0.0
    %2333 = vmatpush1.msra.mxu0 0.0
    %2334 = vmatprep.subr.mxu0 0.0
    %2335 = vmatpush1.msra.mxu0 0.0
    %2336 = vmatprep.subr.mxu0 0.0
    %2337 = vmatpush1.msra.mxu0 0.0
    %2338 = vmatprep.subr.mxu0 0.0
    %2339 = vmatpush1.msra.mxu0 0.0
    %2340 = vmatprep.subr.mxu0 0.0
    %2341 = vmatpush1.msra.mxu0 0.0
    %2342 = vmatprep.subr.mxu0 0.0
    %2343 = vmatpush1.msra.mxu0 0.0
    %2344 = vmatprep.subr.mxu0 0.0
    %2345 = vmatpush1.msra.mxu0 0.0
    %2346 = vmatprep.subr.mxu0 0.0
    %2347 = vmatpush1.msra.mxu0 0.0
    %2348 = vmatprep.subr.mxu0 0.0
    %2349 = vmatpush1.msra.mxu0 0.0
    %2350 = vmatprep.subr.mxu0 0.0
    %2351 = vmatpush1.msra.mxu0 0.0
    %2352 = vmatprep.subr.mxu0 0.0
    %2353 = vmatpush1.msra.mxu0 0.0
    %2354 = vmatprep.subr.mxu0 0.0
    %2355 = vmatpush1.msra.mxu0 0.0
    %2356 = vmatprep.subr.mxu0 0.0
    %2357 = vmatpush1.msra.mxu0 0.0
    %2358 = vmatprep.subr.mxu0 0.0
    %2359 = vmatpush1.msra.mxu0 0.0
    %2360 = vmatprep.subr.mxu0 0.0
    %2361 = vmatpush1.msra.mxu0 0.0
    %2362 = vmatprep.subr.mxu0 0.0
    %2363 = vmatpush1.msra.mxu0 0.0
    %2364 = vmatprep.subr.mxu0 0.0
    %2365 = vmatpush1.msra.mxu0 0.0
    %2366 = vmatprep.subr.mxu0 0.0
    %2367 = vmatpush1.msra.mxu0 0.0
    %2368 = vmatprep.mubr.f32.mxu0 0.0
    %2369 = vmatmul.mubr.f32.gmra.mrb[0].mxu0 %v2302
    %v2370 = vpop.f32.mrb[0].mxu0
    %v2371 = vadd.f32 0.0, %v2370
    %v2372 = vpop.f32.mrb[0].mxu0
    %2373 = vdwg.mxu0
    %2374 = vrot.lane.b32.xlu0 %v2036, 120
    %v2375 = vpop.permute.xlu0 %2374
    %2376 = vrot.lane.b32.xlu0 %v2036, 88
    %v2377 = vpop.permute.xlu0 %2376
    %v2378 = vsel %vm257, %v2375, 0
    %v2380 = vsel %vm257, %v2377, 0
    %2382 = vmatprep.subr.mxu0 0.0
    %2383 = vmatpush1.xpose.msra.mxu0 %v2380
    %2384 = vmatprep.subr.mxu0 0.0
    %2385 = vmatpush1.xpose.msra.mxu0 0.0
    %2386 = vmatprep.subr.mxu0 0.0
    %2387 = vmatpush1.xpose.msra.mxu0 0.0
    %2388 = vmatprep.subr.mxu0 0.0
    %2389 = vmatpush1.xpose.msra.mxu0 0.0
    %2390 = vmatprep.subr.mxu0 0.0
    %2391 = vmatpush1.xpose.msra.mxu0 0.0
    %2392 = vmatprep.subr.mxu0 0.0
    %2393 = vmatpush1.xpose.msra.mxu0 0.0
    %2394 = vmatprep.subr.mxu0 0.0
    %2395 = vmatpush1.xpose.msra.mxu0 0.0
    %2396 = vmatprep.subr.mxu0 0.0
    %2397 = vmatpush1.xpose.msra.mxu0 0.0
    %2398 = vmatprep.subr.mxu0 0.0
    %2399 = vmatpush1.xpose.msra.mxu0 0.0
    %2400 = vmatprep.subr.mxu0 0.0
    %2401 = vmatpush1.xpose.msra.mxu0 0.0
    %2402 = vmatprep.subr.mxu0 0.0
    %2403 = vmatpush1.xpose.msra.mxu0 0.0
    %2404 = vmatprep.subr.mxu0 0.0
    %2405 = vmatpush1.xpose.msra.mxu0 0.0
    %2406 = vmatprep.subr.mxu0 0.0
    %2407 = vmatpush1.xpose.msra.mxu0 0.0
    %2408 = vmatprep.subr.mxu0 0.0
    %2409 = vmatpush1.xpose.msra.mxu0 0.0
    %2410 = vmatprep.subr.mxu0 0.0
    %2411 = vmatpush1.xpose.msra.mxu0 0.0
    %2412 = vmatprep.subr.mxu0 0.0
    %2413 = vmatpush1.xpose.msra.mxu0 0.0
    %2414 = vmatprep.subr.mxu0 0.0
    %2415 = vmatpush1.xpose.msra.mxu0 0.0
    %2416 = vmatprep.subr.mxu0 0.0
    %2417 = vmatpush1.xpose.msra.mxu0 0.0
    %2418 = vmatprep.subr.mxu0 0.0
    %2419 = vmatpush1.xpose.msra.mxu0 0.0
    %2420 = vmatprep.subr.mxu0 0.0
    %2421 = vmatpush1.xpose.msra.mxu0 0.0
    %2422 = vmatprep.subr.mxu0 0.0
    %2423 = vmatpush1.xpose.msra.mxu0 0.0
    %2424 = vmatprep.subr.mxu0 0.0
    %2425 = vmatpush1.xpose.msra.mxu0 0.0
    %2426 = vmatprep.subr.mxu0 0.0
    %2427 = vmatpush1.xpose.msra.mxu0 0.0
    %2428 = vmatprep.subr.mxu0 0.0
    %2429 = vmatpush1.xpose.msra.mxu0 0.0
    %2430 = vmatprep.subr.mxu0 0.0
    %2431 = vmatpush1.xpose.msra.mxu0 0.0
    %2432 = vmatprep.subr.mxu0 0.0
    %2433 = vmatpush1.xpose.msra.mxu0 0.0
    %2434 = vmatprep.subr.mxu0 0.0
    %2435 = vmatpush1.xpose.msra.mxu0 0.0
    %2436 = vmatprep.subr.mxu0 0.0
    %2437 = vmatpush1.xpose.msra.mxu0 0.0
    %2438 = vmatprep.subr.mxu0 0.0
    %2439 = vmatpush1.xpose.msra.mxu0 0.0
    %2440 = vmatprep.subr.mxu0 0.0
    %2441 = vmatpush1.xpose.msra.mxu0 0.0
    %2442 = vmatprep.subr.mxu0 0.0
    %2443 = vmatpush1.xpose.msra.mxu0 0.0
    %2444 = vmatprep.subr.mxu0 0.0
    %2445 = vmatpush1.xpose.msra.mxu0 0.0
    %2446 = vmatprep.mubr.f32.mxu0 0.0
    %2447 = vmatmul.mubr.f32.gmra.mrb[0].mxu0 %v2378
    %v2448 = vpop.f32.mrb[0].mxu0
    %v2449 = vadd.f32 0.0, %v2448
    %v2450 = vpop.f32.mrb[0].mxu0
    %2451 = vdwg.mxu0
    %2452 = vrot.lane.b32.xlu0 %v2041, 120
    %v2453 = vpop.permute.xlu0 %2452
    %2454 = vrot.lane.b32.xlu0 %v2041, 88
    %v2455 = vpop.permute.xlu0 %2454
    %v2456 = vsel %vm257, %v2453, 0
    %v2458 = vsel %vm257, %v2455, 0
    %2460 = vmatprep.subr.mxu0 0.0
    %2461 = vmatpush1.xpose.msra.mxu0 %v2458
    %2462 = vmatprep.subr.mxu0 0.0
    %2463 = vmatpush1.xpose.msra.mxu0 0.0
    %2464 = vmatprep.subr.mxu0 0.0
    %2465 = vmatpush1.xpose.msra.mxu0 0.0
    %2466 = vmatprep.subr.mxu0 0.0
    %2467 = vmatpush1.xpose.msra.mxu0 0.0
    %2468 = vmatprep.subr.mxu0 0.0
    %2469 = vmatpush1.xpose.msra.mxu0 0.0
    %2470 = vmatprep.subr.mxu0 0.0
    %2471 = vmatpush1.xpose.msra.mxu0 0.0
    %2472 = vmatprep.subr.mxu0 0.0
    %2473 = vmatpush1.xpose.msra.mxu0 0.0
    %2474 = vmatprep.subr.mxu0 0.0
    %2475 = vmatpush1.xpose.msra.mxu0 0.0
    %2476 = vmatprep.subr.mxu0 0.0
    %2477 = vmatpush1.xpose.msra.mxu0 0.0
    %2478 = vmatprep.subr.mxu0 0.0
    %2479 = vmatpush1.xpose.msra.mxu0 0.0
    %2480 = vmatprep.subr.mxu0 0.0
    %2481 = vmatpush1.xpose.msra.mxu0 0.0
    %2482 = vmatprep.subr.mxu0 0.0
    %2483 = vmatpush1.xpose.msra.mxu0 0.0
    %2484 = vmatprep.subr.mxu0 0.0
    %2485 = vmatpush1.xpose.msra.mxu0 0.0
    %2486 = vmatprep.subr.mxu0 0.0
    %2487 = vmatpush1.xpose.msra.mxu0 0.0
    %2488 = vmatprep.subr.mxu0 0.0
    %2489 = vmatpush1.xpose.msra.mxu0 0.0
    %2490 = vmatprep.subr.mxu0 0.0
    %2491 = vmatpush1.xpose.msra.mxu0 0.0
    %2492 = vmatprep.subr.mxu0 0.0
    %2493 = vmatpush1.xpose.msra.mxu0 0.0
    %2494 = vmatprep.subr.mxu0 0.0
    %2495 = vmatpush1.xpose.msra.mxu0 0.0
    %2496 = vmatprep.subr.mxu0 0.0
    %2497 = vmatpush1.xpose.msra.mxu0 0.0
    %2498 = vmatprep.subr.mxu0 0.0
    %2499 = vmatpush1.xpose.msra.mxu0 0.0
    %2500 = vmatprep.subr.mxu0 0.0
    %2501 = vmatpush1.xpose.msra.mxu0 0.0
    %2502 = vmatprep.subr.mxu0 0.0
    %2503 = vmatpush1.xpose.msra.mxu0 0.0
    %2504 = vmatprep.subr.mxu0 0.0
    %2505 = vmatpush1.xpose.msra.mxu0 0.0
    %2506 = vmatprep.subr.mxu0 0.0
    %2507 = vmatpush1.xpose.msra.mxu0 0.0
    %2508 = vmatprep.subr.mxu0 0.0
    %2509 = vmatpush1.xpose.msra.mxu0 0.0
    %2510 = vmatprep.subr.mxu0 0.0
    %2511 = vmatpush1.xpose.msra.mxu0 0.0
    %2512 = vmatprep.subr.mxu0 0.0
    %2513 = vmatpush1.xpose.msra.mxu0 0.0
    %2514 = vmatprep.subr.mxu0 0.0
    %2515 = vmatpush1.xpose.msra.mxu0 0.0
    %2516 = vmatprep.subr.mxu0 0.0
    %2517 = vmatpush1.xpose.msra.mxu0 0.0
    %2518 = vmatprep.subr.mxu0 0.0
    %2519 = vmatpush1.xpose.msra.mxu0 0.0
    %2520 = vmatprep.subr.mxu0 0.0
    %2521 = vmatpush1.xpose.msra.mxu0 0.0
    %2522 = vmatprep.subr.mxu0 0.0
    %2523 = vmatpush1.xpose.msra.mxu0 0.0
    %2524 = vmatprep.mubr.f32.mxu0 0.0
    %2525 = vmatmul.mubr.f32.gmra.mrb[0].mxu0 %v2456
    %v2526 = vpop.f32.mrb[0].mxu0
    %v2527 = vadd.f32 0.0, %v2526
    %v2528 = vpop.f32.mrb[0].mxu0
    %2529 = vdwg.mxu0
    %v2530 = vsel %vm257, %v2449, -inf
    %2531 = vmax.xlane.f32.xlu0 %v2530
    %v2532 = vpop.xlane.xlu0 %2531
    %v2533 = vsel %vm257, %v2527, -inf
    %2534 = vmax.xlane.f32.xlu0 %v2533
    %v2535 = vpop.xlane.xlu0 %2534
    %v2536 = vsub.f32 %v2449, %v2532
    %v2537 = vsub.f32 %v2527, %v2535
    %v2538 = vmul.f32 %v2536, 1.442695
    %v2539 = vpow.pop %v2538
    %v2540 = vmul.f32 %v2537, 1.442695
    %v2541 = vpow.pop %v2540
    %v2542 = vsel %vm257, %v2539, 0.0
    %2543 = vadd.xlane.f32.xlu0 %v2542
    %v2544 = vpop.xlane.xlu0 %2543
    %v2545 = vsel %vm257, %v2541, 0.0
    %2546 = vadd.xlane.f32.xlu0 %v2545
    %v2547 = vpop.xlane.xlu0 %2546
    %v2548 = vrcp.pop %v2544
    %v2549 = vrcp.pop %v2547
    %v2550 = vmul.f32 %v2539, %v2548
    %v2551 = vmul.f32 %v2541, %v2549
    %s2552 = scalar_lea.vmem [#allocation4], 16
    %2553 = vst.msk [vmem:[%s2552] sm:$0xff] %vm257, %v2550
    %2554 = vst.msk [vmem:[%s2552 + $0x8] sm:$0xff] %vm257, %v2551
    %2555 = vrot.lane.b32.xlu0 %v2036, 56
    %v2556 = vpop.permute.xlu0 %2555
    %v2559 = vsel %vm257, %v2550, 0
    %2561 = vmatprep.subr.mxu0 0.0
    %2562 = vmatpush1.msra.mxu0 %v2556
    %2563 = vmatprep.subr.mxu0 0.0
    %2564 = vmatpush1.msra.mxu0 0.0
    %2565 = vmatprep.subr.mxu0 0.0
    %2566 = vmatpush1.msra.mxu0 0.0
    %2567 = vmatprep.subr.mxu0 0.0
    %2568 = vmatpush1.msra.mxu0 0.0
    %2569 = vmatprep.subr.mxu0 0.0
    %2570 = vmatpush1.msra.mxu0 0.0
    %2571 = vmatprep.subr.mxu0 0.0
    %2572 = vmatpush1.msra.mxu0 0.0
    %2573 = vmatprep.subr.mxu0 0.0
    %2574 = vmatpush1.msra.mxu0 0.0
    %2575 = vmatprep.subr.mxu0 0.0
    %2576 = vmatpush1.msra.mxu0 0.0
    %2577 = vmatprep.subr.mxu0 0.0
    %2578 = vmatpush1.msra.mxu0 0.0
    %2579 = vmatprep.subr.mxu0 0.0
    %2580 = vmatpush1.msra.mxu0 0.0
    %2581 = vmatprep.subr.mxu0 0.0
    %2582 = vmatpush1.msra.mxu0 0.0
    %2583 = vmatprep.subr.mxu0 0.0
    %2584 = vmatpush1.msra.mxu0 0.0
    %2585 = vmatprep.subr.mxu0 0.0
    %2586 = vmatpush1.msra.mxu0 0.0
    %2587 = vmatprep.subr.mxu0 0.0
    %2588 = vmatpush1.msra.mxu0 0.0
    %2589 = vmatprep.subr.mxu0 0.0
    %2590 = vmatpush1.msra.mxu0 0.0
    %2591 = vmatprep.subr.mxu0 0.0
    %2592 = vmatpush1.msra.mxu0 0.0
    %2593 = vmatprep.subr.mxu0 0.0
    %2594 = vmatpush1.msra.mxu0 0.0
    %2595 = vmatprep.subr.mxu0 0.0
    %2596 = vmatpush1.msra.mxu0 0.0
    %2597 = vmatprep.subr.mxu0 0.0
    %2598 = vmatpush1.msra.mxu0 0.0
    %2599 = vmatprep.subr.mxu0 0.0
    %2600 = vmatpush1.msra.mxu0 0.0
    %2601 = vmatprep.subr.mxu0 0.0
    %2602 = vmatpush1.msra.mxu0 0.0
    %2603 = vmatprep.subr.mxu0 0.0
    %2604 = vmatpush1.msra.mxu0 0.0
    %2605 = vmatprep.subr.mxu0 0.0
    %2606 = vmatpush1.msra.mxu0 0.0
    %2607 = vmatprep.subr.mxu0 0.0
    %2608 = vmatpush1.msra.mxu0 0.0
    %2609 = vmatprep.subr.mxu0 0.0
    %2610 = vmatpush1.msra.mxu0 0.0
    %2611 = vmatprep.subr.mxu0 0.0
    %2612 = vmatpush1.msra.mxu0 0.0
    %2613 = vmatprep.subr.mxu0 0.0
    %2614 = vmatpush1.msra.mxu0 0.0
    %2615 = vmatprep.subr.mxu0 0.0
    %2616 = vmatpush1.msra.mxu0 0.0
    %2617 = vmatprep.subr.mxu0 0.0
    %2618 = vmatpush1.msra.mxu0 0.0
    %2619 = vmatprep.subr.mxu0 0.0
    %2620 = vmatpush1.msra.mxu0 0.0
    %2621 = vmatprep.subr.mxu0 0.0
    %2622 = vmatpush1.msra.mxu0 0.0
    %2623 = vmatprep.subr.mxu0 0.0
    %2624 = vmatpush1.msra.mxu0 0.0
    %2625 = vmatprep.mubr.f32.mxu0 0.0
    %2626 = vmatmul.mubr.f32.gmra.mrb[0].mxu0 %v2559
    %v2627 = vpop.f32.mrb[0].mxu0
    %v2628 = vadd.f32 0.0, %v2627
    %v2629 = vpop.f32.mrb[0].mxu0
    %2630 = vdwg.mxu0
    %2631 = vrot.lane.b32.xlu0 %v2041, 56
    %v2632 = vpop.permute.xlu0 %2631
    %v2635 = vsel %vm257, %v2551, 0
    %2637 = vmatprep.subr.mxu0 0.0
    %2638 = vmatpush1.msra.mxu0 %v2632
    %2639 = vmatprep.subr.mxu0 0.0
    %2640 = vmatpush1.msra.mxu0 0.0
    %2641 = vmatprep.subr.mxu0 0.0
    %2642 = vmatpush1.msra.mxu0 0.0
    %2643 = vmatprep.subr.mxu0 0.0
    %2644 = vmatpush1.msra.mxu0 0.0
    %2645 = vmatprep.subr.mxu0 0.0
    %2646 = vmatpush1.msra.mxu0 0.0
    %2647 = vmatprep.subr.mxu0 0.0
    %2648 = vmatpush1.msra.mxu0 0.0
    %2649 = vmatprep.subr.mxu0 0.0
    %2650 = vmatpush1.msra.mxu0 0.0
    %2651 = vmatprep.subr.mxu0 0.0
    %2652 = vmatpush1.msra.mxu0 0.0
    %2653 = vmatprep.subr.mxu0 0.0
    %2654 = vmatpush1.msra.mxu0 0.0
    %2655 = vmatprep.subr.mxu0 0.0
    %2656 = vmatpush1.msra.mxu0 0.0
    %2657 = vmatprep.subr.mxu0 0.0
    %2658 = vmatpush1.msra.mxu0 0.0
    %2659 = vmatprep.subr.mxu0 0.0
    %2660 = vmatpush1.msra.mxu0 0.0
    %2661 = vmatprep.subr.mxu0 0.0
    %2662 = vmatpush1.msra.mxu0 0.0
    %2663 = vmatprep.subr.mxu0 0.0
    %2664 = vmatpush1.msra.mxu0 0.0
    %2665 = vmatprep.subr.mxu0 0.0
    %2666 = vmatpush1.msra.mxu0 0.0
    %2667 = vmatprep.subr.mxu0 0.0
    %2668 = vmatpush1.msra.mxu0 0.0
    %2669 = vmatprep.subr.mxu0 0.0
    %2670 = vmatpush1.msra.mxu0 0.0
    %2671 = vmatprep.subr.mxu0 0.0
    %2672 = vmatpush1.msra.mxu0 0.0
    %2673 = vmatprep.subr.mxu0 0.0
    %2674 = vmatpush1.msra.mxu0 0.0
    %2675 = vmatprep.subr.mxu0 0.0
    %2676 = vmatpush1.msra.mxu0 0.0
    %2677 = vmatprep.subr.mxu0 0.0
    %2678 = vmatpush1.msra.mxu0 0.0
    %2679 = vmatprep.subr.mxu0 0.0
    %2680 = vmatpush1.msra.mxu0 0.0
    %2681 = vmatprep.subr.mxu0 0.0
    %2682 = vmatpush1.msra.mxu0 0.0
    %2683 = vmatprep.subr.mxu0 0.0
    %2684 = vmatpush1.msra.mxu0 0.0
    %2685 = vmatprep.subr.mxu0 0.0
    %2686 = vmatpush1.msra.mxu0 0.0
    %2687 = vmatprep.subr.mxu0 0.0
    %2688 = vmatpush1.msra.mxu0 0.0
    %2689 = vmatprep.subr.mxu0 0.0
    %2690 = vmatpush1.msra.mxu0 0.0
    %2691 = vmatprep.subr.mxu0 0.0
    %2692 = vmatpush1.msra.mxu0 0.0
    %2693 = vmatprep.subr.mxu0 0.0
    %2694 = vmatpush1.msra.mxu0 0.0
    %2695 = vmatprep.subr.mxu0 0.0
    %2696 = vmatpush1.msra.mxu0 0.0
    %2697 = vmatprep.subr.mxu0 0.0
    %2698 = vmatpush1.msra.mxu0 0.0
    %2699 = vmatprep.subr.mxu0 0.0
    %2700 = vmatpush1.msra.mxu0 0.0
    %2701 = vmatprep.mubr.f32.mxu0 0.0
    %2702 = vmatmul.mubr.f32.gmra.mrb[0].mxu0 %v2635
    %v2703 = vpop.f32.mrb[0].mxu0
    %v2704 = vadd.f32 0.0, %v2703
    %v2705 = vpop.f32.mrb[0].mxu0
    %2706 = vdwg.mxu0
    %2707 = vrot.lane.b32.xlu0 %v2036, 112
    %v2708 = vpop.permute.xlu0 %2707
    %2709 = vrot.lane.b32.xlu0 %v2036, 80
    %v2710 = vpop.permute.xlu0 %2709
    %v2711 = vsel %vm257, %v2708, 0
    %v2713 = vsel %vm257, %v2710, 0
    %2715 = vmatprep.subr.mxu0 0.0
    %2716 = vmatpush1.xpose.msra.mxu0 %v2713
    %2717 = vmatprep.subr.mxu0 0.0
    %2718 = vmatpush1.xpose.msra.mxu0 0.0
    %2719 = vmatprep.subr.mxu0 0.0
    %2720 = vmatpush1.xpose.msra.mxu0 0.0
    %2721 = vmatprep.subr.mxu0 0.0
    %2722 = vmatpush1.xpose.msra.mxu0 0.0
    %2723 = vmatprep.subr.mxu0 0.0
    %2724 = vmatpush1.xpose.msra.mxu0 0.0
    %2725 = vmatprep.subr.mxu0 0.0
    %2726 = vmatpush1.xpose.msra.mxu0 0.0
    %2727 = vmatprep.subr.mxu0 0.0
    %2728 = vmatpush1.xpose.msra.mxu0 0.0
    %2729 = vmatprep.subr.mxu0 0.0
    %2730 = vmatpush1.xpose.msra.mxu0 0.0
    %2731 = vmatprep.subr.mxu0 0.0
    %2732 = vmatpush1.xpose.msra.mxu0 0.0
    %2733 = vmatprep.subr.mxu0 0.0
    %2734 = vmatpush1.xpose.msra.mxu0 0.0
    %2735 = vmatprep.subr.mxu0 0.0
    %2736 = vmatpush1.xpose.msra.mxu0 0.0
    %2737 = vmatprep.subr.mxu0 0.0
    %2738 = vmatpush1.xpose.msra.mxu0 0.0
    %2739 = vmatprep.subr.mxu0 0.0
    %2740 = vmatpush1.xpose.msra.mxu0 0.0
    %2741 = vmatprep.subr.mxu0 0.0
    %2742 = vmatpush1.xpose.msra.mxu0 0.0
    %2743 = vmatprep.subr.mxu0 0.0
    %2744 = vmatpush1.xpose.msra.mxu0 0.0
    %2745 = vmatprep.subr.mxu0 0.0
    %2746 = vmatpush1.xpose.msra.mxu0 0.0
    %2747 = vmatprep.subr.mxu0 0.0
    %2748 = vmatpush1.xpose.msra.mxu0 0.0
    %2749 = vmatprep.subr.mxu0 0.0
    %2750 = vmatpush1.xpose.msra.mxu0 0.0
    %2751 = vmatprep.subr.mxu0 0.0
    %2752 = vmatpush1.xpose.msra.mxu0 0.0
    %2753 = vmatprep.subr.mxu0 0.0
    %2754 = vmatpush1.xpose.msra.mxu0 0.0
    %2755 = vmatprep.subr.mxu0 0.0
    %2756 = vmatpush1.xpose.msra.mxu0 0.0
    %2757 = vmatprep.subr.mxu0 0.0
    %2758 = vmatpush1.xpose.msra.mxu0 0.0
    %2759 = vmatprep.subr.mxu0 0.0
    %2760 = vmatpush1.xpose.msra.mxu0 0.0
    %2761 = vmatprep.subr.mxu0 0.0
    %2762 = vmatpush1.xpose.msra.mxu0 0.0
    %2763 = vmatprep.subr.mxu0 0.0
    %2764 = vmatpush1.xpose.msra.mxu0 0.0
    %2765 = vmatprep.subr.mxu0 0.0
    %2766 = vmatpush1.xpose.msra.mxu0 0.0
    %2767 = vmatprep.subr.mxu0 0.0
    %2768 = vmatpush1.xpose.msra.mxu0 0.0
    %2769 = vmatprep.subr.mxu0 0.0
    %2770 = vmatpush1.xpose.msra.mxu0 0.0
    %2771 = vmatprep.subr.mxu0 0.0
    %2772 = vmatpush1.xpose.msra.mxu0 0.0
    %2773 = vmatprep.subr.mxu0 0.0
    %2774 = vmatpush1.xpose.msra.mxu0 0.0
    %2775 = vmatprep.subr.mxu0 0.0
    %2776 = vmatpush1.xpose.msra.mxu0 0.0
    %2777 = vmatprep.subr.mxu0 0.0
    %2778 = vmatpush1.xpose.msra.mxu0 0.0
    %2779 = vmatprep.mubr.f32.mxu0 0.0
    %2780 = vmatmul.mubr.f32.gmra.mrb[0].mxu0 %v2711
    %v2781 = vpop.f32.mrb[0].mxu0
    %v2782 = vadd.f32 0.0, %v2781
    %v2783 = vpop.f32.mrb[0].mxu0
    %2784 = vdwg.mxu0
    %2785 = vrot.lane.b32.xlu0 %v2041, 112
    %v2786 = vpop.permute.xlu0 %2785
    %2787 = vrot.lane.b32.xlu0 %v2041, 80
    %v2788 = vpop.permute.xlu0 %2787
    %v2789 = vsel %vm257, %v2786, 0
    %v2791 = vsel %vm257, %v2788, 0
    %2793 = vmatprep.subr.mxu0 0.0
    %2794 = vmatpush1.xpose.msra.mxu0 %v2791
    %2795 = vmatprep.subr.mxu0 0.0
    %2796 = vmatpush1.xpose.msra.mxu0 0.0
    %2797 = vmatprep.subr.mxu0 0.0
    %2798 = vmatpush1.xpose.msra.mxu0 0.0
    %2799 = vmatprep.subr.mxu0 0.0
    %2800 = vmatpush1.xpose.msra.mxu0 0.0
    %2801 = vmatprep.subr.mxu0 0.0
    %2802 = vmatpush1.xpose.msra.mxu0 0.0
    %2803 = vmatprep.subr.mxu0 0.0
    %2804 = vmatpush1.xpose.msra.mxu0 0.0
    %2805 = vmatprep.subr.mxu0 0.0
    %2806 = vmatpush1.xpose.msra.mxu0 0.0
    %2807 = vmatprep.subr.mxu0 0.0
    %2808 = vmatpush1.xpose.msra.mxu0 0.0
    %2809 = vmatprep.subr.mxu0 0.0
    %2810 = vmatpush1.xpose.msra.mxu0 0.0
    %2811 = vmatprep.subr.mxu0 0.0
    %2812 = vmatpush1.xpose.msra.mxu0 0.0
    %2813 = vmatprep.subr.mxu0 0.0
    %2814 = vmatpush1.xpose.msra.mxu0 0.0
    %2815 = vmatprep.subr.mxu0 0.0
    %2816 = vmatpush1.xpose.msra.mxu0 0.0
    %2817 = vmatprep.subr.mxu0 0.0
    %2818 = vmatpush1.xpose.msra.mxu0 0.0
    %2819 = vmatprep.subr.mxu0 0.0
    %2820 = vmatpush1.xpose.msra.mxu0 0.0
    %2821 = vmatprep.subr.mxu0 0.0
    %2822 = vmatpush1.xpose.msra.mxu0 0.0
    %2823 = vmatprep.subr.mxu0 0.0
    %2824 = vmatpush1.xpose.msra.mxu0 0.0
    %2825 = vmatprep.subr.mxu0 0.0
    %2826 = vmatpush1.xpose.msra.mxu0 0.0
    %2827 = vmatprep.subr.mxu0 0.0
    %2828 = vmatpush1.xpose.msra.mxu0 0.0
    %2829 = vmatprep.subr.mxu0 0.0
    %2830 = vmatpush1.xpose.msra.mxu0 0.0
    %2831 = vmatprep.subr.mxu0 0.0
    %2832 = vmatpush1.xpose.msra.mxu0 0.0
    %2833 = vmatprep.subr.mxu0 0.0
    %2834 = vmatpush1.xpose.msra.mxu0 0.0
    %2835 = vmatprep.subr.mxu0 0.0
    %2836 = vmatpush1.xpose.msra.mxu0 0.0
    %2837 = vmatprep.subr.mxu0 0.0
    %2838 = vmatpush1.xpose.msra.mxu0 0.0
    %2839 = vmatprep.subr.mxu0 0.0
    %2840 = vmatpush1.xpose.msra.mxu0 0.0
    %2841 = vmatprep.subr.mxu0 0.0
    %2842 = vmatpush1.xpose.msra.mxu0 0.0
    %2843 = vmatprep.subr.mxu0 0.0
    %2844 = vmatpush1.xpose.msra.mxu0 0.0
    %2845 = vmatprep.subr.mxu0 0.0
    %2846 = vmatpush1.xpose.msra.mxu0 0.0
    %2847 = vmatprep.subr.mxu0 0.0
    %2848 = vmatpush1.xpose.msra.mxu0 0.0
    %2849 = vmatprep.subr.mxu0 0.0
    %2850 = vmatpush1.xpose.msra.mxu0 0.0
    %2851 = vmatprep.subr.mxu0 0.0
    %2852 = vmatpush1.xpose.msra.mxu0 0.0
    %2853 = vmatprep.subr.mxu0 0.0
    %2854 = vmatpush1.xpose.msra.mxu0 0.0
    %2855 = vmatprep.subr.mxu0 0.0
    %2856 = vmatpush1.xpose.msra.mxu0 0.0
    %2857 = vmatprep.mubr.f32.mxu0 0.0
    %2858 = vmatmul.mubr.f32.gmra.mrb[0].mxu0 %v2789
    %v2859 = vpop.f32.mrb[0].mxu0
    %v2860 = vadd.f32 0.0, %v2859
    %v2861 = vpop.f32.mrb[0].mxu0
    %2862 = vdwg.mxu0
    %v2863 = vsel %vm257, %v2782, -inf
    %2864 = vmax.xlane.f32.xlu0 %v2863
    %v2865 = vpop.xlane.xlu0 %2864
    %v2866 = vsel %vm257, %v2860, -inf
    %2867 = vmax.xlane.f32.xlu0 %v2866
    %v2868 = vpop.xlane.xlu0 %2867
    %v2869 = vsub.f32 %v2782, %v2865
    %v2870 = vsub.f32 %v2860, %v2868
    %v2871 = vmul.f32 %v2869, 1.442695
    %v2872 = vpow.pop %v2871
    %v2873 = vmul.f32 %v2870, 1.442695
    %v2874 = vpow.pop %v2873
    %v2875 = vsel %vm257, %v2872, 0.0
    %2876 = vadd.xlane.f32.xlu0 %v2875
    %v2877 = vpop.xlane.xlu0 %2876
    %v2878 = vsel %vm257, %v2874, 0.0
    %2879 = vadd.xlane.f32.xlu0 %v2878
    %v2880 = vpop.xlane.xlu0 %2879
    %v2881 = vrcp.pop %v2877
    %v2882 = vrcp.pop %v2880
    %v2883 = vmul.f32 %v2872, %v2881
    %v2884 = vmul.f32 %v2874, %v2882
    %s2885 = scalar_lea.vmem [#allocation4], 32
    %2886 = vst.msk [vmem:[%s2885] sm:$0xff] %vm257, %v2883
    %2887 = vst.msk [vmem:[%s2885 + $0x8] sm:$0xff] %vm257, %v2884
    %2888 = vrot.lane.b32.xlu0 %v2036, 48
    %v2889 = vpop.permute.xlu0 %2888
    %v2892 = vsel %vm257, %v2883, 0
    %2894 = vmatprep.subr.mxu0 0.0
    %2895 = vmatpush1.msra.mxu0 %v2889
    %2896 = vmatprep.subr.mxu0 0.0
    %2897 = vmatpush1.msra.mxu0 0.0
    %2898 = vmatprep.subr.mxu0 0.0
    %2899 = vmatpush1.msra.mxu0 0.0
    %2900 = vmatprep.subr.mxu0 0.0
    %2901 = vmatpush1.msra.mxu0 0.0
    %2902 = vmatprep.subr.mxu0 0.0
    %2903 = vmatpush1.msra.mxu0 0.0
    %2904 = vmatprep.subr.mxu0 0.0
    %2905 = vmatpush1.msra.mxu0 0.0
    %2906 = vmatprep.subr.mxu0 0.0
    %2907 = vmatpush1.msra.mxu0 0.0
    %2908 = vmatprep.subr.mxu0 0.0
    %2909 = vmatpush1.msra.mxu0 0.0
    %2910 = vmatprep.subr.mxu0 0.0
    %2911 = vmatpush1.msra.mxu0 0.0
    %2912 = vmatprep.subr.mxu0 0.0
    %2913 = vmatpush1.msra.mxu0 0.0
    %2914 = vmatprep.subr.mxu0 0.0
    %2915 = vmatpush1.msra.mxu0 0.0
    %2916 = vmatprep.subr.mxu0 0.0
    %2917 = vmatpush1.msra.mxu0 0.0
    %2918 = vmatprep.subr.mxu0 0.0
    %2919 = vmatpush1.msra.mxu0 0.0
    %2920 = vmatprep.subr.mxu0 0.0
    %2921 = vmatpush1.msra.mxu0 0.0
    %2922 = vmatprep.subr.mxu0 0.0
    %2923 = vmatpush1.msra.mxu0 0.0
    %2924 = vmatprep.subr.mxu0 0.0
    %2925 = vmatpush1.msra.mxu0 0.0
    %2926 = vmatprep.subr.mxu0 0.0
    %2927 = vmatpush1.msra.mxu0 0.0
    %2928 = vmatprep.subr.mxu0 0.0
    %2929 = vmatpush1.msra.mxu0 0.0
    %2930 = vmatprep.subr.mxu0 0.0
    %2931 = vmatpush1.msra.mxu0 0.0
    %2932 = vmatprep.subr.mxu0 0.0
    %2933 = vmatpush1.msra.mxu0 0.0
    %2934 = vmatprep.subr.mxu0 0.0
    %2935 = vmatpush1.msra.mxu0 0.0
    %2936 = vmatprep.subr.mxu0 0.0
    %2937 = vmatpush1.msra.mxu0 0.0
    %2938 = vmatprep.subr.mxu0 0.0
    %2939 = vmatpush1.msra.mxu0 0.0
    %2940 = vmatprep.subr.mxu0 0.0
    %2941 = vmatpush1.msra.mxu0 0.0
    %2942 = vmatprep.subr.mxu0 0.0
    %2943 = vmatpush1.msra.mxu0 0.0
    %2944 = vmatprep.subr.mxu0 0.0
    %2945 = vmatpush1.msra.mxu0 0.0
    %2946 = vmatprep.subr.mxu0 0.0
    %2947 = vmatpush1.msra.mxu0 0.0
    %2948 = vmatprep.subr.mxu0 0.0
    %2949 = vmatpush1.msra.mxu0 0.0
    %2950 = vmatprep.subr.mxu0 0.0
    %2951 = vmatpush1.msra.mxu0 0.0
    %2952 = vmatprep.subr.mxu0 0.0
    %2953 = vmatpush1.msra.mxu0 0.0
    %2954 = vmatprep.subr.mxu0 0.0
    %2955 = vmatpush1.msra.mxu0 0.0
    %2956 = vmatprep.subr.mxu0 0.0
    %2957 = vmatpush1.msra.mxu0 0.0
    %2958 = vmatprep.mubr.f32.mxu0 0.0
    %2959 = vmatmul.mubr.f32.gmra.mrb[0].mxu0 %v2892
    %v2960 = vpop.f32.mrb[0].mxu0
    %v2961 = vadd.f32 0.0, %v2960
    %v2962 = vpop.f32.mrb[0].mxu0
    %2963 = vdwg.mxu0
    %2964 = vrot.lane.b32.xlu0 %v2041, 48
    %v2965 = vpop.permute.xlu0 %2964
    %v2968 = vsel %vm257, %v2884, 0
    %2970 = vmatprep.subr.mxu0 0.0
    %2971 = vmatpush1.msra.mxu0 %v2965
    %2972 = vmatprep.subr.mxu0 0.0
    %2973 = vmatpush1.msra.mxu0 0.0
    %2974 = vmatprep.subr.mxu0 0.0
    %2975 = vmatpush1.msra.mxu0 0.0
    %2976 = vmatprep.subr.mxu0 0.0
    %2977 = vmatpush1.msra.mxu0 0.0
    %2978 = vmatprep.subr.mxu0 0.0
    %2979 = vmatpush1.msra.mxu0 0.0
    %2980 = vmatprep.subr.mxu0 0.0
    %2981 = vmatpush1.msra.mxu0 0.0
    %2982 = vmatprep.subr.mxu0 0.0
    %2983 = vmatpush1.msra.mxu0 0.0
    %2984 = vmatprep.subr.mxu0 0.0
    %2985 = vmatpush1.msra.mxu0 0.0
    %2986 = vmatprep.subr.mxu0 0.0
    %2987 = vmatpush1.msra.mxu0 0.0
    %2988 = vmatprep.subr.mxu0 0.0
    %2989 = vmatpush1.msra.mxu0 0.0
    %2990 = vmatprep.subr.mxu0 0.0
    %2991 = vmatpush1.msra.mxu0 0.0
    %2992 = vmatprep.subr.mxu0 0.0
    %2993 = vmatpush1.msra.mxu0 0.0
    %2994 = vmatprep.subr.mxu0 0.0
    %2995 = vmatpush1.msra.mxu0 0.0
    %2996 = vmatprep.subr.mxu0 0.0
    %2997 = vmatpush1.msra.mxu0 0.0
    %2998 = vmatprep.subr.mxu0 0.0
    %2999 = vmatpush1.msra.mxu0 0.0
    %3000 = vmatprep.subr.mxu0 0.0
    %3001 = vmatpush1.msra.mxu0 0.0
    %3002 = vmatprep.subr.mxu0 0.0
    %3003 = vmatpush1.msra.mxu0 0.0
    %3004 = vmatprep.subr.mxu0 0.0
    %3005 = vmatpush1.msra.mxu0 0.0
    %3006 = vmatprep.subr.mxu0 0.0
    %3007 = vmatpush1.msra.mxu0 0.0
    %3008 = vmatprep.subr.mxu0 0.0
    %3009 = vmatpush1.msra.mxu0 0.0
    %3010 = vmatprep.subr.mxu0 0.0
    %3011 = vmatpush1.msra.mxu0 0.0
    %3012 = vmatprep.subr.mxu0 0.0
    %3013 = vmatpush1.msra.mxu0 0.0
    %3014 = vmatprep.subr.mxu0 0.0
    %3015 = vmatpush1.msra.mxu0 0.0
    %3016 = vmatprep.subr.mxu0 0.0
    %3017 = vmatpush1.msra.mxu0 0.0
    %3018 = vmatprep.subr.mxu0 0.0
    %3019 = vmatpush1.msra.mxu0 0.0
    %3020 = vmatprep.subr.mxu0 0.0
    %3021 = vmatpush1.msra.mxu0 0.0
    %3022 = vmatprep.subr.mxu0 0.0
    %3023 = vmatpush1.msra.mxu0 0.0
    %3024 = vmatprep.subr.mxu0 0.0
    %3025 = vmatpush1.msra.mxu0 0.0
    %3026 = vmatprep.subr.mxu0 0.0
    %3027 = vmatpush1.msra.mxu0 0.0
    %3028 = vmatprep.subr.mxu0 0.0
    %3029 = vmatpush1.msra.mxu0 0.0
    %3030 = vmatprep.subr.mxu0 0.0
    %3031 = vmatpush1.msra.mxu0 0.0
    %3032 = vmatprep.subr.mxu0 0.0
    %3033 = vmatpush1.msra.mxu0 0.0
    %3034 = vmatprep.mubr.f32.mxu0 0.0
    %3035 = vmatmul.mubr.f32.gmra.mrb[0].mxu0 %v2968
    %v3036 = vpop.f32.mrb[0].mxu0
    %v3037 = vadd.f32 0.0, %v3036
    %v3038 = vpop.f32.mrb[0].mxu0
    %3039 = vdwg.mxu0
    %3040 = vrot.lane.b32.xlu0 %v2036, 104
    %v3041 = vpop.permute.xlu0 %3040
    %3042 = vrot.lane.b32.xlu0 %v2036, 72
    %v3043 = vpop.permute.xlu0 %3042
    %v3044 = vsel %vm257, %v3041, 0
    %v3046 = vsel %vm257, %v3043, 0
    %3048 = vmatprep.subr.mxu0 0.0
    %3049 = vmatpush1.xpose.msra.mxu0 %v3046
    %3050 = vmatprep.subr.mxu0 0.0
    %3051 = vmatpush1.xpose.msra.mxu0 0.0
    %3052 = vmatprep.subr.mxu0 0.0
    %3053 = vmatpush1.xpose.msra.mxu0 0.0
    %3054 = vmatprep.subr.mxu0 0.0
    %3055 = vmatpush1.xpose.msra.mxu0 0.0
    %3056 = vmatprep.subr.mxu0 0.0
    %3057 = vmatpush1.xpose.msra.mxu0 0.0
    %3058 = vmatprep.subr.mxu0 0.0
    %3059 = vmatpush1.xpose.msra.mxu0 0.0
    %3060 = vmatprep.subr.mxu0 0.0
    %3061 = vmatpush1.xpose.msra.mxu0 0.0
    %3062 = vmatprep.subr.mxu0 0.0
    %3063 = vmatpush1.xpose.msra.mxu0 0.0
    %3064 = vmatprep.subr.mxu0 0.0
    %3065 = vmatpush1.xpose.msra.mxu0 0.0
    %3066 = vmatprep.subr.mxu0 0.0
    %3067 = vmatpush1.xpose.msra.mxu0 0.0
    %3068 = vmatprep.subr.mxu0 0.0
    %3069 = vmatpush1.xpose.msra.mxu0 0.0
    %3070 = vmatprep.subr.mxu0 0.0
    %3071 = vmatpush1.xpose.msra.mxu0 0.0
    %3072 = vmatprep.subr.mxu0 0.0
    %3073 = vmatpush1.xpose.msra.mxu0 0.0
    %3074 = vmatprep.subr.mxu0 0.0
    %3075 = vmatpush1.xpose.msra.mxu0 0.0
    %3076 = vmatprep.subr.mxu0 0.0
    %3077 = vmatpush1.xpose.msra.mxu0 0.0
    %3078 = vmatprep.subr.mxu0 0.0
    %3079 = vmatpush1.xpose.msra.mxu0 0.0
    %3080 = vmatprep.subr.mxu0 0.0
    %3081 = vmatpush1.xpose.msra.mxu0 0.0
    %3082 = vmatprep.subr.mxu0 0.0
    %3083 = vmatpush1.xpose.msra.mxu0 0.0
    %3084 = vmatprep.subr.mxu0 0.0
    %3085 = vmatpush1.xpose.msra.mxu0 0.0
    %3086 = vmatprep.subr.mxu0 0.0
    %3087 = vmatpush1.xpose.msra.mxu0 0.0
    %3088 = vmatprep.subr.mxu0 0.0
    %3089 = vmatpush1.xpose.msra.mxu0 0.0
    %3090 = vmatprep.subr.mxu0 0.0
    %3091 = vmatpush1.xpose.msra.mxu0 0.0
    %3092 = vmatprep.subr.mxu0 0.0
    %3093 = vmatpush1.xpose.msra.mxu0 0.0
    %3094 = vmatprep.subr.mxu0 0.0
    %3095 = vmatpush1.xpose.msra.mxu0 0.0
    %3096 = vmatprep.subr.mxu0 0.0
    %3097 = vmatpush1.xpose.msra.mxu0 0.0
    %3098 = vmatprep.subr.mxu0 0.0
    %3099 = vmatpush1.xpose.msra.mxu0 0.0
    %3100 = vmatprep.subr.mxu0 0.0
    %3101 = vmatpush1.xpose.msra.mxu0 0.0
    %3102 = vmatprep.subr.mxu0 0.0
    %3103 = vmatpush1.xpose.msra.mxu0 0.0
    %3104 = vmatprep.subr.mxu0 0.0
    %3105 = vmatpush1.xpose.msra.mxu0 0.0
    %3106 = vmatprep.subr.mxu0 0.0
    %3107 = vmatpush1.xpose.msra.mxu0 0.0
    %3108 = vmatprep.subr.mxu0 0.0
    %3109 = vmatpush1.xpose.msra.mxu0 0.0
    %3110 = vmatprep.subr.mxu0 0.0
    %3111 = vmatpush1.xpose.msra.mxu0 0.0
    %3112 = vmatprep.mubr.f32.mxu0 0.0
    %3113 = vmatmul.mubr.f32.gmra.mrb[0].mxu0 %v3044
    %v3114 = vpop.f32.mrb[0].mxu0
    %v3115 = vadd.f32 0.0, %v3114
    %v3116 = vpop.f32.mrb[0].mxu0
    %3117 = vdwg.mxu0
    %3118 = vrot.lane.b32.xlu0 %v2041, 104
    %v3119 = vpop.permute.xlu0 %3118
    %3120 = vrot.lane.b32.xlu0 %v2041, 72
    %v3121 = vpop.permute.xlu0 %3120
    %v3122 = vsel %vm257, %v3119, 0
    %v3124 = vsel %vm257, %v3121, 0
    %3126 = vmatprep.subr.mxu0 0.0
    %3127 = vmatpush1.xpose.msra.mxu0 %v3124
    %3128 = vmatprep.subr.mxu0 0.0
    %3129 = vmatpush1.xpose.msra.mxu0 0.0
    %3130 = vmatprep.subr.mxu0 0.0
    %3131 = vmatpush1.xpose.msra.mxu0 0.0
    %3132 = vmatprep.subr.mxu0 0.0
    %3133 = vmatpush1.xpose.msra.mxu0 0.0
    %3134 = vmatprep.subr.mxu0 0.0
    %3135 = vmatpush1.xpose.msra.mxu0 0.0
    %3136 = vmatprep.subr.mxu0 0.0
    %3137 = vmatpush1.xpose.msra.mxu0 0.0
    %3138 = vmatprep.subr.mxu0 0.0
    %3139 = vmatpush1.xpose.msra.mxu0 0.0
    %3140 = vmatprep.subr.mxu0 0.0
    %3141 = vmatpush1.xpose.msra.mxu0 0.0
    %3142 = vmatprep.subr.mxu0 0.0
    %3143 = vmatpush1.xpose.msra.mxu0 0.0
    %3144 = vmatprep.subr.mxu0 0.0
    %3145 = vmatpush1.xpose.msra.mxu0 0.0
    %3146 = vmatprep.subr.mxu0 0.0
    %3147 = vmatpush1.xpose.msra.mxu0 0.0
    %3148 = vmatprep.subr.mxu0 0.0
    %3149 = vmatpush1.xpose.msra.mxu0 0.0
    %3150 = vmatprep.subr.mxu0 0.0
    %3151 = vmatpush1.xpose.msra.mxu0 0.0
    %3152 = vmatprep.subr.mxu0 0.0
    %3153 = vmatpush1.xpose.msra.mxu0 0.0
    %3154 = vmatprep.subr.mxu0 0.0
    %3155 = vmatpush1.xpose.msra.mxu0 0.0
    %3156 = vmatprep.subr.mxu0 0.0
    %3157 = vmatpush1.xpose.msra.mxu0 0.0
    %3158 = vmatprep.subr.mxu0 0.0
    %3159 = vmatpush1.xpose.msra.mxu0 0.0
    %3160 = vmatprep.subr.mxu0 0.0
    %3161 = vmatpush1.xpose.msra.mxu0 0.0
    %3162 = vmatprep.subr.mxu0 0.0
    %3163 = vmatpush1.xpose.msra.mxu0 0.0
    %3164 = vmatprep.subr.mxu0 0.0
    %3165 = vmatpush1.xpose.msra.mxu0 0.0
    %3166 = vmatprep.subr.mxu0 0.0
    %3167 = vmatpush1.xpose.msra.mxu0 0.0
    %3168 = vmatprep.subr.mxu0 0.0
    %3169 = vmatpush1.xpose.msra.mxu0 0.0
    %3170 = vmatprep.subr.mxu0 0.0
    %3171 = vmatpush1.xpose.msra.mxu0 0.0
    %3172 = vmatprep.subr.mxu0 0.0
    %3173 = vmatpush1.xpose.msra.mxu0 0.0
    %3174 = vmatprep.subr.mxu0 0.0
    %3175 = vmatpush1.xpose.msra.mxu0 0.0
    %3176 = vmatprep.subr.mxu0 0.0
    %3177 = vmatpush1.xpose.msra.mxu0 0.0
    %3178 = vmatprep.subr.mxu0 0.0
    %3179 = vmatpush1.xpose.msra.mxu0 0.0
    %3180 = vmatprep.subr.mxu0 0.0
    %3181 = vmatpush1.xpose.msra.mxu0 0.0
    %3182 = vmatprep.subr.mxu0 0.0
    %3183 = vmatpush1.xpose.msra.mxu0 0.0
    %3184 = vmatprep.subr.mxu0 0.0
    %3185 = vmatpush1.xpose.msra.mxu0 0.0
    %3186 = vmatprep.subr.mxu0 0.0
    %3187 = vmatpush1.xpose.msra.mxu0 0.0
    %3188 = vmatprep.subr.mxu0 0.0
    %3189 = vmatpush1.xpose.msra.mxu0 0.0
    %3190 = vmatprep.mubr.f32.mxu0 0.0
    %3191 = vmatmul.mubr.f32.gmra.mrb[0].mxu0 %v3122
    %v3192 = vpop.f32.mrb[0].mxu0
    %v3193 = vadd.f32 0.0, %v3192
    %v3194 = vpop.f32.mrb[0].mxu0
    %3195 = vdwg.mxu0
    %v3196 = vsel %vm257, %v3115, -inf
    %3197 = vmax.xlane.f32.xlu0 %v3196
    %v3198 = vpop.xlane.xlu0 %3197
    %v3199 = vsel %vm257, %v3193, -inf
    %3200 = vmax.xlane.f32.xlu0 %v3199
    %v3201 = vpop.xlane.xlu0 %3200
    %v3202 = vsub.f32 %v3115, %v3198
    %v3203 = vsub.f32 %v3193, %v3201
    %v3204 = vmul.f32 %v3202, 1.442695
    %v3205 = vpow.pop %v3204
    %v3206 = vmul.f32 %v3203, 1.442695
    %v3207 = vpow.pop %v3206
    %v3208 = vsel %vm257, %v3205, 0.0
    %3209 = vadd.xlane.f32.xlu0 %v3208
    %v3210 = vpop.xlane.xlu0 %3209
    %v3211 = vsel %vm257, %v3207, 0.0
    %3212 = vadd.xlane.f32.xlu0 %v3211
    %v3213 = vpop.xlane.xlu0 %3212
    %v3214 = vrcp.pop %v3210
    %v3215 = vrcp.pop %v3213
    %v3216 = vmul.f32 %v3205, %v3214
    %v3217 = vmul.f32 %v3207, %v3215
    %s3218 = scalar_lea.vmem [#allocation4], 48
    %3219 = vst.msk [vmem:[%s3218] sm:$0xff] %vm257, %v3216
    %3220 = vst.msk [vmem:[%s3218 + $0x8] sm:$0xff] %vm257, %v3217
    %3221 = vrot.lane.b32.xlu0 %v2036, 40
    %v3222 = vpop.permute.xlu0 %3221
    %v3225 = vsel %vm257, %v3216, 0
    %3227 = vmatprep.subr.mxu0 0.0
    %3228 = vmatpush1.msra.mxu0 %v3222
    %3229 = vmatprep.subr.mxu0 0.0
    %3230 = vmatpush1.msra.mxu0 0.0
    %3231 = vmatprep.subr.mxu0 0.0
    %3232 = vmatpush1.msra.mxu0 0.0
    %3233 = vmatprep.subr.mxu0 0.0
    %3234 = vmatpush1.msra.mxu0 0.0
    %3235 = vmatprep.subr.mxu0 0.0
    %3236 = vmatpush1.msra.mxu0 0.0
    %3237 = vmatprep.subr.mxu0 0.0
    %3238 = vmatpush1.msra.mxu0 0.0
    %3239 = vmatprep.subr.mxu0 0.0
    %3240 = vmatpush1.msra.mxu0 0.0
    %3241 = vmatprep.subr.mxu0 0.0
    %3242 = vmatpush1.msra.mxu0 0.0
    %3243 = vmatprep.subr.mxu0 0.0
    %3244 = vmatpush1.msra.mxu0 0.0
    %3245 = vmatprep.subr.mxu0 0.0
    %3246 = vmatpush1.msra.mxu0 0.0
    %3247 = vmatprep.subr.mxu0 0.0
    %3248 = vmatpush1.msra.mxu0 0.0
    %3249 = vmatprep.subr.mxu0 0.0
    %3250 = vmatpush1.msra.mxu0 0.0
    %3251 = vmatprep.subr.mxu0 0.0
    %3252 = vmatpush1.msra.mxu0 0.0
    %3253 = vmatprep.subr.mxu0 0.0
    %3254 = vmatpush1.msra.mxu0 0.0
    %3255 = vmatprep.subr.mxu0 0.0
    %3256 = vmatpush1.msra.mxu0 0.0
    %3257 = vmatprep.subr.mxu0 0.0
    %3258 = vmatpush1.msra.mxu0 0.0
    %3259 = vmatprep.subr.mxu0 0.0
    %3260 = vmatpush1.msra.mxu0 0.0
    %3261 = vmatprep.subr.mxu0 0.0
    %3262 = vmatpush1.msra.mxu0 0.0
    %3263 = vmatprep.subr.mxu0 0.0
    %3264 = vmatpush1.msra.mxu0 0.0
    %3265 = vmatprep.subr.mxu0 0.0
    %3266 = vmatpush1.msra.mxu0 0.0
    %3267 = vmatprep.subr.mxu0 0.0
    %3268 = vmatpush1.msra.mxu0 0.0
    %3269 = vmatprep.subr.mxu0 0.0
    %3270 = vmatpush1.msra.mxu0 0.0
    %3271 = vmatprep.subr.mxu0 0.0
    %3272 = vmatpush1.msra.mxu0 0.0
    %3273 = vmatprep.subr.mxu0 0.0
    %3274 = vmatpush1.msra.mxu0 0.0
    %3275 = vmatprep.subr.mxu0 0.0
    %3276 = vmatpush1.msra.mxu0 0.0
    %3277 = vmatprep.subr.mxu0 0.0
    %3278 = vmatpush1.msra.mxu0 0.0
    %3279 = vmatprep.subr.mxu0 0.0
    %3280 = vmatpush1.msra.mxu0 0.0
    %3281 = vmatprep.subr.mxu0 0.0
    %3282 = vmatpush1.msra.mxu0 0.0
    %3283 = vmatprep.subr.mxu0 0.0
    %3284 = vmatpush1.msra.mxu0 0.0
    %3285 = vmatprep.subr.mxu0 0.0
    %3286 = vmatpush1.msra.mxu0 0.0
    %3287 = vmatprep.subr.mxu0 0.0
    %3288 = vmatpush1.msra.mxu0 0.0
    %3289 = vmatprep.subr.mxu0 0.0
    %3290 = vmatpush1.msra.mxu0 0.0
    %3291 = vmatprep.mubr.f32.mxu0 0.0
    %3292 = vmatmul.mubr.f32.gmra.mrb[0].mxu0 %v3225
    %v3293 = vpop.f32.mrb[0].mxu0
    %v3294 = vadd.f32 0.0, %v3293
    %v3295 = vpop.f32.mrb[0].mxu0
    %3296 = vdwg.mxu0
    %3297 = vrot.lane.b32.xlu0 %v2041, 40
    %v3298 = vpop.permute.xlu0 %3297
    %v3301 = vsel %vm257, %v3217, 0
    %3303 = vmatprep.subr.mxu0 0.0
    %3304 = vmatpush1.msra.mxu0 %v3298
    %3305 = vmatprep.subr.mxu0 0.0
    %3306 = vmatpush1.msra.mxu0 0.0
    %3307 = vmatprep.subr.mxu0 0.0
    %3308 = vmatpush1.msra.mxu0 0.0
    %3309 = vmatprep.subr.mxu0 0.0
    %3310 = vmatpush1.msra.mxu0 0.0
    %3311 = vmatprep.subr.mxu0 0.0
    %3312 = vmatpush1.msra.mxu0 0.0
    %3313 = vmatprep.subr.mxu0 0.0
    %3314 = vmatpush1.msra.mxu0 0.0
    %3315 = vmatprep.subr.mxu0 0.0
    %3316 = vmatpush1.msra.mxu0 0.0
    %3317 = vmatprep.subr.mxu0 0.0
    %3318 = vmatpush1.msra.mxu0 0.0
    %3319 = vmatprep.subr.mxu0 0.0
    %3320 = vmatpush1.msra.mxu0 0.0
    %3321 = vmatprep.subr.mxu0 0.0
    %3322 = vmatpush1.msra.mxu0 0.0
    %3323 = vmatprep.subr.mxu0 0.0
    %3324 = vmatpush1.msra.mxu0 0.0
    %3325 = vmatprep.subr.mxu0 0.0
    %3326 = vmatpush1.msra.mxu0 0.0
    %3327 = vmatprep.subr.mxu0 0.0
    %3328 = vmatpush1.msra.mxu0 0.0
    %3329 = vmatprep.subr.mxu0 0.0
    %3330 = vmatpush1.msra.mxu0 0.0
    %3331 = vmatprep.subr.mxu0 0.0
    %3332 = vmatpush1.msra.mxu0 0.0
    %3333 = vmatprep.subr.mxu0 0.0
    %3334 = vmatpush1.msra.mxu0 0.0
    %3335 = vmatprep.subr.mxu0 0.0
    %3336 = vmatpush1.msra.mxu0 0.0
    %3337 = vmatprep.subr.mxu0 0.0
    %3338 = vmatpush1.msra.mxu0 0.0
    %3339 = vmatprep.subr.mxu0 0.0
    %3340 = vmatpush1.msra.mxu0 0.0
    %3341 = vmatprep.subr.mxu0 0.0
    %3342 = vmatpush1.msra.mxu0 0.0
    %3343 = vmatprep.subr.mxu0 0.0
    %3344 = vmatpush1.msra.mxu0 0.0
    %3345 = vmatprep.subr.mxu0 0.0
    %3346 = vmatpush1.msra.mxu0 0.0
    %3347 = vmatprep.subr.mxu0 0.0
    %3348 = vmatpush1.msra.mxu0 0.0
    %3349 = vmatprep.subr.mxu0 0.0
    %3350 = vmatpush1.msra.mxu0 0.0
    %3351 = vmatprep.subr.mxu0 0.0
    %3352 = vmatpush1.msra.mxu0 0.0
    %3353 = vmatprep.subr.mxu0 0.0
    %3354 = vmatpush1.msra.mxu0 0.0
    %3355 = vmatprep.subr.mxu0 0.0
    %3356 = vmatpush1.msra.mxu0 0.0
    %3357 = vmatprep.subr.mxu0 0.0
    %3358 = vmatpush1.msra.mxu0 0.0
    %3359 = vmatprep.subr.mxu0 0.0
    %3360 = vmatpush1.msra.mxu0 0.0
    %3361 = vmatprep.subr.mxu0 0.0
    %3362 = vmatpush1.msra.mxu0 0.0
    %3363 = vmatprep.subr.mxu0 0.0
    %3364 = vmatpush1.msra.mxu0 0.0
    %3365 = vmatprep.subr.mxu0 0.0
    %3366 = vmatpush1.msra.mxu0 0.0
    %3367 = vmatprep.mubr.f32.mxu0 0.0
    %3368 = vmatmul.mubr.f32.gmra.mrb[0].mxu0 %v3301
    %v3369 = vpop.f32.mrb[0].mxu0
    %v3370 = vadd.f32 0.0, %v3369
    %v3371 = vpop.f32.mrb[0].mxu0
    %3372 = vdwg.mxu0
    %3375 = vrot.lane.b32.xlu0 %v2628, 8
    %v3376 = vpop.permute.xlu0 %3375
    %3377 = vrot.lane.b32.xlu0 %v2704, 8
    %v3378 = vpop.permute.xlu0 %3377
    %3383 = vrot.lane.b32.xlu0 %v2961, 16
    %v3384 = vpop.permute.xlu0 %3383
    %3385 = vrot.lane.b32.xlu0 %v3037, 16
    %v3386 = vpop.permute.xlu0 %3385
    %3391 = vrot.lane.b32.xlu0 %v3294, 24
    %v3392 = vpop.permute.xlu0 %3391
    %3393 = vrot.lane.b32.xlu0 %v3370, 24
    %v3394 = vpop.permute.xlu0 %3393
    %v3397 = vsel %vm257, %v2295, %v3376
    %v3398 = vsel %vm257, %v2371, %v3378
    %v3399 = vsel %vm46, %v3397, %v3384
    %v3400 = vsel %vm46, %v3398, %v3386
    %v3401 = vsel %vm1601, %v3399, %v3392
    %v3402 = vsel %vm1601, %v3400, %v3394
    %s3403 = scalar_lea.vmem %s5, 32
    %v3404 = vld [vmem:[%s3403] sm:$0xff]
    %v3405 = vld [vmem:[%s3403 + $0x8] sm:$0xff]
    %v3406 = vld [vmem:[%s3403 + $0x10] sm:$0xff]
    %v3407 = vld [vmem:[%s3403 + $0x18] sm:$0xff]
    %v3409 = vsel %vm128, %v3401, 0
    %v3412 = vsel %vm128, %v3402, 0
    %3414 = vmatprep.subr.mxu0 0.0
    %3415 = vmatpush1.msra.mxu0 %v3404
    %3416 = vmatprep.subr.mxu0 0.0
    %3417 = vmatpush1.msra.mxu0 %v3405
    %3418 = vmatprep.subr.mxu0 0.0
    %3419 = vmatpush1.msra.mxu0 %v3406
    %3420 = vmatprep.subr.mxu0 0.0
    %3421 = vmatpush1.msra.mxu0 %v3407
    %3422 = vmatprep.subr.mxu0 0.0
    %3423 = vmatpush1.msra.mxu0 0.0
    %3424 = vmatprep.subr.mxu0 0.0
    %3425 = vmatpush1.msra.mxu0 0.0
    %3426 = vmatprep.subr.mxu0 0.0
    %3427 = vmatpush1.msra.mxu0 0.0
    %3428 = vmatprep.subr.mxu0 0.0
    %3429 = vmatpush1.msra.mxu0 0.0
    %3430 = vmatprep.subr.mxu0 0.0
    %3431 = vmatpush1.msra.mxu0 0.0
    %3432 = vmatprep.subr.mxu0 0.0
    %3433 = vmatpush1.msra.mxu0 0.0
    %3434 = vmatprep.subr.mxu0 0.0
    %3435 = vmatpush1.msra.mxu0 0.0
    %3436 = vmatprep.subr.mxu0 0.0
    %3437 = vmatpush1.msra.mxu0 0.0
    %3438 = vmatprep.subr.mxu0 0.0
    %3439 = vmatpush1.msra.mxu0 0.0
    %3440 = vmatprep.subr.mxu0 0.0
    %3441 = vmatpush1.msra.mxu0 0.0
    %3442 = vmatprep.subr.mxu0 0.0
    %3443 = vmatpush1.msra.mxu0 0.0
    %3444 = vmatprep.subr.mxu0 0.0
    %3445 = vmatpush1.msra.mxu0 0.0
    %3446 = vmatprep.subr.mxu0 0.0
    %3447 = vmatpush1.msra.mxu0 0.0
    %3448 = vmatprep.subr.mxu0 0.0
    %3449 = vmatpush1.msra.mxu0 0.0
    %3450 = vmatprep.subr.mxu0 0.0
    %3451 = vmatpush1.msra.mxu0 0.0
    %3452 = vmatprep.subr.mxu0 0.0
    %3453 = vmatpush1.msra.mxu0 0.0
    %3454 = vmatprep.subr.mxu0 0.0
    %3455 = vmatpush1.msra.mxu0 0.0
    %3456 = vmatprep.subr.mxu0 0.0
    %3457 = vmatpush1.msra.mxu0 0.0
    %3458 = vmatprep.subr.mxu0 0.0
    %3459 = vmatpush1.msra.mxu0 0.0
    %3460 = vmatprep.subr.mxu0 0.0
    %3461 = vmatpush1.msra.mxu0 0.0
    %3462 = vmatprep.subr.mxu0 0.0
    %3463 = vmatpush1.msra.mxu0 0.0
    %3464 = vmatprep.subr.mxu0 0.0
    %3465 = vmatpush1.msra.mxu0 0.0
    %3466 = vmatprep.subr.mxu0 0.0
    %3467 = vmatpush1.msra.mxu0 0.0
    %3468 = vmatprep.subr.mxu0 0.0
    %3469 = vmatpush1.msra.mxu0 0.0
    %3470 = vmatprep.subr.mxu0 0.0
    %3471 = vmatpush1.msra.mxu0 0.0
    %3472 = vmatprep.subr.mxu0 0.0
    %3473 = vmatpush1.msra.mxu0 0.0
    %3474 = vmatprep.subr.mxu0 0.0
    %3475 = vmatpush1.msra.mxu0 0.0
    %3476 = vmatprep.subr.mxu0 0.0
    %3477 = vmatpush1.msra.mxu0 0.0
    %3478 = vmatprep.mubr.f32.mxu0 0.0
    %3479 = vmatmul.mubr.f32.gmra.mrb[0].mxu0 %v3409
    %v3480 = vpop.f32.mrb[0].mxu0
    %v3481 = vadd.f32 %v1954, %v3480
    %v3482 = vpop.f32.mrb[0].mxu0
    %3483 = vmatprep.mubr.f32.mxu0 0.0
    %3484 = vmatmul.mubr.f32.gmra.mrb[0].mxu0 %v3412
    %v3485 = vpop.f32.mrb[0].mxu0
    %v3486 = vadd.f32 %v1955, %v3485
    %v3487 = vpop.f32.mrb[0].mxu0
    %3488 = vdwg.mxu0
    %v3489 = vsel %vm128, %v3481, 0.0
    %3490 = vadd.xlane.f32.xlu0 %v3489
    %v3491 = vpop.xlane.xlu0 %3490
    %v3492 = vsel %vm128, %v3486, 0.0
    %3493 = vadd.xlane.f32.xlu0 %v3492
    %v3494 = vpop.xlane.xlu0 %3493
    %v3495 = vmul.f32 %v3491, %v135
    %v3496 = vmul.f32 %v3494, %v135
    %v3497 = vsub.f32 %v3481, %v3495
    %v3498 = vsub.f32 %v3486, %v3496
    %v3499 = vmul.f32 %v3497, %v3497
    %v3500 = vmul.f32 %v3498, %v3498
    %v3501 = vsel %vm128, %v3499, 0.0
    %3502 = vadd.xlane.f32.xlu0 %v3501
    %v3503 = vpop.xlane.xlu0 %3502
    %v3504 = vsel %vm128, %v3500, 0.0
    %3505 = vadd.xlane.f32.xlu0 %v3504
    %v3506 = vpop.xlane.xlu0 %3505
    %v3507 = vmul.f32 %v3503, %v135
    %v3508 = vmul.f32 %v3506, %v135
    %v3509 = vadd.f32 %v3507, 1e-06
    %v3510 = vadd.f32 %v3508, 1e-06
    %v3511 = vrsqrt.pop %v3509
    %v3512 = vrsqrt.pop %v3510
    %v3513 = vmul.f32 %v3497, %v3511
    %v3514 = vmul.f32 %v3498, %v3512
    %v3515 = vlaneseq
    %v3516 = vshrl.u32 %v3515, 7
    %v3517 = vsub.s32 0, %v3516
    %v3518 = vrot.slane %v1957, %v3517
    %v3519 = vmul.f32 %v3513, %v3518
    %v3520 = vmul.f32 %v3514, %v3518
    %v3521 = vlaneseq
    %v3522 = vshrl.u32 %v3521, 7
    %v3523 = vsub.s32 1, %v3522
    %v3524 = vrot.slane %v1957, %v3523
    %v3525 = vadd.f32 %v3519, %v3524
    %v3526 = vadd.f32 %v3520, %v3524
    %s3527 = scalar_lea.vmem %s6, 32
    %v3528 = vld [vmem:[%s3527] sm:$0xff]
    %v3529 = vld [vmem:[%s3527 + $0x8] sm:$0xff]
    %v3530 = vld [vmem:[%s3527 + $0x10] sm:$0xff]
    %v3531 = vld [vmem:[%s3527 + $0x18] sm:$0xff]
    %s3532 = scalar_lea.vmem %s7, 1
    %v3533 = vld [vmem:[%s3532] sm:$0x1]
    %v3535 = vlaneseq
    %v3536 = vshrl.u32 %v3535, 7
    %v3537 = vsub.s32 0, %v3536
    %v3538 = vrot.slane %v3533, %v3537
    %v3541 = vsel %vm128, %v3525, 0
    %v3544 = vsel %vm128, %v3526, 0
    %3546 = vmatprep.subr.mxu0 0.0
    %3547 = vmatpush1.msra.mxu0 %v3528
    %3548 = vmatprep.subr.mxu0 0.0
    %3549 = vmatpush1.msra.mxu0 %v3529
    %3550 = vmatprep.subr.mxu0 0.0
    %3551 = vmatpush1.msra.mxu0 %v3530
    %3552 = vmatprep.subr.mxu0 0.0
    %3553 = vmatpush1.msra.mxu0 %v3531
    %3554 = vmatprep.subr.mxu0 0.0
    %3555 = vmatpush1.msra.mxu0 0.0
    %3556 = vmatprep.subr.mxu0 0.0
    %3557 = vmatpush1.msra.mxu0 0.0
    %3558 = vmatprep.subr.mxu0 0.0
    %3559 = vmatpush1.msra.mxu0 0.0
    %3560 = vmatprep.subr.mxu0 0.0
    %3561 = vmatpush1.msra.mxu0 0.0
    %3562 = vmatprep.subr.mxu0 0.0
    %3563 = vmatpush1.msra.mxu0 0.0
    %3564 = vmatprep.subr.mxu0 0.0
    %3565 = vmatpush1.msra.mxu0 0.0
    %3566 = vmatprep.subr.mxu0 0.0
    %3567 = vmatpush1.msra.mxu0 0.0
    %3568 = vmatprep.subr.mxu0 0.0
    %3569 = vmatpush1.msra.mxu0 0.0
    %3570 = vmatprep.subr.mxu0 0.0
    %3571 = vmatpush1.msra.mxu0 0.0
    %3572 = vmatprep.subr.mxu0 0.0
    %3573 = vmatpush1.msra.mxu0 0.0
    %3574 = vmatprep.subr.mxu0 0.0
    %3575 = vmatpush1.msra.mxu0 0.0
    %3576 = vmatprep.subr.mxu0 0.0
    %3577 = vmatpush1.msra.mxu0 0.0
    %3578 = vmatprep.subr.mxu0 0.0
    %3579 = vmatpush1.msra.mxu0 0.0
    %3580 = vmatprep.subr.mxu0 0.0
    %3581 = vmatpush1.msra.mxu0 0.0
    %3582 = vmatprep.subr.mxu0 0.0
    %3583 = vmatpush1.msra.mxu0 0.0
    %3584 = vmatprep.subr.mxu0 0.0
    %3585 = vmatpush1.msra.mxu0 0.0
    %3586 = vmatprep.subr.mxu0 0.0
    %3587 = vmatpush1.msra.mxu0 0.0
    %3588 = vmatprep.subr.mxu0 0.0
    %3589 = vmatpush1.msra.mxu0 0.0
    %3590 = vmatprep.subr.mxu0 0.0
    %3591 = vmatpush1.msra.mxu0 0.0
    %3592 = vmatprep.subr.mxu0 0.0
    %3593 = vmatpush1.msra.mxu0 0.0
    %3594 = vmatprep.subr.mxu0 0.0
    %3595 = vmatpush1.msra.mxu0 0.0
    %3596 = vmatprep.subr.mxu0 0.0
    %3597 = vmatpush1.msra.mxu0 0.0
    %3598 = vmatprep.subr.mxu0 0.0
    %3599 = vmatpush1.msra.mxu0 0.0
    %3600 = vmatprep.subr.mxu0 0.0
    %3601 = vmatpush1.msra.mxu0 0.0
    %3602 = vmatprep.subr.mxu0 0.0
    %3603 = vmatpush1.msra.mxu0 0.0
    %3604 = vmatprep.subr.mxu0 0.0
    %3605 = vmatpush1.msra.mxu0 0.0
    %3606 = vmatprep.subr.mxu0 0.0
    %3607 = vmatpush1.msra.mxu0 0.0
    %3608 = vmatprep.subr.mxu0 0.0
    %3609 = vmatpush1.msra.mxu0 0.0
    %3610 = vmatprep.mubr.f32.mxu0 0.0
    %3611 = vmatmul.mubr.f32.gmra.mrb[0].mxu0 %v3541
    %v3612 = vpop.f32.mrb[0].mxu0
    %v3613 = vadd.f32 %v3538, %v3612
    %v3614 = vpop.f32.mrb[0].mxu0
    %3615 = vmatprep.mubr.f32.mxu0 0.0
    %3616 = vmatmul.mubr.f32.gmra.mrb[0].mxu0 %v3544
    %v3617 = vpop.f32.mrb[0].mxu0
    %v3618 = vadd.f32 %v3538, %v3617
    %v3619 = vpop.f32.mrb[0].mxu0
    %3620 = vdwg.mxu0
    %v3621 = vmax.f32 %v3613, 0.0
    %v3622 = vmax.f32 %v3618, 0.0
    %s3623 = scalar_lea.vmem %s8, 128
    %v3624 = vld [vmem:[%s3623] sm:$0xff]
    %v3625 = vld [vmem:[%s3623 + $0x8] sm:$0xff]
    %v3626 = vld [vmem:[%s3623 + $0x10] sm:$0xff]
    %v3627 = vld [vmem:[%s3623 + $0x18] sm:$0xff]
    %v3628 = vld [vmem:[%s3623 + $0x20] sm:$0xff]
    %v3629 = vld [vmem:[%s3623 + $0x28] sm:$0xff]
    %v3630 = vld [vmem:[%s3623 + $0x30] sm:$0xff]
    %v3631 = vld [vmem:[%s3623 + $0x38] sm:$0xff]
    %v3632 = vld [vmem:[%s3623 + $0x40] sm:$0xff]
    %v3633 = vld [vmem:[%s3623 + $0x48] sm:$0xff]
    %v3634 = vld [vmem:[%s3623 + $0x50] sm:$0xff]
    %v3635 = vld [vmem:[%s3623 + $0x58] sm:$0xff]
    %v3636 = vld [vmem:[%s3623 + $0x60] sm:$0xff]
    %v3637 = vld [vmem:[%s3623 + $0x68] sm:$0xff]
    %v3638 = vld [vmem:[%s3623 + $0x70] sm:$0xff]
    %v3639 = vld [vmem:[%s3623 + $0x78] sm:$0xff]
    %v3640 = vlaneseq
    %v3641 = vshrl.u32 %v3640, 7
    %v3642 = vsub.s32 2, %v3641
    %v3643 = vrot.slane %v1957, %v3642
    %3644 = vmatprep.subr.mxu0 0.0
    %3645 = vmatpush1.msra.mxu0 %v3624
    %3646 = vmatprep.subr.mxu0 0.0
    %3647 = vmatpush1.msra.mxu0 %v3625
    %3648 = vmatprep.subr.mxu0 0.0
    %3649 = vmatpush1.msra.mxu0 %v3626
    %3650 = vmatprep.subr.mxu0 0.0
    %3651 = vmatpush1.msra.mxu0 %v3627
    %3652 = vmatprep.subr.mxu0 0.0
    %3653 = vmatpush1.msra.mxu0 %v3628
    %3654 = vmatprep.subr.mxu0 0.0
    %3655 = vmatpush1.msra.mxu0 %v3629
    %3656 = vmatprep.subr.mxu0 0.0
    %3657 = vmatpush1.msra.mxu0 %v3630
    %3658 = vmatprep.subr.mxu0 0.0
    %3659 = vmatpush1.msra.mxu0 %v3631
    %3660 = vmatprep.subr.mxu0 0.0
    %3661 = vmatpush1.msra.mxu0 %v3632
    %3662 = vmatprep.subr.mxu0 0.0
    %3663 = vmatpush1.msra.mxu0 %v3633
    %3664 = vmatprep.subr.mxu0 0.0
    %3665 = vmatpush1.msra.mxu0 %v3634
    %3666 = vmatprep.subr.mxu0 0.0
    %3667 = vmatpush1.msra.mxu0 %v3635
    %3668 = vmatprep.subr.mxu0 0.0
    %3669 = vmatpush1.msra.mxu0 %v3636
    %3670 = vmatprep.subr.mxu0 0.0
    %3671 = vmatpush1.msra.mxu0 %v3637
    %3672 = vmatprep.subr.mxu0 0.0
    %3673 = vmatpush1.msra.mxu0 %v3638
    %3674 = vmatprep.subr.mxu0 0.0
    %3675 = vmatpush1.msra.mxu0 %v3639
    %3676 = vmatprep.subr.mxu0 0.0
    %3677 = vmatpush1.msra.mxu0 0.0
    %3678 = vmatprep.subr.mxu0 0.0
    %3679 = vmatpush1.msra.mxu0 0.0
    %3680 = vmatprep.subr.mxu0 0.0
    %3681 = vmatpush1.msra.mxu0 0.0
    %3682 = vmatprep.subr.mxu0 0.0
    %3683 = vmatpush1.msra.mxu0 0.0
    %3684 = vmatprep.subr.mxu0 0.0
    %3685 = vmatpush1.msra.mxu0 0.0
    %3686 = vmatprep.subr.mxu0 0.0
    %3687 = vmatpush1.msra.mxu0 0.0
    %3688 = vmatprep.subr.mxu0 0.0
    %3689 = vmatpush1.msra.mxu0 0.0
    %3690 = vmatprep.subr.mxu0 0.0
    %3691 = vmatpush1.msra.mxu0 0.0
    %3692 = vmatprep.subr.mxu0 0.0
    %3693 = vmatpush1.msra.mxu0 0.0
    %3694 = vmatprep.subr.mxu0 0.0
    %3695 = vmatpush1.msra.mxu0 0.0
    %3696 = vmatprep.subr.mxu0 0.0
    %3697 = vmatpush1.msra.mxu0 0.0
    %3698 = vmatprep.subr.mxu0 0.0
    %3699 = vmatpush1.msra.mxu0 0.0
    %3700 = vmatprep.subr.mxu0 0.0
    %3701 = vmatpush1.msra.mxu0 0.0
    %3702 = vmatprep.subr.mxu0 0.0
    %3703 = vmatpush1.msra.mxu0 0.0
    %3704 = vmatprep.subr.mxu0 0.0
    %3705 = vmatpush1.msra.mxu0 0.0
    %3706 = vmatprep.subr.mxu0 0.0
    %3707 = vmatpush1.msra.mxu0 0.0
    %3708 = vmatprep.mubr.f32.mxu0 0.0
    %3709 = vmatmul.mubr.f32.gmra.mrb[0].mxu0 %v3621
    %v3710 = vpop.f32.mrb[0].mxu0
    %v3711 = vadd.f32 %v3643, %v3710
    %v3712 = vpop.f32.mrb[0].mxu0
    %3713 = vmatprep.mubr.f32.mxu0 0.0
    %3714 = vmatmul.mubr.f32.gmra.mrb[0].mxu0 %v3622
    %v3715 = vpop.f32.mrb[0].mxu0
    %v3716 = vadd.f32 %v3643, %v3715
    %v3717 = vpop.f32.mrb[0].mxu0
    %3718 = vdwg.mxu0
    %v3719 = vadd.f32 %v3711, %v3525
    %v3720 = vadd.f32 %v3716, %v3526
    %v3721 = vsel %vm128, %v3719, 0.0
    %3722 = vadd.xlane.f32.xlu0 %v3721
    %v3723 = vpop.xlane.xlu0 %3722
    %v3724 = vsel %vm128, %v3720, 0.0
    %3725 = vadd.xlane.f32.xlu0 %v3724
    %v3726 = vpop.xlane.xlu0 %3725
    %v3727 = vmul.f32 %v3723, %v135
    %v3728 = vmul.f32 %v3726, %v135
    %v3729 = vsub.f32 %v3719, %v3727
    %v3730 = vsub.f32 %v3720, %v3728
    %v3731 = vmul.f32 %v3729, %v3729
    %v3732 = vmul.f32 %v3730, %v3730
    %v3733 = vsel %vm128, %v3731, 0.0
    %3734 = vadd.xlane.f32.xlu0 %v3733
    %v3735 = vpop.xlane.xlu0 %3734
    %v3736 = vsel %vm128, %v3732, 0.0
    %3737 = vadd.xlane.f32.xlu0 %v3736
    %v3738 = vpop.xlane.xlu0 %3737
    %v3739 = vmul.f32 %v3735, %v135
    %v3740 = vmul.f32 %v3738, %v135
    %v3741 = vadd.f32 %v3739, 1e-06
    %v3742 = vadd.f32 %v3740, 1e-06
    %v3743 = vrsqrt.pop %v3741
    %v3744 = vrsqrt.pop %v3742
    %v3745 = vmul.f32 %v3729, %v3743
    %v3746 = vmul.f32 %v3730, %v3744
    %v3747 = vlaneseq
    %v3748 = vshrl.u32 %v3747, 7
    %v3749 = vsub.s32 3, %v3748
    %v3750 = vrot.slane %v1957, %v3749
    %v3751 = vmul.f32 %v3745, %v3750
    %v3752 = vmul.f32 %v3746, %v3750
    %v3753 = vlaneseq
    %v3754 = vshrl.u32 %v3753, 7
    %v3755 = vsub.s32 4, %v3754
    %v3756 = vrot.slane %v1957, %v3755
    %v3757 = vadd.f32 %v3751, %v3756
    %v3758 = vadd.f32 %v3752, %v3756
    %3759 = vst.msk [vmem:[#allocation2] sm:$0xff] %vm128, %v3757
    %3760 = vst.msk [vmem:[#allocation2 + $0x8] sm:$0xff] %vm128, %v3758
    // Predicated region
    $region42: #{tpu_custom_call.1} parent=1 // pred_check
      _
    $region43: #{tpu_custom_call.1} parent=1 // pred_check_branch
      %3762 = sbr.rel (0) target = $region45
    $region44: #{tpu_custom_call.1} parent=1 // pred_region
      %s3764 = ssub.s32 256, 256
      %3765 = vsyncadd [#allocation3], %s3764
      %s3766 = sshll.u32 [#allocation2], 4
      %s3767 = int_to_ptr.vmem [resolvable:$true] %s3766
      %3772 = dma.vmem_to_hbm [thread:$0]  %s3767, 256, %s10, [#allocation3], 128, 128, 8
    $region45: #{tpu_custom_call.1} parent=1 // pred_fallthru
      _
    // Predicated region
    $region46: #{tpu_custom_call.1} parent=1 // pred_check
      _
    $region47: #{tpu_custom_call.1} parent=1 // pred_check_branch
      %3774 = sbr.rel (0) target = $region49
    $region48: #{tpu_custom_call.1} parent=1 // pred_region
      %s3776 = ssub.s32 1024, 1024
      %3777 = vsyncadd [#allocation5], %s3776
      %s3778 = sshll.u32 [#allocation4], 4
      %s3779 = int_to_ptr.vmem [resolvable:$true] %s3778
      %3784 = dma.vmem_to_hbm [thread:$0]  %s3779, 1024, %s11, [#allocation5], 128, 128, 8
    $region49: #{tpu_custom_call.1} parent=1 // pred_fallthru
      _
    // Predicated region
    $region50: #{tpu_custom_call.1} parent=1 // pred_check
      _
    $region51: #{tpu_custom_call.1} parent=1 // pred_check_branch
      %3786 = sbr.rel (0) target = $region53
    $region52: #{tpu_custom_call.1} parent=1 // pred_region
      %3787 = dma.done [#allocation3], 256
    $region53: #{tpu_custom_call.1} parent=1 // pred_fallthru
      _
    // Predicated region
    $region54: #{tpu_custom_call.1} parent=1 // pred_check
      _
    $region55: #{tpu_custom_call.1} parent=1 // pred_check_branch
      %3789 = sbr.rel (0) target = $region57
    $region56: #{tpu_custom_call.1} parent=1 // pred_region
      %3790 = dma.done [#allocation5], 1024
    $region57: #{tpu_custom_call.1} parent=1 // pred_fallthru
      _
    %3791 = vsyncpa [#allocation3], 1
    %3792 = vsyncpa [#allocation5], 1

</llo_original>
